<compile_context>
chip_gen: v6e
topology: v6e:2x2x1
jax: 0.10.0
libtpu: 0.0.40
codegen_flags: <defaults>
</compile_context>

<pallas_src>
import functools

import jax
import jax.numpy as jnp
from jax.experimental import pallas as pl
from jax.experimental.pallas import tpu as pltpu


def rnn_fc_block_kernel(x_ref, wih0_ref, whh0_ref, b0_ref, wih_ref, whh_ref,
                        bhi_ref, wfc_ref, bfc_ref, o_ref,
                        h_state, blk_scr, *, layers):
    """One (b_blk, t_blk) block of the multi-layer tanh RNN + FC.

    Phase 1: batched bf16 layer-0 input projection for the whole block
             (1 matmul, f32 accumulate), staged into blk_scr.
    Phase 2: sequential tanh recurrence; hidden state carried in VMEM scratch
             across time blocks; layers l>0 use two dots (no lane concat).
             The top-layer state of step t overwrites blk_scr[:, t, :] in
             place (its xproj slot has already been consumed).
    Phase 3: batched bf16 FC over the whole block (1 matmul) and a single
             dense store into o_ref.
    """
    ti = pl.program_id(1)                      # time-block index (sequential)
    b_blk, t_blk, d_in = x_ref.shape
    H = whh0_ref.shape[0]

    # h_0 = 0 for every layer (PyTorch default when no h0 is passed).
    @pl.when(ti == 0)
    def _():
        h_state[...] = jnp.zeros_like(h_state)

    # ---- Phase 1: batched input projection (layer-0 biases folded in) ------
    x2 = x_ref[...].astype(jnp.bfloat16).reshape(b_blk * t_blk, d_in)
    xproj = (jnp.dot(x2, wih0_ref[...], preferred_element_type=jnp.float32)
             + b0_ref[...])                                    # f32 (B*T, H)
    blk_scr[...] = xproj.reshape(b_blk, t_blk, H)

    # ---- Hoisted weight loads / bias broadcasts (outside the hot loop) -----
    whh0 = whh0_ref[...]                                       # bf16 (H, H)
    wihs = [wih_ref[l - 1] for l in range(1, layers)]          # bf16 (H, H)
    whhs = [whh_ref[l - 1] for l in range(1, layers)]          # bf16 (H, H)
    bhis = [jnp.broadcast_to(bhi_ref[l - 1], (b_blk, H))       # f32 (B, H)
            for l in range(1, layers)]

    # ---- Phase 2: sequential recurrence (statically unrolled, t_blk small) -
    # Hidden states are read/written through the scratch ref every step so
    # live vreg ranges stay bounded across the unrolled block.
    for t in range(t_blk):
        inp = jnp.tanh(
            blk_scr[:, t, :]
            + jnp.dot(h_state[0].astype(jnp.bfloat16), whh0,
                      preferred_element_type=jnp.float32))
        h_state[0] = inp
        for l in range(1, layers):
            gate = (jnp.dot(inp.astype(jnp.bfloat16), wihs[l - 1],
                            preferred_element_type=jnp.float32)
                    + jnp.dot(h_state[l].astype(jnp.bfloat16), whhs[l - 1],
                              preferred_element_type=jnp.float32)
                    + bhis[l - 1])
            inp = jnp.tanh(gate)                               # f32 elementwise
            h_state[l] = inp
        # Reuse the consumed xproj slot to stash the top-layer state.
        blk_scr[:, t, :] = inp

    # ---- Phase 3: batched FC over the whole block; single dense store ------
    htop = blk_scr[...].astype(jnp.bfloat16).reshape(b_blk * t_blk, H)
    y = (jnp.dot(htop, wfc_ref[...], preferred_element_type=jnp.float32)
         + bfc_ref[...])
    o_ref[...] = y.reshape(b_blk, t_blk, H).astype(o_ref.dtype)


def net_forward(x, params, *, input_dim, hidden_dim, layers,
                t_blk=None, b_blk=None, single_buffer_weights=True):
    """x: (B, T, input_dim) float32 (batch_first) -> (B, T, hidden_dim)."""
    B, T, D_in = x.shape
    assert D_in == input_dim
    H = hidden_dim

    if t_blk is None:
        # v6e (128 MiB VMEM) can comfortably go to 64-128 for long sequences;
        # keep 32 as a generation-neutral default (re-derive for v7x: 64 MiB).
        t_blk = T if T <= 32 else 32
    if b_blk is None:
        b_blk = B          # on v7x pass b_blk=B//2 to shard batch over 2 TCs
    assert B % b_blk == 0

    T_pad = pl.cdiv(T, t_blk) * t_blk
    if T_pad != T:
        # Zero padding at the END of the sequence; padded outputs sliced off.
        x = jnp.pad(x, ((0, 0), (0, T_pad - T), (0, 0)))
    n_t = T_pad // t_blk
    n_b = B // b_blk

    # bf16 matmul operands (MXU-native everywhere); biases stay f32.
    bf = lambda a: a.astype(jnp.bfloat16)
    w_ih0, w_hh0 = bf(params["w_ih0"]), bf(params["w_hh0"])
    w_ih, w_hh = bf(params["w_ih"]), bf(params["w_hh"])
    w_fc_t = bf(params["w_fc_t"])
    b0, b_hi, b_fc = params["b0"], params["b_hi"], params["b_fc"]
    weight_args = (w_ih0, w_hh0, b0, w_ih, w_hh, b_hi, w_fc_t, b_fc)

    kernel = functools.partial(rnn_fc_block_kernel, layers=layers)

    def build(single_buf):
        pm = pl.Buffered(1) if single_buf else None

        def full(a):  # full-array block, constant index_map (weights/biases)
            return pl.BlockSpec(a.shape,
                                lambda bi, ti, nd=a.ndim: (0,) * nd,
                                pipeline_mode=pm)

        # Explicit VMEM budget (conservative: weights counted double-buffered).
        est = 2 * sum(int(a.size) * a.dtype.itemsize for a in weight_args)
        est += 2 * (b_blk * t_blk * (D_in + H) * 4)              # x/out blocks
        est += (layers * b_blk * H + b_blk * t_blk * H) * 4      # scratch
        vmem_limit = min(max(int(1.3 * est), 32 * 1024 * 1024),
                         100 * 1024 * 1024)

        return pl.pallas_call(
            kernel,
            out_shape=jax.ShapeDtypeStruct((B, T_pad, H), jnp.float32),
            grid_spec=pltpu.PrefetchScalarGridSpec(
                num_scalar_prefetch=0,
                grid=(n_b, n_t),
                in_specs=[pl.BlockSpec((b_blk, t_blk, D_in),
                                       lambda bi, ti: (bi, ti, 0))]
                         + [full(a) for a in weight_args],
                out_specs=pl.BlockSpec((b_blk, t_blk, H),
                                       lambda bi, ti: (bi, ti, 0)),
                scratch_shapes=[
                    pltpu.VMEM((layers, b_blk, H), jnp.float32),   # h carry
                    pltpu.VMEM((b_blk, t_blk, H), jnp.float32),    # xproj/htop
                ]),
            compiler_params=pltpu.CompilerParams(
                dimension_semantics=("parallel", "arbitrary"),
                vmem_limit_bytes=vmem_limit),
        )

    args = (x,) + weight_args
    try:
        out = build(single_buffer_weights)(*args)
    except Exception:
        # Fallback if this jax build rejects single-buffered (Buffered(1))
        # constant inputs: use default double buffering.
        out = build(False)(*args)
    return out[:, :T, :]


def init_params(key, input_dim, hidden_dim, layers):
    """Deterministic init mimicking PyTorch's U(-1/sqrt(H), 1/sqrt(H)).

    Kernel-friendly layout: transposed weights, combined b_ih+b_hh biases,
    per-layer W_ih^T / W_hh^T stacks for layers l > 0 (no concat needed).
    """
    H = hidden_dim
    bound = 1.0 / (float(H) ** 0.5)
    keys = jax.random.split(key, 4 * layers + 2)

    def u(k, shape):
        return jax.random.uniform(k, shape, jnp.float32,
                                  minval=-bound, maxval=bound)

    # Layer 0.
    w_ih0 = u(keys[0], (input_dim, H))                     # = W_ih_l0^T
    w_hh0 = u(keys[1], (H, H))                             # = W_hh_l0^T
    b0 = (u(keys[2], (H,)) + u(keys[3], (H,)))[None, :]    # b_ih0 + b_hh0

    # Layers >= 1.
    n_hi = max(layers - 1, 1)
    w_ih = jnp.zeros((n_hi, H, H), jnp.float32)            # dummy if layers==1
    w_hh = jnp.zeros((n_hi, H, H), jnp.float32)
    b_hi = jnp.zeros((n_hi, 1, H), jnp.float32)
    for l in range(1, layers):
        w_ih = w_ih.at[l - 1].set(u(keys[4 * l + 0], (H, H)))
        w_hh = w_hh.at[l - 1].set(u(keys[4 * l + 1], (H, H)))
        b_hi = b_hi.at[l - 1, 0].set(u(keys[4 * l + 2], (H,))
                                     + u(keys[4 * l + 3], (H,)))

    w_fc_t = u(keys[-2], (H, H))                           # = W_fc^T
    b_fc = u(keys[-1], (1, H))
    return {"w_ih0": w_ih0, "w_hh0": w_hh0, "b0": b0,
            "w_ih": w_ih, "w_hh": w_hh, "b_hi": b_hi,
            "w_fc_t": w_fc_t, "b_fc": b_fc}


def net_reference(x, params, *, hidden_dim, layers):
    """Pure-JAX f32 reference of the same forward pass (for validation)."""
    B, T, _ = x.shape
    H = hidden_dim
    h = [jnp.zeros((B, H), jnp.float32) for _ in range(layers)]
    outs = []
    for t in range(T):
        inp = jnp.tanh(x[:, t, :] @ params["w_ih0"] + params["b0"]
                       + h[0] @ params["w_hh0"])
        h[0] = inp
        for l in range(1, layers):
            g = (inp @ params["w_ih"][l - 1] + h[l] @ params["w_hh"][l - 1]
                 + params["b_hi"][l - 1])
            inp = jnp.tanh(g)
            h[l] = inp
        outs.append(inp @ params["w_fc_t"] + params["b_fc"])
    return jnp.stack(outs, axis=1)


if __name__ == "__main__":
    B, T = 2, 8
    INPUT_DIM, HIDDEN_DIM, LAYERS = 16, 32, 2

    key = jax.random.PRNGKey(0)
    k_x, k_p = jax.random.split(key)
    x = jax.random.normal(k_x, (B, T, INPUT_DIM), dtype=jnp.float32)
    params = init_params(k_p, INPUT_DIM, HIDDEN_DIM, LAYERS)

    out = net_forward(x, params, input_dim=INPUT_DIM,
                      hidden_dim=HIDDEN_DIM, layers=LAYERS)
    out = jax.block_until_ready(out)

    ref = net_reference(x, params, hidden_dim=HIDDEN_DIM, layers=LAYERS)
    assert out.shape == (B, T, HIDDEN_DIM)
    max_err = float(jnp.max(jnp.abs(out - ref)))
    # Tolerance loosened vs the pure-f32 version: matmul operands are bf16
    # (accumulation, hidden state and tanh remain f32).
    assert max_err < 3e-2, f"mismatch vs reference: max abs err {max_err}"

    print("KERNEL_OK")
</pallas_src>

<mosaic_0001>
module attributes {stable_mosaic.version = 11 : i64} {
  func.func @rnn_fc_block_kernel(%arg0: i32, %arg1: i32, %arg2: memref<2x8x16xf32, #tpu.memory_space<vmem>>, %arg3: memref<16x32xbf16, #tpu.memory_space<vmem>>, %arg4: memref<32x32xbf16, #tpu.memory_space<vmem>>, %arg5: memref<1x32xf32, #tpu.memory_space<vmem>>, %arg6: memref<1x32x32xbf16, #tpu.memory_space<vmem>>, %arg7: memref<1x32x32xbf16, #tpu.memory_space<vmem>>, %arg8: memref<1x1x32xf32, #tpu.memory_space<vmem>>, %arg9: memref<32x32xbf16, #tpu.memory_space<vmem>>, %arg10: memref<1x32xf32, #tpu.memory_space<vmem>>, %arg11: memref<2x8x32xf32, #tpu.memory_space<vmem>>, %arg12: memref<2x2x32xf32, #tpu.memory_space<vmem>>, %arg13: memref<2x8x32xf32, #tpu.memory_space<vmem>>) attributes {dimension_semantics = [#tpu.dimension_semantics<parallel>, #tpu.dimension_semantics<arbitrary>], iteration_bounds = array<i64: 1, 1>, scalar_prefetch = 0 : i64, scratch_operands = 2 : i64, tpu.core_type = #tpu.core_type<tc>, window_params = [{transform_indices = @transform_0, window_bounds = array<i64: 2, 8, 16>}, {pipeline_mode = #tpu.pipeline_mode<synchronous>, transform_indices = @transform_1, window_bounds = array<i64: 16, 32>}, {pipeline_mode = #tpu.pipeline_mode<synchronous>, transform_indices = @transform_2, window_bounds = array<i64: 32, 32>}, {pipeline_mode = #tpu.pipeline_mode<synchronous>, transform_indices = @transform_3, window_bounds = array<i64: 1, 32>}, {pipeline_mode = #tpu.pipeline_mode<synchronous>, transform_indices = @transform_4, window_bounds = array<i64: 1, 32, 32>}, {pipeline_mode = #tpu.pipeline_mode<synchronous>, transform_indices = @transform_5, window_bounds = array<i64: 1, 32, 32>}, {pipeline_mode = #tpu.pipeline_mode<synchronous>, transform_indices = @transform_6, window_bounds = array<i64: 1, 1, 32>}, {pipeline_mode = #tpu.pipeline_mode<synchronous>, transform_indices = @transform_7, window_bounds = array<i64: 32, 32>}, {pipeline_mode = #tpu.pipeline_mode<synchronous>, transform_indices = @transform_8, window_bounds = array<i64: 1, 32>}, {transform_indices = @transform_9, window_bounds = array<i64: 2, 8, 32>}]} {
    %c0_i32 = arith.constant 0 : i32
    %0 = arith.cmpi eq, %arg1, %c0_i32 : i32
    %1 = arith.extui %0 : i1 to i32
    %c0_i32_0 = arith.constant 0 : i32
    %2 = arith.cmpi ne, %1, %c0_i32_0 : i32
    scf.if %2 {
      %cst_193 = arith.constant 0.000000e+00 : f32
      %240 = vector.broadcast %cst_193 : f32 to vector<2x2x32xf32>
      %c0_194 = arith.constant 0 : index
      %c0_195 = arith.constant 0 : index
      %c0_196 = arith.constant 0 : index
      %241 = vector.load %arg12[%c0_194, %c0_195, %c0_196] : memref<2x2x32xf32, #tpu.memory_space<vmem>>, vector<2x2x32xf32>
      tpu.vector_store %arg12[%c0_194, %c0_195, %c0_196], %240 {strides = array<i32>} : memref<2x2x32xf32, #tpu.memory_space<vmem>>, vector<2x2x32xf32>,
    } else {
    }
    %c0 = arith.constant 0 : index
    %c0_1 = arith.constant 0 : index
    %c0_2 = arith.constant 0 : index
    %3 = vector.load %arg2[%c0, %c0_1, %c0_2] : memref<2x8x16xf32, #tpu.memory_space<vmem>>, vector<2x8x16xf32>
    %4 = arith.truncf %3 : vector<2x8x16xf32> to vector<2x8x16xbf16>
    %5 = vector.shape_cast %4 : vector<2x8x16xbf16> to vector<16x16xbf16>
    %c0_3 = arith.constant 0 : index
    %c0_4 = arith.constant 0 : index
    %6 = vector.load %arg3[%c0_3, %c0_4] : memref<16x32xbf16, #tpu.memory_space<vmem>>, vector<16x32xbf16>
    %cst = arith.constant dense<0.000000e+00> : vector<16x32xf32>
    %7 = tpu.matmul %5, %6, %cst {dimension_numbers = #tpu.dot_dimension_numbers<[1], [0], [0], [1], [0, 0, 1, 1], [], []>} : vector<16x16xbf16>, vector<16x32xbf16>, vector<16x32xf32> -> vector<16x32xf32>
    %c0_5 = arith.constant 0 : index
    %c0_6 = arith.constant 0 : index
    %8 = vector.load %arg5[%c0_5, %c0_6] : memref<1x32xf32, #tpu.memory_space<vmem>>, vector<1x32xf32>
    %9 = vector.broadcast %8 : vector<1x32xf32> to vector<16x32xf32>
    %10 = arith.addf %7, %9 : vector<16x32xf32>
    %11 = vector.shape_cast %10 : vector<16x32xf32> to vector<2x8x32xf32>
    %c0_7 = arith.constant 0 : index
    %c0_8 = arith.constant 0 : index
    %c0_9 = arith.constant 0 : index
    %12 = vector.load %arg13[%c0_7, %c0_8, %c0_9] : memref<2x8x32xf32, #tpu.memory_space<vmem>>, vector<2x8x32xf32>
    tpu.vector_store %arg13[%c0_7, %c0_8, %c0_9], %11 {strides = array<i32>} : memref<2x8x32xf32, #tpu.memory_space<vmem>>, vector<2x8x32xf32>,
    %c0_10 = arith.constant 0 : index
    %c0_11 = arith.constant 0 : index
    %13 = vector.load %arg4[%c0_10, %c0_11] : memref<32x32xbf16, #tpu.memory_space<vmem>>, vector<32x32xbf16>
    %c0_12 = arith.constant 0 : index
    %c0_13 = arith.constant 0 : index
    %c0_14 = arith.constant 0 : index
    %14 = vector.load %arg6[%c0_12, %c0_13, %c0_14] : memref<1x32x32xbf16, #tpu.memory_space<vmem>>, vector<1x32x32xbf16>
    %15 = vector.shape_cast %14 : vector<1x32x32xbf16> to vector<32x32xbf16>
    %c0_15 = arith.constant 0 : index
    %c0_16 = arith.constant 0 : index
    %c0_17 = arith.constant 0 : index
    %16 = vector.load %arg7[%c0_15, %c0_16, %c0_17] : memref<1x32x32xbf16, #tpu.memory_space<vmem>>, vector<1x32x32xbf16>
    %17 = vector.shape_cast %16 : vector<1x32x32xbf16> to vector<32x32xbf16>
    %c0_18 = arith.constant 0 : index
    %c0_19 = arith.constant 0 : index
    %c0_20 = arith.constant 0 : index
    %18 = vector.load %arg8[%c0_18, %c0_19, %c0_20] : memref<1x1x32xf32, #tpu.memory_space<vmem>>, vector<1x1x32xf32>
    %19 = vector.shape_cast %18 : vector<1x1x32xf32> to vector<1x32xf32>
    %20 = vector.shape_cast %19 : vector<1x32xf32> to vector<1x32xf32>
    %21 = vector.broadcast %20 : vector<1x32xf32> to vector<2x32xf32>
    %c0_21 = arith.constant 0 : index
    %c0_22 = arith.constant 0 : index
    %c0_23 = arith.constant 0 : index
    %22 = vector.load %arg13[%c0_21, %c0_22, %c0_23] : memref<2x8x32xf32, #tpu.memory_space<vmem>>, vector<2x1x32xf32>
    %23 = vector.shape_cast %22 : vector<2x1x32xf32> to vector<2x32xf32>
    %c0_24 = arith.constant 0 : index
    %c0_25 = arith.constant 0 : index
    %c0_26 = arith.constant 0 : index
    %24 = vector.load %arg12[%c0_24, %c0_25, %c0_26] : memref<2x2x32xf32, #tpu.memory_space<vmem>>, vector<1x2x32xf32>
    %25 = vector.shape_cast %24 : vector<1x2x32xf32> to vector<2x32xf32>
    %26 = arith.truncf %25 : vector<2x32xf32> to vector<2x32xbf16>
    %cst_27 = arith.constant dense<0.000000e+00> : vector<2x32xf32>
    %27 = tpu.matmul %26, %13, %cst_27 {dimension_numbers = #tpu.dot_dimension_numbers<[1], [0], [0], [1], [0, 0, 1, 1], [], []>} : vector<2x32xbf16>, vector<32x32xbf16>, vector<2x32xf32> -> vector<2x32xf32>
    %28 = arith.addf %23, %27 : vector<2x32xf32>
    %29 = math.tanh %28 : vector<2x32xf32>
    %c0_28 = arith.constant 0 : index
    %c0_29 = arith.constant 0 : index
    %c0_30 = arith.constant 0 : index
    %30 = vector.load %arg12[%c0_28, %c0_29, %c0_30] : memref<2x2x32xf32, #tpu.memory_space<vmem>>, vector<1x2x32xf32>
    %31 = vector.shape_cast %30 : vector<1x2x32xf32> to vector<2x32xf32>
    %32 = vector.shape_cast %29 : vector<2x32xf32> to vector<1x2x32xf32>
    tpu.vector_store %arg12[%c0_28, %c0_29, %c0_30], %32 {strides = array<i32>} : memref<2x2x32xf32, #tpu.memory_space<vmem>>, vector<1x2x32xf32>,
    %33 = arith.truncf %29 : vector<2x32xf32> to vector<2x32xbf16>
    %cst_31 = arith.constant dense<0.000000e+00> : vector<2x32xf32>
    %34 = tpu.matmul %33, %15, %cst_31 {dimension_numbers = #tpu.dot_dimension_numbers<[1], [0], [0], [1], [0, 0, 1, 1], [], []>} : vector<2x32xbf16>, vector<32x32xbf16>, vector<2x32xf32> -> vector<2x32xf32>
    %c1 = arith.constant 1 : index
    %c0_32 = arith.constant 0 : index
    %c0_33 = arith.constant 0 : index
    %35 = vector.load %arg12[%c1, %c0_32, %c0_33] : memref<2x2x32xf32, #tpu.memory_space<vmem>>, vector<1x2x32xf32>
    %36 = vector.shape_cast %35 : vector<1x2x32xf32> to vector<2x32xf32>
    %37 = arith.truncf %36 : vector<2x32xf32> to vector<2x32xbf16>
    %cst_34 = arith.constant dense<0.000000e+00> : vector<2x32xf32>
    %38 = tpu.matmul %37, %17, %cst_34 {dimension_numbers = #tpu.dot_dimension_numbers<[1], [0], [0], [1], [0, 0, 1, 1], [], []>} : vector<2x32xbf16>, vector<32x32xbf16>, vector<2x32xf32> -> vector<2x32xf32>
    %39 = arith.addf %34, %38 : vector<2x32xf32>
    %40 = arith.addf %39, %21 : vector<2x32xf32>
    %41 = math.tanh %40 : vector<2x32xf32>
    %c1_35 = arith.constant 1 : index
    %c0_36 = arith.constant 0 : index
    %c0_37 = arith.constant 0 : index
    %42 = vector.load %arg12[%c1_35, %c0_36, %c0_37] : memref<2x2x32xf32, #tpu.memory_space<vmem>>, vector<1x2x32xf32>
    %43 = vector.shape_cast %42 : vector<1x2x32xf32> to vector<2x32xf32>
    %44 = vector.shape_cast %41 : vector<2x32xf32> to vector<1x2x32xf32>
    tpu.vector_store %arg12[%c1_35, %c0_36, %c0_37], %44 {strides = array<i32>} : memref<2x2x32xf32, #tpu.memory_space<vmem>>, vector<1x2x32xf32>,
    %c0_38 = arith.constant 0 : index
    %c0_39 = arith.constant 0 : index
    %c0_40 = arith.constant 0 : index
    %45 = vector.load %arg13[%c0_38, %c0_39, %c0_40] : memref<2x8x32xf32, #tpu.memory_space<vmem>>, vector<2x1x32xf32>
    %46 = vector.shape_cast %45 : vector<2x1x32xf32> to vector<2x32xf32>
    %47 = vector.shape_cast %41 : vector<2x32xf32> to vector<2x1x32xf32>
    tpu.vector_store %arg13[%c0_38, %c0_39, %c0_40], %47 {strides = array<i32>} : memref<2x8x32xf32, #tpu.memory_space<vmem>>, vector<2x1x32xf32>,
    %c0_41 = arith.constant 0 : index
    %c1_42 = arith.constant 1 : index
    %c0_43 = arith.constant 0 : index
    %48 = vector.load %arg13[%c0_41, %c1_42, %c0_43] : memref<2x8x32xf32, #tpu.memory_space<vmem>>, vector<2x1x32xf32>
    %49 = vector.shape_cast %48 : vector<2x1x32xf32> to vector<2x32xf32>
    %c0_44 = arith.constant 0 : index
    %c0_45 = arith.constant 0 : index
    %c0_46 = arith.constant 0 : index
    %50 = vector.load %arg12[%c0_44, %c0_45, %c0_46] : memref<2x2x32xf32, #tpu.memory_space<vmem>>, vector<1x2x32xf32>
    %51 = vector.shape_cast %50 : vector<1x2x32xf32> to vector<2x32xf32>
    %52 = arith.truncf %51 : vector<2x32xf32> to vector<2x32xbf16>
    %cst_47 = arith.constant dense<0.000000e+00> : vector<2x32xf32>
    %53 = tpu.matmul %52, %13, %cst_47 {dimension_numbers = #tpu.dot_dimension_numbers<[1], [0], [0], [1], [0, 0, 1, 1], [], []>} : vector<2x32xbf16>, vector<32x32xbf16>, vector<2x32xf32> -> vector<2x32xf32>
    %54 = arith.addf %49, %53 : vector<2x32xf32>
    %55 = math.tanh %54 : vector<2x32xf32>
    %c0_48 = arith.constant 0 : index
    %c0_49 = arith.constant 0 : index
    %c0_50 = arith.constant 0 : index
    %56 = vector.load %arg12[%c0_48, %c0_49, %c0_50] : memref<2x2x32xf32, #tpu.memory_space<vmem>>, vector<1x2x32xf32>
    %57 = vector.shape_cast %56 : vector<1x2x32xf32> to vector<2x32xf32>
    %58 = vector.shape_cast %55 : vector<2x32xf32> to vector<1x2x32xf32>
    tpu.vector_store %arg12[%c0_48, %c0_49, %c0_50], %58 {strides = array<i32>} : memref<2x2x32xf32, #tpu.memory_space<vmem>>, vector<1x2x32xf32>,
    %59 = arith.truncf %55 : vector<2x32xf32> to vector<2x32xbf16>
    %cst_51 = arith.constant dense<0.000000e+00> : vector<2x32xf32>
    %60 = tpu.matmul %59, %15, %cst_51 {dimension_numbers = #tpu.dot_dimension_numbers<[1], [0], [0], [1], [0, 0, 1, 1], [], []>} : vector<2x32xbf16>, vector<32x32xbf16>, vector<2x32xf32> -> vector<2x32xf32>
    %c1_52 = arith.constant 1 : index
    %c0_53 = arith.constant 0 : index
    %c0_54 = arith.constant 0 : index
    %61 = vector.load %arg12[%c1_52, %c0_53, %c0_54] : memref<2x2x32xf32, #tpu.memory_space<vmem>>, vector<1x2x32xf32>
    %62 = vector.shape_cast %61 : vector<1x2x32xf32> to vector<2x32xf32>
    %63 = arith.truncf %62 : vector<2x32xf32> to vector<2x32xbf16>
    %cst_55 = arith.constant dense<0.000000e+00> : vector<2x32xf32>
    %64 = tpu.matmul %63, %17, %cst_55 {dimension_numbers = #tpu.dot_dimension_numbers<[1], [0], [0], [1], [0, 0, 1, 1], [], []>} : vector<2x32xbf16>, vector<32x32xbf16>, vector<2x32xf32> -> vector<2x32xf32>
    %65 = arith.addf %60, %64 : vector<2x32xf32>
    %66 = arith.addf %65, %21 : vector<2x32xf32>
    %67 = math.tanh %66 : vector<2x32xf32>
    %c1_56 = arith.constant 1 : index
    %c0_57 = arith.constant 0 : index
    %c0_58 = arith.constant 0 : index
    %68 = vector.load %arg12[%c1_56, %c0_57, %c0_58] : memref<2x2x32xf32, #tpu.memory_space<vmem>>, vector<1x2x32xf32>
    %69 = vector.shape_cast %68 : vector<1x2x32xf32> to vector<2x32xf32>
    %70 = vector.shape_cast %67 : vector<2x32xf32> to vector<1x2x32xf32>
    tpu.vector_store %arg12[%c1_56, %c0_57, %c0_58], %70 {strides = array<i32>} : memref<2x2x32xf32, #tpu.memory_space<vmem>>, vector<1x2x32xf32>,
    %c0_59 = arith.constant 0 : index
    %c1_60 = arith.constant 1 : index
    %c0_61 = arith.constant 0 : index
    %71 = vector.load %arg13[%c0_59, %c1_60, %c0_61] : memref<2x8x32xf32, #tpu.memory_space<vmem>>, vector<2x1x32xf32>
    %72 = vector.shape_cast %71 : vector<2x1x32xf32> to vector<2x32xf32>
    %73 = vector.shape_cast %67 : vector<2x32xf32> to vector<2x1x32xf32>
    tpu.vector_store %arg13[%c0_59, %c1_60, %c0_61], %73 {strides = array<i32>} : memref<2x8x32xf32, #tpu.memory_space<vmem>>, vector<2x1x32xf32>,
    %c0_62 = arith.constant 0 : index
    %c2 = arith.constant 2 : index
    %c0_63 = arith.constant 0 : index
    %74 = vector.load %arg13[%c0_62, %c2, %c0_63] : memref<2x8x32xf32, #tpu.memory_space<vmem>>, vector<2x1x32xf32>
    %75 = vector.shape_cast %74 : vector<2x1x32xf32> to vector<2x32xf32>
    %c0_64 = arith.constant 0 : index
    %c0_65 = arith.constant 0 : index
    %c0_66 = arith.constant 0 : index
    %76 = vector.load %arg12[%c0_64, %c0_65, %c0_66] : memref<2x2x32xf32, #tpu.memory_space<vmem>>, vector<1x2x32xf32>
    %77 = vector.shape_cast %76 : vector<1x2x32xf32> to vector<2x32xf32>
    %78 = arith.truncf %77 : vector<2x32xf32> to vector<2x32xbf16>
    %cst_67 = arith.constant dense<0.000000e+00> : vector<2x32xf32>
    %79 = tpu.matmul %78, %13, %cst_67 {dimension_numbers = #tpu.dot_dimension_numbers<[1], [0], [0], [1], [0, 0, 1, 1], [], []>} : vector<2x32xbf16>, vector<32x32xbf16>, vector<2x32xf32> -> vector<2x32xf32>
    %80 = arith.addf %75, %79 : vector<2x32xf32>
    %81 = math.tanh %80 : vector<2x32xf32>
    %c0_68 = arith.constant 0 : index
    %c0_69 = arith.constant 0 : index
    %c0_70 = arith.constant 0 : index
    %82 = vector.load %arg12[%c0_68, %c0_69, %c0_70] : memref<2x2x32xf32, #tpu.memory_space<vmem>>, vector<1x2x32xf32>
    %83 = vector.shape_cast %82 : vector<1x2x32xf32> to vector<2x32xf32>
    %84 = vector.shape_cast %81 : vector<2x32xf32> to vector<1x2x32xf32>
    tpu.vector_store %arg12[%c0_68, %c0_69, %c0_70], %84 {strides = array<i32>} : memref<2x2x32xf32, #tpu.memory_space<vmem>>, vector<1x2x32xf32>,
    %85 = arith.truncf %81 : vector<2x32xf32> to vector<2x32xbf16>
    %cst_71 = arith.constant dense<0.000000e+00> : vector<2x32xf32>
    %86 = tpu.matmul %85, %15, %cst_71 {dimension_numbers = #tpu.dot_dimension_numbers<[1], [0], [0], [1], [0, 0, 1, 1], [], []>} : vector<2x32xbf16>, vector<32x32xbf16>, vector<2x32xf32> -> vector<2x32xf32>
    %c1_72 = arith.constant 1 : index
    %c0_73 = arith.constant 0 : index
    %c0_74 = arith.constant 0 : index
    %87 = vector.load %arg12[%c1_72, %c0_73, %c0_74] : memref<2x2x32xf32, #tpu.memory_space<vmem>>, vector<1x2x32xf32>
    %88 = vector.shape_cast %87 : vector<1x2x32xf32> to vector<2x32xf32>
    %89 = arith.truncf %88 : vector<2x32xf32> to vector<2x32xbf16>
    %cst_75 = arith.constant dense<0.000000e+00> : vector<2x32xf32>
    %90 = tpu.matmul %89, %17, %cst_75 {dimension_numbers = #tpu.dot_dimension_numbers<[1], [0], [0], [1], [0, 0, 1, 1], [], []>} : vector<2x32xbf16>, vector<32x32xbf16>, vector<2x32xf32> -> vector<2x32xf32>
    %91 = arith.addf %86, %90 : vector<2x32xf32>
    %92 = arith.addf %91, %21 : vector<2x32xf32>
    %93 = math.tanh %92 : vector<2x32xf32>
    %c1_76 = arith.constant 1 : index
    %c0_77 = arith.constant 0 : index
    %c0_78 = arith.constant 0 : index
    %94 = vector.load %arg12[%c1_76, %c0_77, %c0_78] : memref<2x2x32xf32, #tpu.memory_space<vmem>>, vector<1x2x32xf32>
    %95 = vector.shape_cast %94 : vector<1x2x32xf32> to vector<2x32xf32>
    %96 = vector.shape_cast %93 : vector<2x32xf32> to vector<1x2x32xf32>
    tpu.vector_store %arg12[%c1_76, %c0_77, %c0_78], %96 {strides = array<i32>} : memref<2x2x32xf32, #tpu.memory_space<vmem>>, vector<1x2x32xf32>,
    %c0_79 = arith.constant 0 : index
    %c2_80 = arith.constant 2 : index
    %c0_81 = arith.constant 0 : index
    %97 = vector.load %arg13[%c0_79, %c2_80, %c0_81] : memref<2x8x32xf32, #tpu.memory_space<vmem>>, vector<2x1x32xf32>
    %98 = vector.shape_cast %97 : vector<2x1x32xf32> to vector<2x32xf32>
    %99 = vector.shape_cast %93 : vector<2x32xf32> to vector<2x1x32xf32>
    tpu.vector_store %arg13[%c0_79, %c2_80, %c0_81], %99 {strides = array<i32>} : memref<2x8x32xf32, #tpu.memory_space<vmem>>, vector<2x1x32xf32>,
    %c0_82 = arith.constant 0 : index
    %c3 = arith.constant 3 : index
    %c0_83 = arith.constant 0 : index
    %100 = vector.load %arg13[%c0_82, %c3, %c0_83] : memref<2x8x32xf32, #tpu.memory_space<vmem>>, vector<2x1x32xf32>
    %101 = vector.shape_cast %100 : vector<2x1x32xf32> to vector<2x32xf32>
    %c0_84 = arith.constant 0 : index
    %c0_85 = arith.constant 0 : index
    %c0_86 = arith.constant 0 : index
    %102 = vector.load %arg12[%c0_84, %c0_85, %c0_86] : memref<2x2x32xf32, #tpu.memory_space<vmem>>, vector<1x2x32xf32>
    %103 = vector.shape_cast %102 : vector<1x2x32xf32> to vector<2x32xf32>
    %104 = arith.truncf %103 : vector<2x32xf32> to vector<2x32xbf16>
    %cst_87 = arith.constant dense<0.000000e+00> : vector<2x32xf32>
    %105 = tpu.matmul %104, %13, %cst_87 {dimension_numbers = #tpu.dot_dimension_numbers<[1], [0], [0], [1], [0, 0, 1, 1], [], []>} : vector<2x32xbf16>, vector<32x32xbf16>, vector<2x32xf32> -> vector<2x32xf32>
    %106 = arith.addf %101, %105 : vector<2x32xf32>
    %107 = math.tanh %106 : vector<2x32xf32>
    %c0_88 = arith.constant 0 : index
    %c0_89 = arith.constant 0 : index
    %c0_90 = arith.constant 0 : index
    %108 = vector.load %arg12[%c0_88, %c0_89, %c0_90] : memref<2x2x32xf32, #tpu.memory_space<vmem>>, vector<1x2x32xf32>
    %109 = vector.shape_cast %108 : vector<1x2x32xf32> to vector<2x32xf32>
    %110 = vector.shape_cast %107 : vector<2x32xf32> to vector<1x2x32xf32>
    tpu.vector_store %arg12[%c0_88, %c0_89, %c0_90], %110 {strides = array<i32>} : memref<2x2x32xf32, #tpu.memory_space<vmem>>, vector<1x2x32xf32>,
    %111 = arith.truncf %107 : vector<2x32xf32> to vector<2x32xbf16>
    %cst_91 = arith.constant dense<0.000000e+00> : vector<2x32xf32>
    %112 = tpu.matmul %111, %15, %cst_91 {dimension_numbers = #tpu.dot_dimension_numbers<[1], [0], [0], [1], [0, 0, 1, 1], [], []>} : vector<2x32xbf16>, vector<32x32xbf16>, vector<2x32xf32> -> vector<2x32xf32>
    %c1_92 = arith.constant 1 : index
    %c0_93 = arith.constant 0 : index
    %c0_94 = arith.constant 0 : index
    %113 = vector.load %arg12[%c1_92, %c0_93, %c0_94] : memref<2x2x32xf32, #tpu.memory_space<vmem>>, vector<1x2x32xf32>
    %114 = vector.shape_cast %113 : vector<1x2x32xf32> to vector<2x32xf32>
    %115 = arith.truncf %114 : vector<2x32xf32> to vector<2x32xbf16>
    %cst_95 = arith.constant dense<0.000000e+00> : vector<2x32xf32>
    %116 = tpu.matmul %115, %17, %cst_95 {dimension_numbers = #tpu.dot_dimension_numbers<[1], [0], [0], [1], [0, 0, 1, 1], [], []>} : vector<2x32xbf16>, vector<32x32xbf16>, vector<2x32xf32> -> vector<2x32xf32>
    %117 = arith.addf %112, %116 : vector<2x32xf32>
    %118 = arith.addf %117, %21 : vector<2x32xf32>
    %119 = math.tanh %118 : vector<2x32xf32>
    %c1_96 = arith.constant 1 : index
    %c0_97 = arith.constant 0 : index
    %c0_98 = arith.constant 0 : index
    %120 = vector.load %arg12[%c1_96, %c0_97, %c0_98] : memref<2x2x32xf32, #tpu.memory_space<vmem>>, vector<1x2x32xf32>
    %121 = vector.shape_cast %120 : vector<1x2x32xf32> to vector<2x32xf32>
    %122 = vector.shape_cast %119 : vector<2x32xf32> to vector<1x2x32xf32>
    tpu.vector_store %arg12[%c1_96, %c0_97, %c0_98], %122 {strides = array<i32>} : memref<2x2x32xf32, #tpu.memory_space<vmem>>, vector<1x2x32xf32>,
    %c0_99 = arith.constant 0 : index
    %c3_100 = arith.constant 3 : index
    %c0_101 = arith.constant 0 : index
    %123 = vector.load %arg13[%c0_99, %c3_100, %c0_101] : memref<2x8x32xf32, #tpu.memory_space<vmem>>, vector<2x1x32xf32>
    %124 = vector.shape_cast %123 : vector<2x1x32xf32> to vector<2x32xf32>
    %125 = vector.shape_cast %119 : vector<2x32xf32> to vector<2x1x32xf32>
    tpu.vector_store %arg13[%c0_99, %c3_100, %c0_101], %125 {strides = array<i32>} : memref<2x8x32xf32, #tpu.memory_space<vmem>>, vector<2x1x32xf32>,
    %c0_102 = arith.constant 0 : index
    %c4 = arith.constant 4 : index
    %c0_103 = arith.constant 0 : index
    %126 = vector.load %arg13[%c0_102, %c4, %c0_103] : memref<2x8x32xf32, #tpu.memory_space<vmem>>, vector<2x1x32xf32>
    %127 = vector.shape_cast %126 : vector<2x1x32xf32> to vector<2x32xf32>
    %c0_104 = arith.constant 0 : index
    %c0_105 = arith.constant 0 : index
    %c0_106 = arith.constant 0 : index
    %128 = vector.load %arg12[%c0_104, %c0_105, %c0_106] : memref<2x2x32xf32, #tpu.memory_space<vmem>>, vector<1x2x32xf32>
    %129 = vector.shape_cast %128 : vector<1x2x32xf32> to vector<2x32xf32>
    %130 = arith.truncf %129 : vector<2x32xf32> to vector<2x32xbf16>
    %cst_107 = arith.constant dense<0.000000e+00> : vector<2x32xf32>
    %131 = tpu.matmul %130, %13, %cst_107 {dimension_numbers = #tpu.dot_dimension_numbers<[1], [0], [0], [1], [0, 0, 1, 1], [], []>} : vector<2x32xbf16>, vector<32x32xbf16>, vector<2x32xf32> -> vector<2x32xf32>
    %132 = arith.addf %127, %131 : vector<2x32xf32>
    %133 = math.tanh %132 : vector<2x32xf32>
    %c0_108 = arith.constant 0 : index
    %c0_109 = arith.constant 0 : index
    %c0_110 = arith.constant 0 : index
    %134 = vector.load %arg12[%c0_108, %c0_109, %c0_110] : memref<2x2x32xf32, #tpu.memory_space<vmem>>, vector<1x2x32xf32>
    %135 = vector.shape_cast %134 : vector<1x2x32xf32> to vector<2x32xf32>
    %136 = vector.shape_cast %133 : vector<2x32xf32> to vector<1x2x32xf32>
    tpu.vector_store %arg12[%c0_108, %c0_109, %c0_110], %136 {strides = array<i32>} : memref<2x2x32xf32, #tpu.memory_space<vmem>>, vector<1x2x32xf32>,
    %137 = arith.truncf %133 : vector<2x32xf32> to vector<2x32xbf16>
    %cst_111 = arith.constant dense<0.000000e+00> : vector<2x32xf32>
    %138 = tpu.matmul %137, %15, %cst_111 {dimension_numbers = #tpu.dot_dimension_numbers<[1], [0], [0], [1], [0, 0, 1, 1], [], []>} : vector<2x32xbf16>, vector<32x32xbf16>, vector<2x32xf32> -> vector<2x32xf32>
    %c1_112 = arith.constant 1 : index
    %c0_113 = arith.constant 0 : index
    %c0_114 = arith.constant 0 : index
    %139 = vector.load %arg12[%c1_112, %c0_113, %c0_114] : memref<2x2x32xf32, #tpu.memory_space<vmem>>, vector<1x2x32xf32>
    %140 = vector.shape_cast %139 : vector<1x2x32xf32> to vector<2x32xf32>
    %141 = arith.truncf %140 : vector<2x32xf32> to vector<2x32xbf16>
    %cst_115 = arith.constant dense<0.000000e+00> : vector<2x32xf32>
    %142 = tpu.matmul %141, %17, %cst_115 {dimension_numbers = #tpu.dot_dimension_numbers<[1], [0], [0], [1], [0, 0, 1, 1], [], []>} : vector<2x32xbf16>, vector<32x32xbf16>, vector<2x32xf32> -> vector<2x32xf32>
    %143 = arith.addf %138, %142 : vector<2x32xf32>
    %144 = arith.addf %143, %21 : vector<2x32xf32>
    %145 = math.tanh %144 : vector<2x32xf32>
    %c1_116 = arith.constant 1 : index
    %c0_117 = arith.constant 0 : index
    %c0_118 = arith.constant 0 : index
    %146 = vector.load %arg12[%c1_116, %c0_117, %c0_118] : memref<2x2x32xf32, #tpu.memory_space<vmem>>, vector<1x2x32xf32>
    %147 = vector.shape_cast %146 : vector<1x2x32xf32> to vector<2x32xf32>
    %148 = vector.shape_cast %145 : vector<2x32xf32> to vector<1x2x32xf32>
    tpu.vector_store %arg12[%c1_116, %c0_117, %c0_118], %148 {strides = array<i32>} : memref<2x2x32xf32, #tpu.memory_space<vmem>>, vector<1x2x32xf32>,
    %c0_119 = arith.constant 0 : index
    %c4_120 = arith.constant 4 : index
    %c0_121 = arith.constant 0 : index
    %149 = vector.load %arg13[%c0_119, %c4_120, %c0_121] : memref<2x8x32xf32, #tpu.memory_space<vmem>>, vector<2x1x32xf32>
    %150 = vector.shape_cast %149 : vector<2x1x32xf32> to vector<2x32xf32>
    %151 = vector.shape_cast %145 : vector<2x32xf32> to vector<2x1x32xf32>
    tpu.vector_store %arg13[%c0_119, %c4_120, %c0_121], %151 {strides = array<i32>} : memref<2x8x32xf32, #tpu.memory_space<vmem>>, vector<2x1x32xf32>,
    %c0_122 = arith.constant 0 : index
    %c5 = arith.constant 5 : index
    %c0_123 = arith.constant 0 : index
    %152 = vector.load %arg13[%c0_122, %c5, %c0_123] : memref<2x8x32xf32, #tpu.memory_space<vmem>>, vector<2x1x32xf32>
    %153 = vector.shape_cast %152 : vector<2x1x32xf32> to vector<2x32xf32>
    %c0_124 = arith.constant 0 : index
    %c0_125 = arith.constant 0 : index
    %c0_126 = arith.constant 0 : index
    %154 = vector.load %arg12[%c0_124, %c0_125, %c0_126] : memref<2x2x32xf32, #tpu.memory_space<vmem>>, vector<1x2x32xf32>
    %155 = vector.shape_cast %154 : vector<1x2x32xf32> to vector<2x32xf32>
    %156 = arith.truncf %155 : vector<2x32xf32> to vector<2x32xbf16>
    %cst_127 = arith.constant dense<0.000000e+00> : vector<2x32xf32>
    %157 = tpu.matmul %156, %13, %cst_127 {dimension_numbers = #tpu.dot_dimension_numbers<[1], [0], [0], [1], [0, 0, 1, 1], [], []>} : vector<2x32xbf16>, vector<32x32xbf16>, vector<2x32xf32> -> vector<2x32xf32>
    %158 = arith.addf %153, %157 : vector<2x32xf32>
    %159 = math.tanh %158 : vector<2x32xf32>
    %c0_128 = arith.constant 0 : index
    %c0_129 = arith.constant 0 : index
    %c0_130 = arith.constant 0 : index
    %160 = vector.load %arg12[%c0_128, %c0_129, %c0_130] : memref<2x2x32xf32, #tpu.memory_space<vmem>>, vector<1x2x32xf32>
    %161 = vector.shape_cast %160 : vector<1x2x32xf32> to vector<2x32xf32>
    %162 = vector.shape_cast %159 : vector<2x32xf32> to vector<1x2x32xf32>
    tpu.vector_store %arg12[%c0_128, %c0_129, %c0_130], %162 {strides = array<i32>} : memref<2x2x32xf32, #tpu.memory_space<vmem>>, vector<1x2x32xf32>,
    %163 = arith.truncf %159 : vector<2x32xf32> to vector<2x32xbf16>
    %cst_131 = arith.constant dense<0.000000e+00> : vector<2x32xf32>
    %164 = tpu.matmul %163, %15, %cst_131 {dimension_numbers = #tpu.dot_dimension_numbers<[1], [0], [0], [1], [0, 0, 1, 1], [], []>} : vector<2x32xbf16>, vector<32x32xbf16>, vector<2x32xf32> -> vector<2x32xf32>
    %c1_132 = arith.constant 1 : index
    %c0_133 = arith.constant 0 : index
    %c0_134 = arith.constant 0 : index
    %165 = vector.load %arg12[%c1_132, %c0_133, %c0_134] : memref<2x2x32xf32, #tpu.memory_space<vmem>>, vector<1x2x32xf32>
    %166 = vector.shape_cast %165 : vector<1x2x32xf32> to vector<2x32xf32>
    %167 = arith.truncf %166 : vector<2x32xf32> to vector<2x32xbf16>
    %cst_135 = arith.constant dense<0.000000e+00> : vector<2x32xf32>
    %168 = tpu.matmul %167, %17, %cst_135 {dimension_numbers = #tpu.dot_dimension_numbers<[1], [0], [0], [1], [0, 0, 1, 1], [], []>} : vector<2x32xbf16>, vector<32x32xbf16>, vector<2x32xf32> -> vector<2x32xf32>
    %169 = arith.addf %164, %168 : vector<2x32xf32>
    %170 = arith.addf %169, %21 : vector<2x32xf32>
    %171 = math.tanh %170 : vector<2x32xf32>
    %c1_136 = arith.constant 1 : index
    %c0_137 = arith.constant 0 : index
    %c0_138 = arith.constant 0 : index
    %172 = vector.load %arg12[%c1_136, %c0_137, %c0_138] : memref<2x2x32xf32, #tpu.memory_space<vmem>>, vector<1x2x32xf32>
    %173 = vector.shape_cast %172 : vector<1x2x32xf32> to vector<2x32xf32>
    %174 = vector.shape_cast %171 : vector<2x32xf32> to vector<1x2x32xf32>
    tpu.vector_store %arg12[%c1_136, %c0_137, %c0_138], %174 {strides = array<i32>} : memref<2x2x32xf32, #tpu.memory_space<vmem>>, vector<1x2x32xf32>,
    %c0_139 = arith.constant 0 : index
    %c5_140 = arith.constant 5 : index
    %c0_141 = arith.constant 0 : index
    %175 = vector.load %arg13[%c0_139, %c5_140, %c0_141] : memref<2x8x32xf32, #tpu.memory_space<vmem>>, vector<2x1x32xf32>
    %176 = vector.shape_cast %175 : vector<2x1x32xf32> to vector<2x32xf32>
    %177 = vector.shape_cast %171 : vector<2x32xf32> to vector<2x1x32xf32>
    tpu.vector_store %arg13[%c0_139, %c5_140, %c0_141], %177 {strides = array<i32>} : memref<2x8x32xf32, #tpu.memory_space<vmem>>, vector<2x1x32xf32>,
    %c0_142 = arith.constant 0 : index
    %c6 = arith.constant 6 : index
    %c0_143 = arith.constant 0 : index
    %178 = vector.load %arg13[%c0_142, %c6, %c0_143] : memref<2x8x32xf32, #tpu.memory_space<vmem>>, vector<2x1x32xf32>
    %179 = vector.shape_cast %178 : vector<2x1x32xf32> to vector<2x32xf32>
    %c0_144 = arith.constant 0 : index
    %c0_145 = arith.constant 0 : index
    %c0_146 = arith.constant 0 : index
    %180 = vector.load %arg12[%c0_144, %c0_145, %c0_146] : memref<2x2x32xf32, #tpu.memory_space<vmem>>, vector<1x2x32xf32>
    %181 = vector.shape_cast %180 : vector<1x2x32xf32> to vector<2x32xf32>
    %182 = arith.truncf %181 : vector<2x32xf32> to vector<2x32xbf16>
    %cst_147 = arith.constant dense<0.000000e+00> : vector<2x32xf32>
    %183 = tpu.matmul %182, %13, %cst_147 {dimension_numbers = #tpu.dot_dimension_numbers<[1], [0], [0], [1], [0, 0, 1, 1], [], []>} : vector<2x32xbf16>, vector<32x32xbf16>, vector<2x32xf32> -> vector<2x32xf32>
    %184 = arith.addf %179, %183 : vector<2x32xf32>
    %185 = math.tanh %184 : vector<2x32xf32>
    %c0_148 = arith.constant 0 : index
    %c0_149 = arith.constant 0 : index
    %c0_150 = arith.constant 0 : index
    %186 = vector.load %arg12[%c0_148, %c0_149, %c0_150] : memref<2x2x32xf32, #tpu.memory_space<vmem>>, vector<1x2x32xf32>
    %187 = vector.shape_cast %186 : vector<1x2x32xf32> to vector<2x32xf32>
    %188 = vector.shape_cast %185 : vector<2x32xf32> to vector<1x2x32xf32>
    tpu.vector_store %arg12[%c0_148, %c0_149, %c0_150], %188 {strides = array<i32>} : memref<2x2x32xf32, #tpu.memory_space<vmem>>, vector<1x2x32xf32>,
    %189 = arith.truncf %185 : vector<2x32xf32> to vector<2x32xbf16>
    %cst_151 = arith.constant dense<0.000000e+00> : vector<2x32xf32>
    %190 = tpu.matmul %189, %15, %cst_151 {dimension_numbers = #tpu.dot_dimension_numbers<[1], [0], [0], [1], [0, 0, 1, 1], [], []>} : vector<2x32xbf16>, vector<32x32xbf16>, vector<2x32xf32> -> vector<2x32xf32>
    %c1_152 = arith.constant 1 : index
    %c0_153 = arith.constant 0 : index
    %c0_154 = arith.constant 0 : index
    %191 = vector.load %arg12[%c1_152, %c0_153, %c0_154] : memref<2x2x32xf32, #tpu.memory_space<vmem>>, vector<1x2x32xf32>
    %192 = vector.shape_cast %191 : vector<1x2x32xf32> to vector<2x32xf32>
    %193 = arith.truncf %192 : vector<2x32xf32> to vector<2x32xbf16>
    %cst_155 = arith.constant dense<0.000000e+00> : vector<2x32xf32>
    %194 = tpu.matmul %193, %17, %cst_155 {dimension_numbers = #tpu.dot_dimension_numbers<[1], [0], [0], [1], [0, 0, 1, 1], [], []>} : vector<2x32xbf16>, vector<32x32xbf16>, vector<2x32xf32> -> vector<2x32xf32>
    %195 = arith.addf %190, %194 : vector<2x32xf32>
    %196 = arith.addf %195, %21 : vector<2x32xf32>
    %197 = math.tanh %196 : vector<2x32xf32>
    %c1_156 = arith.constant 1 : index
    %c0_157 = arith.constant 0 : index
    %c0_158 = arith.constant 0 : index
    %198 = vector.load %arg12[%c1_156, %c0_157, %c0_158] : memref<2x2x32xf32, #tpu.memory_space<vmem>>, vector<1x2x32xf32>
    %199 = vector.shape_cast %198 : vector<1x2x32xf32> to vector<2x32xf32>
    %200 = vector.shape_cast %197 : vector<2x32xf32> to vector<1x2x32xf32>
    tpu.vector_store %arg12[%c1_156, %c0_157, %c0_158], %200 {strides = array<i32>} : memref<2x2x32xf32, #tpu.memory_space<vmem>>, vector<1x2x32xf32>,
    %c0_159 = arith.constant 0 : index
    %c6_160 = arith.constant 6 : index
    %c0_161 = arith.constant 0 : index
    %201 = vector.load %arg13[%c0_159, %c6_160, %c0_161] : memref<2x8x32xf32, #tpu.memory_space<vmem>>, vector<2x1x32xf32>
    %202 = vector.shape_cast %201 : vector<2x1x32xf32> to vector<2x32xf32>
    %203 = vector.shape_cast %197 : vector<2x32xf32> to vector<2x1x32xf32>
    tpu.vector_store %arg13[%c0_159, %c6_160, %c0_161], %203 {strides = array<i32>} : memref<2x8x32xf32, #tpu.memory_space<vmem>>, vector<2x1x32xf32>,
    %c0_162 = arith.constant 0 : index
    %c7 = arith.constant 7 : index
    %c0_163 = arith.constant 0 : index
    %204 = vector.load %arg13[%c0_162, %c7, %c0_163] : memref<2x8x32xf32, #tpu.memory_space<vmem>>, vector<2x1x32xf32>
    %205 = vector.shape_cast %204 : vector<2x1x32xf32> to vector<2x32xf32>
    %c0_164 = arith.constant 0 : index
    %c0_165 = arith.constant 0 : index
    %c0_166 = arith.constant 0 : index
    %206 = vector.load %arg12[%c0_164, %c0_165, %c0_166] : memref<2x2x32xf32, #tpu.memory_space<vmem>>, vector<1x2x32xf32>
    %207 = vector.shape_cast %206 : vector<1x2x32xf32> to vector<2x32xf32>
    %208 = arith.truncf %207 : vector<2x32xf32> to vector<2x32xbf16>
    %cst_167 = arith.constant dense<0.000000e+00> : vector<2x32xf32>
    %209 = tpu.matmul %208, %13, %cst_167 {dimension_numbers = #tpu.dot_dimension_numbers<[1], [0], [0], [1], [0, 0, 1, 1], [], []>} : vector<2x32xbf16>, vector<32x32xbf16>, vector<2x32xf32> -> vector<2x32xf32>
    %210 = arith.addf %205, %209 : vector<2x32xf32>
    %211 = math.tanh %210 : vector<2x32xf32>
    %c0_168 = arith.constant 0 : index
    %c0_169 = arith.constant 0 : index
    %c0_170 = arith.constant 0 : index
    %212 = vector.load %arg12[%c0_168, %c0_169, %c0_170] : memref<2x2x32xf32, #tpu.memory_space<vmem>>, vector<1x2x32xf32>
    %213 = vector.shape_cast %212 : vector<1x2x32xf32> to vector<2x32xf32>
    %214 = vector.shape_cast %211 : vector<2x32xf32> to vector<1x2x32xf32>
    tpu.vector_store %arg12[%c0_168, %c0_169, %c0_170], %214 {strides = array<i32>} : memref<2x2x32xf32, #tpu.memory_space<vmem>>, vector<1x2x32xf32>,
    %215 = arith.truncf %211 : vector<2x32xf32> to vector<2x32xbf16>
    %cst_171 = arith.constant dense<0.000000e+00> : vector<2x32xf32>
    %216 = tpu.matmul %215, %15, %cst_171 {dimension_numbers = #tpu.dot_dimension_numbers<[1], [0], [0], [1], [0, 0, 1, 1], [], []>} : vector<2x32xbf16>, vector<32x32xbf16>, vector<2x32xf32> -> vector<2x32xf32>
    %c1_172 = arith.constant 1 : index
    %c0_173 = arith.constant 0 : index
    %c0_174 = arith.constant 0 : index
    %217 = vector.load %arg12[%c1_172, %c0_173, %c0_174] : memref<2x2x32xf32, #tpu.memory_space<vmem>>, vector<1x2x32xf32>
    %218 = vector.shape_cast %217 : vector<1x2x32xf32> to vector<2x32xf32>
    %219 = arith.truncf %218 : vector<2x32xf32> to vector<2x32xbf16>
    %cst_175 = arith.constant dense<0.000000e+00> : vector<2x32xf32>
    %220 = tpu.matmul %219, %17, %cst_175 {dimension_numbers = #tpu.dot_dimension_numbers<[1], [0], [0], [1], [0, 0, 1, 1], [], []>} : vector<2x32xbf16>, vector<32x32xbf16>, vector<2x32xf32> -> vector<2x32xf32>
    %221 = arith.addf %216, %220 : vector<2x32xf32>
    %222 = arith.addf %221, %21 : vector<2x32xf32>
    %223 = math.tanh %222 : vector<2x32xf32>
    %c1_176 = arith.constant 1 : index
    %c0_177 = arith.constant 0 : index
    %c0_178 = arith.constant 0 : index
    %224 = vector.load %arg12[%c1_176, %c0_177, %c0_178] : memref<2x2x32xf32, #tpu.memory_space<vmem>>, vector<1x2x32xf32>
    %225 = vector.shape_cast %224 : vector<1x2x32xf32> to vector<2x32xf32>
    %226 = vector.shape_cast %223 : vector<2x32xf32> to vector<1x2x32xf32>
    tpu.vector_store %arg12[%c1_176, %c0_177, %c0_178], %226 {strides = array<i32>} : memref<2x2x32xf32, #tpu.memory_space<vmem>>, vector<1x2x32xf32>,
    %c0_179 = arith.constant 0 : index
    %c7_180 = arith.constant 7 : index
    %c0_181 = arith.constant 0 : index
    %227 = vector.load %arg13[%c0_179, %c7_180, %c0_181] : memref<2x8x32xf32, #tpu.memory_space<vmem>>, vector<2x1x32xf32>
    %228 = vector.shape_cast %227 : vector<2x1x32xf32> to vector<2x32xf32>
    %229 = vector.shape_cast %223 : vector<2x32xf32> to vector<2x1x32xf32>
    tpu.vector_store %arg13[%c0_179, %c7_180, %c0_181], %229 {strides = array<i32>} : memref<2x8x32xf32, #tpu.memory_space<vmem>>, vector<2x1x32xf32>,
    %c0_182 = arith.constant 0 : index
    %c0_183 = arith.constant 0 : index
    %c0_184 = arith.constant 0 : index
    %230 = vector.load %arg13[%c0_182, %c0_183, %c0_184] : memref<2x8x32xf32, #tpu.memory_space<vmem>>, vector<2x8x32xf32>
    %231 = arith.truncf %230 : vector<2x8x32xf32> to vector<2x8x32xbf16>
    %232 = vector.shape_cast %231 : vector<2x8x32xbf16> to vector<16x32xbf16>
    %c0_185 = arith.constant 0 : index
    %c0_186 = arith.constant 0 : index
    %233 = vector.load %arg9[%c0_185, %c0_186] : memref<32x32xbf16, #tpu.memory_space<vmem>>, vector<32x32xbf16>
    %cst_187 = arith.constant dense<0.000000e+00> : vector<16x32xf32>
    %234 = tpu.matmul %232, %233, %cst_187 {dimension_numbers = #tpu.dot_dimension_numbers<[1], [0], [0], [1], [0, 0, 1, 1], [], []>} : vector<16x32xbf16>, vector<32x32xbf16>, vector<16x32xf32> -> vector<16x32xf32>
    %c0_188 = arith.constant 0 : index
    %c0_189 = arith.constant 0 : index
    %235 = vector.load %arg10[%c0_188, %c0_189] : memref<1x32xf32, #tpu.memory_space<vmem>>, vector<1x32xf32>
    %236 = vector.broadcast %235 : vector<1x32xf32> to vector<16x32xf32>
    %237 = arith.addf %234, %236 : vector<16x32xf32>
    %238 = vector.shape_cast %237 : vector<16x32xf32> to vector<2x8x32xf32>
    %c0_190 = arith.constant 0 : index
    %c0_191 = arith.constant 0 : index
    %c0_192 = arith.constant 0 : index
    %239 = vector.load %arg11[%c0_190, %c0_191, %c0_192] : memref<2x8x32xf32, #tpu.memory_space<vmem>>, vector<2x8x32xf32>
    tpu.vector_store %arg11[%c0_190, %c0_191, %c0_192], %238 {strides = array<i32>} : memref<2x8x32xf32, #tpu.memory_space<vmem>>, vector<2x8x32xf32>,
    return
  }
  func.func @transform_0(%arg0: i32, %arg1: i32) -> (i32, i32, i32) {
    %c0_i32 = arith.constant 0 : i32
    %c0_i32_0 = arith.constant 0 : i32
    return %arg0, %arg1, %c0_i32 : i32, i32, i32
  }
  func.func @transform_1(%arg0: i32, %arg1: i32) -> (i32, i32) {
    %c0_i32 = arith.constant 0 : i32
    %c0_i32_0 = arith.constant 0 : i32
    %c0_i32_1 = arith.constant 0 : i32
    return %c0_i32, %c0_i32_0 : i32, i32
  }
  func.func @transform_2(%arg0: i32, %arg1: i32) -> (i32, i32) {
    %c0_i32 = arith.constant 0 : i32
    %c0_i32_0 = arith.constant 0 : i32
    %c0_i32_1 = arith.constant 0 : i32
    return %c0_i32, %c0_i32_0 : i32, i32
  }
  func.func @transform_3(%arg0: i32, %arg1: i32) -> (i32, i32) {
    %c0_i32 = arith.constant 0 : i32
    %c0_i32_0 = arith.constant 0 : i32
    %c0_i32_1 = arith.constant 0 : i32
    return %c0_i32, %c0_i32_0 : i32, i32
  }
  func.func @transform_4(%arg0: i32, %arg1: i32) -> (i32, i32, i32) {
    %c0_i32 = arith.constant 0 : i32
    %c0_i32_0 = arith.constant 0 : i32
    %c0_i32_1 = arith.constant 0 : i32
    %c0_i32_2 = arith.constant 0 : i32
    return %c0_i32, %c0_i32_0, %c0_i32_1 : i32, i32, i32
  }
  func.func @transform_5(%arg0: i32, %arg1: i32) -> (i32, i32, i32) {
    %c0_i32 = arith.constant 0 : i32
    %c0_i32_0 = arith.constant 0 : i32
    %c0_i32_1 = arith.constant 0 : i32
    %c0_i32_2 = arith.constant 0 : i32
    return %c0_i32, %c0_i32_0, %c0_i32_1 : i32, i32, i32
  }
  func.func @transform_6(%arg0: i32, %arg1: i32) -> (i32, i32, i32) {
    %c0_i32 = arith.constant 0 : i32
    %c0_i32_0 = arith.constant 0 : i32
    %c0_i32_1 = arith.constant 0 : i32
    %c0_i32_2 = arith.constant 0 : i32
    return %c0_i32, %c0_i32_0, %c0_i32_1 : i32, i32, i32
  }
  func.func @transform_7(%arg0: i32, %arg1: i32) -> (i32, i32) {
    %c0_i32 = arith.constant 0 : i32
    %c0_i32_0 = arith.constant 0 : i32
    %c0_i32_1 = arith.constant 0 : i32
    return %c0_i32, %c0_i32_0 : i32, i32
  }
  func.func @transform_8(%arg0: i32, %arg1: i32) -> (i32, i32) {
    %c0_i32 = arith.constant 0 : i32
    %c0_i32_0 = arith.constant 0 : i32
    %c0_i32_1 = arith.constant 0 : i32
    return %c0_i32, %c0_i32_0 : i32, i32
  }
  func.func @transform_9(%arg0: i32, %arg1: i32) -> (i32, i32, i32) {
    %c0_i32 = arith.constant 0 : i32
    %c0_i32_0 = arith.constant 0 : i32
    return %arg0, %arg1, %c0_i32 : i32, i32, i32
  }
}

module attributes {stable_mosaic.version = 11 : i64} {
  func.func @rnn_fc_block_kernel(%arg0: i32, %arg1: i32, %arg2: memref<2x8x16xf32, #tpu.memory_space<vmem>>, %arg3: memref<16x32xbf16, #tpu.memory_space<vmem>>, %arg4: memref<32x32xbf16, #tpu.memory_space<vmem>>, %arg5: memref<1x32xf32, #tpu.memory_space<vmem>>, %arg6: memref<1x32x32xbf16, #tpu.memory_space<vmem>>, %arg7: memref<1x32x32xbf16, #tpu.memory_space<vmem>>, %arg8: memref<1x1x32xf32, #tpu.memory_space<vmem>>, %arg9: memref<32x32xbf16, #tpu.memory_space<vmem>>, %arg10: memref<1x32xf32, #tpu.memory_space<vmem>>, %arg11: memref<2x8x32xf32, #tpu.memory_space<vmem>>, %arg12: memref<2x2x32xf32, #tpu.memory_space<vmem>>, %arg13: memref<2x8x32xf32, #tpu.memory_space<vmem>>) attributes {dimension_semantics = [#tpu.dimension_semantics<parallel>, #tpu.dimension_semantics<arbitrary>], iteration_bounds = array<i64: 1, 1>, scalar_prefetch = 0 : i64, scratch_operands = 2 : i64, tpu.core_type = #tpu.core_type<tc>, window_params = [{transform_indices = @transform_0, window_bounds = array<i64: 2, 8, 16>}, {pipeline_mode = #tpu.pipeline_mode<synchronous>, transform_indices = @transform_1, window_bounds = array<i64: 16, 32>}, {pipeline_mode = #tpu.pipeline_mode<synchronous>, transform_indices = @transform_2, window_bounds = array<i64: 32, 32>}, {pipeline_mode = #tpu.pipeline_mode<synchronous>, transform_indices = @transform_3, window_bounds = array<i64: 1, 32>}, {pipeline_mode = #tpu.pipeline_mode<synchronous>, transform_indices = @transform_4, window_bounds = array<i64: 1, 32, 32>}, {pipeline_mode = #tpu.pipeline_mode<synchronous>, transform_indices = @transform_5, window_bounds = array<i64: 1, 32, 32>}, {pipeline_mode = #tpu.pipeline_mode<synchronous>, transform_indices = @transform_6, window_bounds = array<i64: 1, 1, 32>}, {pipeline_mode = #tpu.pipeline_mode<synchronous>, transform_indices = @transform_7, window_bounds = array<i64: 32, 32>}, {pipeline_mode = #tpu.pipeline_mode<synchronous>, transform_indices = @transform_8, window_bounds = array<i64: 1, 32>}, {transform_indices = @transform_9, window_bounds = array<i64: 2, 8, 32>}]} {
    %c0_i32 = arith.constant 0 : i32
    %0 = arith.cmpi eq, %arg1, %c0_i32 : i32
    %1 = arith.extui %0 : i1 to i32
    %c0_i32_0 = arith.constant 0 : i32
    %2 = arith.cmpi ne, %1, %c0_i32_0 : i32
    scf.if %2 {
      %cst_193 = arith.constant 0.000000e+00 : f32
      %240 = vector.broadcast %cst_193 : f32 to vector<2x2x32xf32>
      %c0_194 = arith.constant 0 : index
      %c0_195 = arith.constant 0 : index
      %c0_196 = arith.constant 0 : index
      %241 = vector.load %arg12[%c0_194, %c0_195, %c0_196] : memref<2x2x32xf32, #tpu.memory_space<vmem>>, vector<2x2x32xf32>
      tpu.vector_store %arg12[%c0_194, %c0_195, %c0_196], %240 {strides = array<i32>} : memref<2x2x32xf32, #tpu.memory_space<vmem>>, vector<2x2x32xf32>,
    } else {
    }
    %c0 = arith.constant 0 : index
    %c0_1 = arith.constant 0 : index
    %c0_2 = arith.constant 0 : index
    %3 = vector.load %arg2[%c0, %c0_1, %c0_2] : memref<2x8x16xf32, #tpu.memory_space<vmem>>, vector<2x8x16xf32>
    %4 = arith.truncf %3 : vector<2x8x16xf32> to vector<2x8x16xbf16>
    %5 = vector.shape_cast %4 : vector<2x8x16xbf16> to vector<16x16xbf16>
    %c0_3 = arith.constant 0 : index
    %c0_4 = arith.constant 0 : index
    %6 = vector.load %arg3[%c0_3, %c0_4] : memref<16x32xbf16, #tpu.memory_space<vmem>>, vector<16x32xbf16>
    %cst = arith.constant dense<0.000000e+00> : vector<16x32xf32>
    %7 = tpu.matmul %5, %6, %cst {dimension_numbers = #tpu.dot_dimension_numbers<[1], [0], [0], [1], [0, 0, 1, 1], [], []>} : vector<16x16xbf16>, vector<16x32xbf16>, vector<16x32xf32> -> vector<16x32xf32>
    %c0_5 = arith.constant 0 : index
    %c0_6 = arith.constant 0 : index
    %8 = vector.load %arg5[%c0_5, %c0_6] : memref<1x32xf32, #tpu.memory_space<vmem>>, vector<1x32xf32>
    %9 = vector.broadcast %8 : vector<1x32xf32> to vector<16x32xf32>
    %10 = arith.addf %7, %9 : vector<16x32xf32>
    %11 = vector.shape_cast %10 : vector<16x32xf32> to vector<2x8x32xf32>
    %c0_7 = arith.constant 0 : index
    %c0_8 = arith.constant 0 : index
    %c0_9 = arith.constant 0 : index
    %12 = vector.load %arg13[%c0_7, %c0_8, %c0_9] : memref<2x8x32xf32, #tpu.memory_space<vmem>>, vector<2x8x32xf32>
    tpu.vector_store %arg13[%c0_7, %c0_8, %c0_9], %11 {strides = array<i32>} : memref<2x8x32xf32, #tpu.memory_space<vmem>>, vector<2x8x32xf32>,
    %c0_10 = arith.constant 0 : index
    %c0_11 = arith.constant 0 : index
    %13 = vector.load %arg4[%c0_10, %c0_11] : memref<32x32xbf16, #tpu.memory_space<vmem>>, vector<32x32xbf16>
    %c0_12 = arith.constant 0 : index
    %c0_13 = arith.constant 0 : index
    %c0_14 = arith.constant 0 : index
    %14 = vector.load %arg6[%c0_12, %c0_13, %c0_14] : memref<1x32x32xbf16, #tpu.memory_space<vmem>>, vector<1x32x32xbf16>
    %15 = vector.shape_cast %14 : vector<1x32x32xbf16> to vector<32x32xbf16>
    %c0_15 = arith.constant 0 : index
    %c0_16 = arith.constant 0 : index
    %c0_17 = arith.constant 0 : index
    %16 = vector.load %arg7[%c0_15, %c0_16, %c0_17] : memref<1x32x32xbf16, #tpu.memory_space<vmem>>, vector<1x32x32xbf16>
    %17 = vector.shape_cast %16 : vector<1x32x32xbf16> to vector<32x32xbf16>
    %c0_18 = arith.constant 0 : index
    %c0_19 = arith.constant 0 : index
    %c0_20 = arith.constant 0 : index
    %18 = vector.load %arg8[%c0_18, %c0_19, %c0_20] : memref<1x1x32xf32, #tpu.memory_space<vmem>>, vector<1x1x32xf32>
    %19 = vector.shape_cast %18 : vector<1x1x32xf32> to vector<1x32xf32>
    %20 = vector.shape_cast %19 : vector<1x32xf32> to vector<1x32xf32>
    %21 = vector.broadcast %20 : vector<1x32xf32> to vector<2x32xf32>
    %c0_21 = arith.constant 0 : index
    %c0_22 = arith.constant 0 : index
    %c0_23 = arith.constant 0 : index
    %22 = vector.load %arg13[%c0_21, %c0_22, %c0_23] : memref<2x8x32xf32, #tpu.memory_space<vmem>>, vector<2x1x32xf32>
    %23 = vector.shape_cast %22 : vector<2x1x32xf32> to vector<2x32xf32>
    %c0_24 = arith.constant 0 : index
    %c0_25 = arith.constant 0 : index
    %c0_26 = arith.constant 0 : index
    %24 = vector.load %arg12[%c0_24, %c0_25, %c0_26] : memref<2x2x32xf32, #tpu.memory_space<vmem>>, vector<1x2x32xf32>
    %25 = vector.shape_cast %24 : vector<1x2x32xf32> to vector<2x32xf32>
    %26 = arith.truncf %25 : vector<2x32xf32> to vector<2x32xbf16>
    %cst_27 = arith.constant dense<0.000000e+00> : vector<2x32xf32>
    %27 = tpu.matmul %26, %13, %cst_27 {dimension_numbers = #tpu.dot_dimension_numbers<[1], [0], [0], [1], [0, 0, 1, 1], [], []>} : vector<2x32xbf16>, vector<32x32xbf16>, vector<2x32xf32> -> vector<2x32xf32>
    %28 = arith.addf %23, %27 : vector<2x32xf32>
    %29 = math.tanh %28 : vector<2x32xf32>
    %c0_28 = arith.constant 0 : index
    %c0_29 = arith.constant 0 : index
    %c0_30 = arith.constant 0 : index
    %30 = vector.load %arg12[%c0_28, %c0_29, %c0_30] : memref<2x2x32xf32, #tpu.memory_space<vmem>>, vector<1x2x32xf32>
    %31 = vector.shape_cast %30 : vector<1x2x32xf32> to vector<2x32xf32>
    %32 = vector.shape_cast %29 : vector<2x32xf32> to vector<1x2x32xf32>
    tpu.vector_store %arg12[%c0_28, %c0_29, %c0_30], %32 {strides = array<i32>} : memref<2x2x32xf32, #tpu.memory_space<vmem>>, vector<1x2x32xf32>,
    %33 = arith.truncf %29 : vector<2x32xf32> to vector<2x32xbf16>
    %cst_31 = arith.constant dense<0.000000e+00> : vector<2x32xf32>
    %34 = tpu.matmul %33, %15, %cst_31 {dimension_numbers = #tpu.dot_dimension_numbers<[1], [0], [0], [1], [0, 0, 1, 1], [], []>} : vector<2x32xbf16>, vector<32x32xbf16>, vector<2x32xf32> -> vector<2x32xf32>
    %c1 = arith.constant 1 : index
    %c0_32 = arith.constant 0 : index
    %c0_33 = arith.constant 0 : index
    %35 = vector.load %arg12[%c1, %c0_32, %c0_33] : memref<2x2x32xf32, #tpu.memory_space<vmem>>, vector<1x2x32xf32>
    %36 = vector.shape_cast %35 : vector<1x2x32xf32> to vector<2x32xf32>
    %37 = arith.truncf %36 : vector<2x32xf32> to vector<2x32xbf16>
    %cst_34 = arith.constant dense<0.000000e+00> : vector<2x32xf32>
    %38 = tpu.matmul %37, %17, %cst_34 {dimension_numbers = #tpu.dot_dimension_numbers<[1], [0], [0], [1], [0, 0, 1, 1], [], []>} : vector<2x32xbf16>, vector<32x32xbf16>, vector<2x32xf32> -> vector<2x32xf32>
    %39 = arith.addf %34, %38 : vector<2x32xf32>
    %40 = arith.addf %39, %21 : vector<2x32xf32>
    %41 = math.tanh %40 : vector<2x32xf32>
    %c1_35 = arith.constant 1 : index
    %c0_36 = arith.constant 0 : index
    %c0_37 = arith.constant 0 : index
    %42 = vector.load %arg12[%c1_35, %c0_36, %c0_37] : memref<2x2x32xf32, #tpu.memory_space<vmem>>, vector<1x2x32xf32>
    %43 = vector.shape_cast %42 : vector<1x2x32xf32> to vector<2x32xf32>
    %44 = vector.shape_cast %41 : vector<2x32xf32> to vector<1x2x32xf32>
    tpu.vector_store %arg12[%c1_35, %c0_36, %c0_37], %44 {strides = array<i32>} : memref<2x2x32xf32, #tpu.memory_space<vmem>>, vector<1x2x32xf32>,
    %c0_38 = arith.constant 0 : index
    %c0_39 = arith.constant 0 : index
    %c0_40 = arith.constant 0 : index
    %45 = vector.load %arg13[%c0_38, %c0_39, %c0_40] : memref<2x8x32xf32, #tpu.memory_space<vmem>>, vector<2x1x32xf32>
    %46 = vector.shape_cast %45 : vector<2x1x32xf32> to vector<2x32xf32>
    %47 = vector.shape_cast %41 : vector<2x32xf32> to vector<2x1x32xf32>
    tpu.vector_store %arg13[%c0_38, %c0_39, %c0_40], %47 {strides = array<i32>} : memref<2x8x32xf32, #tpu.memory_space<vmem>>, vector<2x1x32xf32>,
    %c0_41 = arith.constant 0 : index
    %c1_42 = arith.constant 1 : index
    %c0_43 = arith.constant 0 : index
    %48 = vector.load %arg13[%c0_41, %c1_42, %c0_43] : memref<2x8x32xf32, #tpu.memory_space<vmem>>, vector<2x1x32xf32>
    %49 = vector.shape_cast %48 : vector<2x1x32xf32> to vector<2x32xf32>
    %c0_44 = arith.constant 0 : index
    %c0_45 = arith.constant 0 : index
    %c0_46 = arith.constant 0 : index
    %50 = vector.load %arg12[%c0_44, %c0_45, %c0_46] : memref<2x2x32xf32, #tpu.memory_space<vmem>>, vector<1x2x32xf32>
    %51 = vector.shape_cast %50 : vector<1x2x32xf32> to vector<2x32xf32>
    %52 = arith.truncf %51 : vector<2x32xf32> to vector<2x32xbf16>
    %cst_47 = arith.constant dense<0.000000e+00> : vector<2x32xf32>
    %53 = tpu.matmul %52, %13, %cst_47 {dimension_numbers = #tpu.dot_dimension_numbers<[1], [0], [0], [1], [0, 0, 1, 1], [], []>} : vector<2x32xbf16>, vector<32x32xbf16>, vector<2x32xf32> -> vector<2x32xf32>
    %54 = arith.addf %49, %53 : vector<2x32xf32>
    %55 = math.tanh %54 : vector<2x32xf32>
    %c0_48 = arith.constant 0 : index
    %c0_49 = arith.constant 0 : index
    %c0_50 = arith.constant 0 : index
    %56 = vector.load %arg12[%c0_48, %c0_49, %c0_50] : memref<2x2x32xf32, #tpu.memory_space<vmem>>, vector<1x2x32xf32>
    %57 = vector.shape_cast %56 : vector<1x2x32xf32> to vector<2x32xf32>
    %58 = vector.shape_cast %55 : vector<2x32xf32> to vector<1x2x32xf32>
    tpu.vector_store %arg12[%c0_48, %c0_49, %c0_50], %58 {strides = array<i32>} : memref<2x2x32xf32, #tpu.memory_space<vmem>>, vector<1x2x32xf32>,
    %59 = arith.truncf %55 : vector<2x32xf32> to vector<2x32xbf16>
    %cst_51 = arith.constant dense<0.000000e+00> : vector<2x32xf32>
    %60 = tpu.matmul %59, %15, %cst_51 {dimension_numbers = #tpu.dot_dimension_numbers<[1], [0], [0], [1], [0, 0, 1, 1], [], []>} : vector<2x32xbf16>, vector<32x32xbf16>, vector<2x32xf32> -> vector<2x32xf32>
    %c1_52 = arith.constant 1 : index
    %c0_53 = arith.constant 0 : index
    %c0_54 = arith.constant 0 : index
    %61 = vector.load %arg12[%c1_52, %c0_53, %c0_54] : memref<2x2x32xf32, #tpu.memory_space<vmem>>, vector<1x2x32xf32>
    %62 = vector.shape_cast %61 : vector<1x2x32xf32> to vector<2x32xf32>
    %63 = arith.truncf %62 : vector<2x32xf32> to vector<2x32xbf16>
    %cst_55 = arith.constant dense<0.000000e+00> : vector<2x32xf32>
    %64 = tpu.matmul %63, %17, %cst_55 {dimension_numbers = #tpu.dot_dimension_numbers<[1], [0], [0], [1], [0, 0, 1, 1], [], []>} : vector<2x32xbf16>, vector<32x32xbf16>, vector<2x32xf32> -> vector<2x32xf32>
    %65 = arith.addf %60, %64 : vector<2x32xf32>
    %66 = arith.addf %65, %21 : vector<2x32xf32>
    %67 = math.tanh %66 : vector<2x32xf32>
    %c1_56 = arith.constant 1 : index
    %c0_57 = arith.constant 0 : index
    %c0_58 = arith.constant 0 : index
    %68 = vector.load %arg12[%c1_56, %c0_57, %c0_58] : memref<2x2x32xf32, #tpu.memory_space<vmem>>, vector<1x2x32xf32>
    %69 = vector.shape_cast %68 : vector<1x2x32xf32> to vector<2x32xf32>
    %70 = vector.shape_cast %67 : vector<2x32xf32> to vector<1x2x32xf32>
    tpu.vector_store %arg12[%c1_56, %c0_57, %c0_58], %70 {strides = array<i32>} : memref<2x2x32xf32, #tpu.memory_space<vmem>>, vector<1x2x32xf32>,
    %c0_59 = arith.constant 0 : index
    %c1_60 = arith.constant 1 : index
    %c0_61 = arith.constant 0 : index
    %71 = vector.load %arg13[%c0_59, %c1_60, %c0_61] : memref<2x8x32xf32, #tpu.memory_space<vmem>>, vector<2x1x32xf32>
    %72 = vector.shape_cast %71 : vector<2x1x32xf32> to vector<2x32xf32>
    %73 = vector.shape_cast %67 : vector<2x32xf32> to vector<2x1x32xf32>
    tpu.vector_store %arg13[%c0_59, %c1_60, %c0_61], %73 {strides = array<i32>} : memref<2x8x32xf32, #tpu.memory_space<vmem>>, vector<2x1x32xf32>,
    %c0_62 = arith.constant 0 : index
    %c2 = arith.constant 2 : index
    %c0_63 = arith.constant 0 : index
    %74 = vector.load %arg13[%c0_62, %c2, %c0_63] : memref<2x8x32xf32, #tpu.memory_space<vmem>>, vector<2x1x32xf32>
    %75 = vector.shape_cast %74 : vector<2x1x32xf32> to vector<2x32xf32>
    %c0_64 = arith.constant 0 : index
    %c0_65 = arith.constant 0 : index
    %c0_66 = arith.constant 0 : index
    %76 = vector.load %arg12[%c0_64, %c0_65, %c0_66] : memref<2x2x32xf32, #tpu.memory_space<vmem>>, vector<1x2x32xf32>
    %77 = vector.shape_cast %76 : vector<1x2x32xf32> to vector<2x32xf32>
    %78 = arith.truncf %77 : vector<2x32xf32> to vector<2x32xbf16>
    %cst_67 = arith.constant dense<0.000000e+00> : vector<2x32xf32>
    %79 = tpu.matmul %78, %13, %cst_67 {dimension_numbers = #tpu.dot_dimension_numbers<[1], [0], [0], [1], [0, 0, 1, 1], [], []>} : vector<2x32xbf16>, vector<32x32xbf16>, vector<2x32xf32> -> vector<2x32xf32>
    %80 = arith.addf %75, %79 : vector<2x32xf32>
    %81 = math.tanh %80 : vector<2x32xf32>
    %c0_68 = arith.constant 0 : index
    %c0_69 = arith.constant 0 : index
    %c0_70 = arith.constant 0 : index
    %82 = vector.load %arg12[%c0_68, %c0_69, %c0_70] : memref<2x2x32xf32, #tpu.memory_space<vmem>>, vector<1x2x32xf32>
    %83 = vector.shape_cast %82 : vector<1x2x32xf32> to vector<2x32xf32>
    %84 = vector.shape_cast %81 : vector<2x32xf32> to vector<1x2x32xf32>
    tpu.vector_store %arg12[%c0_68, %c0_69, %c0_70], %84 {strides = array<i32>} : memref<2x2x32xf32, #tpu.memory_space<vmem>>, vector<1x2x32xf32>,
    %85 = arith.truncf %81 : vector<2x32xf32> to vector<2x32xbf16>
    %cst_71 = arith.constant dense<0.000000e+00> : vector<2x32xf32>
    %86 = tpu.matmul %85, %15, %cst_71 {dimension_numbers = #tpu.dot_dimension_numbers<[1], [0], [0], [1], [0, 0, 1, 1], [], []>} : vector<2x32xbf16>, vector<32x32xbf16>, vector<2x32xf32> -> vector<2x32xf32>
    %c1_72 = arith.constant 1 : index
    %c0_73 = arith.constant 0 : index
    %c0_74 = arith.constant 0 : index
    %87 = vector.load %arg12[%c1_72, %c0_73, %c0_74] : memref<2x2x32xf32, #tpu.memory_space<vmem>>, vector<1x2x32xf32>
    %88 = vector.shape_cast %87 : vector<1x2x32xf32> to vector<2x32xf32>
    %89 = arith.truncf %88 : vector<2x32xf32> to vector<2x32xbf16>
    %cst_75 = arith.constant dense<0.000000e+00> : vector<2x32xf32>
    %90 = tpu.matmul %89, %17, %cst_75 {dimension_numbers = #tpu.dot_dimension_numbers<[1], [0], [0], [1], [0, 0, 1, 1], [], []>} : vector<2x32xbf16>, vector<32x32xbf16>, vector<2x32xf32> -> vector<2x32xf32>
    %91 = arith.addf %86, %90 : vector<2x32xf32>
    %92 = arith.addf %91, %21 : vector<2x32xf32>
    %93 = math.tanh %92 : vector<2x32xf32>
    %c1_76 = arith.constant 1 : index
    %c0_77 = arith.constant 0 : index
    %c0_78 = arith.constant 0 : index
    %94 = vector.load %arg12[%c1_76, %c0_77, %c0_78] : memref<2x2x32xf32, #tpu.memory_space<vmem>>, vector<1x2x32xf32>
    %95 = vector.shape_cast %94 : vector<1x2x32xf32> to vector<2x32xf32>
    %96 = vector.shape_cast %93 : vector<2x32xf32> to vector<1x2x32xf32>
    tpu.vector_store %arg12[%c1_76, %c0_77, %c0_78], %96 {strides = array<i32>} : memref<2x2x32xf32, #tpu.memory_space<vmem>>, vector<1x2x32xf32>,
    %c0_79 = arith.constant 0 : index
    %c2_80 = arith.constant 2 : index
    %c0_81 = arith.constant 0 : index
    %97 = vector.load %arg13[%c0_79, %c2_80, %c0_81] : memref<2x8x32xf32, #tpu.memory_space<vmem>>, vector<2x1x32xf32>
    %98 = vector.shape_cast %97 : vector<2x1x32xf32> to vector<2x32xf32>
    %99 = vector.shape_cast %93 : vector<2x32xf32> to vector<2x1x32xf32>
    tpu.vector_store %arg13[%c0_79, %c2_80, %c0_81], %99 {strides = array<i32>} : memref<2x8x32xf32, #tpu.memory_space<vmem>>, vector<2x1x32xf32>,
    %c0_82 = arith.constant 0 : index
    %c3 = arith.constant 3 : index
    %c0_83 = arith.constant 0 : index
    %100 = vector.load %arg13[%c0_82, %c3, %c0_83] : memref<2x8x32xf32, #tpu.memory_space<vmem>>, vector<2x1x32xf32>
    %101 = vector.shape_cast %100 : vector<2x1x32xf32> to vector<2x32xf32>
    %c0_84 = arith.constant 0 : index
    %c0_85 = arith.constant 0 : index
    %c0_86 = arith.constant 0 : index
    %102 = vector.load %arg12[%c0_84, %c0_85, %c0_86] : memref<2x2x32xf32, #tpu.memory_space<vmem>>, vector<1x2x32xf32>
    %103 = vector.shape_cast %102 : vector<1x2x32xf32> to vector<2x32xf32>
    %104 = arith.truncf %103 : vector<2x32xf32> to vector<2x32xbf16>
    %cst_87 = arith.constant dense<0.000000e+00> : vector<2x32xf32>
    %105 = tpu.matmul %104, %13, %cst_87 {dimension_numbers = #tpu.dot_dimension_numbers<[1], [0], [0], [1], [0, 0, 1, 1], [], []>} : vector<2x32xbf16>, vector<32x32xbf16>, vector<2x32xf32> -> vector<2x32xf32>
    %106 = arith.addf %101, %105 : vector<2x32xf32>
    %107 = math.tanh %106 : vector<2x32xf32>
    %c0_88 = arith.constant 0 : index
    %c0_89 = arith.constant 0 : index
    %c0_90 = arith.constant 0 : index
    %108 = vector.load %arg12[%c0_88, %c0_89, %c0_90] : memref<2x2x32xf32, #tpu.memory_space<vmem>>, vector<1x2x32xf32>
    %109 = vector.shape_cast %108 : vector<1x2x32xf32> to vector<2x32xf32>
    %110 = vector.shape_cast %107 : vector<2x32xf32> to vector<1x2x32xf32>
    tpu.vector_store %arg12[%c0_88, %c0_89, %c0_90], %110 {strides = array<i32>} : memref<2x2x32xf32, #tpu.memory_space<vmem>>, vector<1x2x32xf32>,
    %111 = arith.truncf %107 : vector<2x32xf32> to vector<2x32xbf16>
    %cst_91 = arith.constant dense<0.000000e+00> : vector<2x32xf32>
    %112 = tpu.matmul %111, %15, %cst_91 {dimension_numbers = #tpu.dot_dimension_numbers<[1], [0], [0], [1], [0, 0, 1, 1], [], []>} : vector<2x32xbf16>, vector<32x32xbf16>, vector<2x32xf32> -> vector<2x32xf32>
    %c1_92 = arith.constant 1 : index
    %c0_93 = arith.constant 0 : index
    %c0_94 = arith.constant 0 : index
    %113 = vector.load %arg12[%c1_92, %c0_93, %c0_94] : memref<2x2x32xf32, #tpu.memory_space<vmem>>, vector<1x2x32xf32>
    %114 = vector.shape_cast %113 : vector<1x2x32xf32> to vector<2x32xf32>
    %115 = arith.truncf %114 : vector<2x32xf32> to vector<2x32xbf16>
    %cst_95 = arith.constant dense<0.000000e+00> : vector<2x32xf32>
    %116 = tpu.matmul %115, %17, %cst_95 {dimension_numbers = #tpu.dot_dimension_numbers<[1], [0], [0], [1], [0, 0, 1, 1], [], []>} : vector<2x32xbf16>, vector<32x32xbf16>, vector<2x32xf32> -> vector<2x32xf32>
    %117 = arith.addf %112, %116 : vector<2x32xf32>
    %118 = arith.addf %117, %21 : vector<2x32xf32>
    %119 = math.tanh %118 : vector<2x32xf32>
    %c1_96 = arith.constant 1 : index
    %c0_97 = arith.constant 0 : index
    %c0_98 = arith.constant 0 : index
    %120 = vector.load %arg12[%c1_96, %c0_97, %c0_98] : memref<2x2x32xf32, #tpu.memory_space<vmem>>, vector<1x2x32xf32>
    %121 = vector.shape_cast %120 : vector<1x2x32xf32> to vector<2x32xf32>
    %122 = vector.shape_cast %119 : vector<2x32xf32> to vector<1x2x32xf32>
    tpu.vector_store %arg12[%c1_96, %c0_97, %c0_98], %122 {strides = array<i32>} : memref<2x2x32xf32, #tpu.memory_space<vmem>>, vector<1x2x32xf32>,
    %c0_99 = arith.constant 0 : index
    %c3_100 = arith.constant 3 : index
    %c0_101 = arith.constant 0 : index
    %123 = vector.load %arg13[%c0_99, %c3_100, %c0_101] : memref<2x8x32xf32, #tpu.memory_space<vmem>>, vector<2x1x32xf32>
    %124 = vector.shape_cast %123 : vector<2x1x32xf32> to vector<2x32xf32>
    %125 = vector.shape_cast %119 : vector<2x32xf32> to vector<2x1x32xf32>
    tpu.vector_store %arg13[%c0_99, %c3_100, %c0_101], %125 {strides = array<i32>} : memref<2x8x32xf32, #tpu.memory_space<vmem>>, vector<2x1x32xf32>,
    %c0_102 = arith.constant 0 : index
    %c4 = arith.constant 4 : index
    %c0_103 = arith.constant 0 : index
    %126 = vector.load %arg13[%c0_102, %c4, %c0_103] : memref<2x8x32xf32, #tpu.memory_space<vmem>>, vector<2x1x32xf32>
    %127 = vector.shape_cast %126 : vector<2x1x32xf32> to vector<2x32xf32>
    %c0_104 = arith.constant 0 : index
    %c0_105 = arith.constant 0 : index
    %c0_106 = arith.constant 0 : index
    %128 = vector.load %arg12[%c0_104, %c0_105, %c0_106] : memref<2x2x32xf32, #tpu.memory_space<vmem>>, vector<1x2x32xf32>
    %129 = vector.shape_cast %128 : vector<1x2x32xf32> to vector<2x32xf32>
    %130 = arith.truncf %129 : vector<2x32xf32> to vector<2x32xbf16>
    %cst_107 = arith.constant dense<0.000000e+00> : vector<2x32xf32>
    %131 = tpu.matmul %130, %13, %cst_107 {dimension_numbers = #tpu.dot_dimension_numbers<[1], [0], [0], [1], [0, 0, 1, 1], [], []>} : vector<2x32xbf16>, vector<32x32xbf16>, vector<2x32xf32> -> vector<2x32xf32>
    %132 = arith.addf %127, %131 : vector<2x32xf32>
    %133 = math.tanh %132 : vector<2x32xf32>
    %c0_108 = arith.constant 0 : index
    %c0_109 = arith.constant 0 : index
    %c0_110 = arith.constant 0 : index
    %134 = vector.load %arg12[%c0_108, %c0_109, %c0_110] : memref<2x2x32xf32, #tpu.memory_space<vmem>>, vector<1x2x32xf32>
    %135 = vector.shape_cast %134 : vector<1x2x32xf32> to vector<2x32xf32>
    %136 = vector.shape_cast %133 : vector<2x32xf32> to vector<1x2x32xf32>
    tpu.vector_store %arg12[%c0_108, %c0_109, %c0_110], %136 {strides = array<i32>} : memref<2x2x32xf32, #tpu.memory_space<vmem>>, vector<1x2x32xf32>,
    %137 = arith.truncf %133 : vector<2x32xf32> to vector<2x32xbf16>
    %cst_111 = arith.constant dense<0.000000e+00> : vector<2x32xf32>
    %138 = tpu.matmul %137, %15, %cst_111 {dimension_numbers = #tpu.dot_dimension_numbers<[1], [0], [0], [1], [0, 0, 1, 1], [], []>} : vector<2x32xbf16>, vector<32x32xbf16>, vector<2x32xf32> -> vector<2x32xf32>
    %c1_112 = arith.constant 1 : index
    %c0_113 = arith.constant 0 : index
    %c0_114 = arith.constant 0 : index
    %139 = vector.load %arg12[%c1_112, %c0_113, %c0_114] : memref<2x2x32xf32, #tpu.memory_space<vmem>>, vector<1x2x32xf32>
    %140 = vector.shape_cast %139 : vector<1x2x32xf32> to vector<2x32xf32>
    %141 = arith.truncf %140 : vector<2x32xf32> to vector<2x32xbf16>
    %cst_115 = arith.constant dense<0.000000e+00> : vector<2x32xf32>
    %142 = tpu.matmul %141, %17, %cst_115 {dimension_numbers = #tpu.dot_dimension_numbers<[1], [0], [0], [1], [0, 0, 1, 1], [], []>} : vector<2x32xbf16>, vector<32x32xbf16>, vector<2x32xf32> -> vector<2x32xf32>
    %143 = arith.addf %138, %142 : vector<2x32xf32>
    %144 = arith.addf %143, %21 : vector<2x32xf32>
    %145 = math.tanh %144 : vector<2x32xf32>
    %c1_116 = arith.constant 1 : index
    %c0_117 = arith.constant 0 : index
    %c0_118 = arith.constant 0 : index
    %146 = vector.load %arg12[%c1_116, %c0_117, %c0_118] : memref<2x2x32xf32, #tpu.memory_space<vmem>>, vector<1x2x32xf32>
    %147 = vector.shape_cast %146 : vector<1x2x32xf32> to vector<2x32xf32>
    %148 = vector.shape_cast %145 : vector<2x32xf32> to vector<1x2x32xf32>
    tpu.vector_store %arg12[%c1_116, %c0_117, %c0_118], %148 {strides = array<i32>} : memref<2x2x32xf32, #tpu.memory_space<vmem>>, vector<1x2x32xf32>,
    %c0_119 = arith.constant 0 : index
    %c4_120 = arith.constant 4 : index
    %c0_121 = arith.constant 0 : index
    %149 = vector.load %arg13[%c0_119, %c4_120, %c0_121] : memref<2x8x32xf32, #tpu.memory_space<vmem>>, vector<2x1x32xf32>
    %150 = vector.shape_cast %149 : vector<2x1x32xf32> to vector<2x32xf32>
    %151 = vector.shape_cast %145 : vector<2x32xf32> to vector<2x1x32xf32>
    tpu.vector_store %arg13[%c0_119, %c4_120, %c0_121], %151 {strides = array<i32>} : memref<2x8x32xf32, #tpu.memory_space<vmem>>, vector<2x1x32xf32>,
    %c0_122 = arith.constant 0 : index
    %c5 = arith.constant 5 : index
    %c0_123 = arith.constant 0 : index
    %152 = vector.load %arg13[%c0_122, %c5, %c0_123] : memref<2x8x32xf32, #tpu.memory_space<vmem>>, vector<2x1x32xf32>
    %153 = vector.shape_cast %152 : vector<2x1x32xf32> to vector<2x32xf32>
    %c0_124 = arith.constant 0 : index
    %c0_125 = arith.constant 0 : index
    %c0_126 = arith.constant 0 : index
    %154 = vector.load %arg12[%c0_124, %c0_125, %c0_126] : memref<2x2x32xf32, #tpu.memory_space<vmem>>, vector<1x2x32xf32>
    %155 = vector.shape_cast %154 : vector<1x2x32xf32> to vector<2x32xf32>
    %156 = arith.truncf %155 : vector<2x32xf32> to vector<2x32xbf16>
    %cst_127 = arith.constant dense<0.000000e+00> : vector<2x32xf32>
    %157 = tpu.matmul %156, %13, %cst_127 {dimension_numbers = #tpu.dot_dimension_numbers<[1], [0], [0], [1], [0, 0, 1, 1], [], []>} : vector<2x32xbf16>, vector<32x32xbf16>, vector<2x32xf32> -> vector<2x32xf32>
    %158 = arith.addf %153, %157 : vector<2x32xf32>
    %159 = math.tanh %158 : vector<2x32xf32>
    %c0_128 = arith.constant 0 : index
    %c0_129 = arith.constant 0 : index
    %c0_130 = arith.constant 0 : index
    %160 = vector.load %arg12[%c0_128, %c0_129, %c0_130] : memref<2x2x32xf32, #tpu.memory_space<vmem>>, vector<1x2x32xf32>
    %161 = vector.shape_cast %160 : vector<1x2x32xf32> to vector<2x32xf32>
    %162 = vector.shape_cast %159 : vector<2x32xf32> to vector<1x2x32xf32>
    tpu.vector_store %arg12[%c0_128, %c0_129, %c0_130], %162 {strides = array<i32>} : memref<2x2x32xf32, #tpu.memory_space<vmem>>, vector<1x2x32xf32>,
    %163 = arith.truncf %159 : vector<2x32xf32> to vector<2x32xbf16>
    %cst_131 = arith.constant dense<0.000000e+00> : vector<2x32xf32>
    %164 = tpu.matmul %163, %15, %cst_131 {dimension_numbers = #tpu.dot_dimension_numbers<[1], [0], [0], [1], [0, 0, 1, 1], [], []>} : vector<2x32xbf16>, vector<32x32xbf16>, vector<2x32xf32> -> vector<2x32xf32>
    %c1_132 = arith.constant 1 : index
    %c0_133 = arith.constant 0 : index
    %c0_134 = arith.constant 0 : index
    %165 = vector.load %arg12[%c1_132, %c0_133, %c0_134] : memref<2x2x32xf32, #tpu.memory_space<vmem>>, vector<1x2x32xf32>
    %166 = vector.shape_cast %165 : vector<1x2x32xf32> to vector<2x32xf32>
    %167 = arith.truncf %166 : vector<2x32xf32> to vector<2x32xbf16>
    %cst_135 = arith.constant dense<0.000000e+00> : vector<2x32xf32>
    %168 = tpu.matmul %167, %17, %cst_135 {dimension_numbers = #tpu.dot_dimension_numbers<[1], [0], [0], [1], [0, 0, 1, 1], [], []>} : vector<2x32xbf16>, vector<32x32xbf16>, vector<2x32xf32> -> vector<2x32xf32>
    %169 = arith.addf %164, %168 : vector<2x32xf32>
    %170 = arith.addf %169, %21 : vector<2x32xf32>
    %171 = math.tanh %170 : vector<2x32xf32>
    %c1_136 = arith.constant 1 : index
    %c0_137 = arith.constant 0 : index
    %c0_138 = arith.constant 0 : index
    %172 = vector.load %arg12[%c1_136, %c0_137, %c0_138] : memref<2x2x32xf32, #tpu.memory_space<vmem>>, vector<1x2x32xf32>
    %173 = vector.shape_cast %172 : vector<1x2x32xf32> to vector<2x32xf32>
    %174 = vector.shape_cast %171 : vector<2x32xf32> to vector<1x2x32xf32>
    tpu.vector_store %arg12[%c1_136, %c0_137, %c0_138], %174 {strides = array<i32>} : memref<2x2x32xf32, #tpu.memory_space<vmem>>, vector<1x2x32xf32>,
    %c0_139 = arith.constant 0 : index
    %c5_140 = arith.constant 5 : index
    %c0_141 = arith.constant 0 : index
    %175 = vector.load %arg13[%c0_139, %c5_140, %c0_141] : memref<2x8x32xf32, #tpu.memory_space<vmem>>, vector<2x1x32xf32>
    %176 = vector.shape_cast %175 : vector<2x1x32xf32> to vector<2x32xf32>
    %177 = vector.shape_cast %171 : vector<2x32xf32> to vector<2x1x32xf32>
    tpu.vector_store %arg13[%c0_139, %c5_140, %c0_141], %177 {strides = array<i32>} : memref<2x8x32xf32, #tpu.memory_space<vmem>>, vector<2x1x32xf32>,
    %c0_142 = arith.constant 0 : index
    %c6 = arith.constant 6 : index
    %c0_143 = arith.constant 0 : index
    %178 = vector.load %arg13[%c0_142, %c6, %c0_143] : memref<2x8x32xf32, #tpu.memory_space<vmem>>, vector<2x1x32xf32>
    %179 = vector.shape_cast %178 : vector<2x1x32xf32> to vector<2x32xf32>
    %c0_144 = arith.constant 0 : index
    %c0_145 = arith.constant 0 : index
    %c0_146 = arith.constant 0 : index
    %180 = vector.load %arg12[%c0_144, %c0_145, %c0_146] : memref<2x2x32xf32, #tpu.memory_space<vmem>>, vector<1x2x32xf32>
    %181 = vector.shape_cast %180 : vector<1x2x32xf32> to vector<2x32xf32>
    %182 = arith.truncf %181 : vector<2x32xf32> to vector<2x32xbf16>
    %cst_147 = arith.constant dense<0.000000e+00> : vector<2x32xf32>
    %183 = tpu.matmul %182, %13, %cst_147 {dimension_numbers = #tpu.dot_dimension_numbers<[1], [0], [0], [1], [0, 0, 1, 1], [], []>} : vector<2x32xbf16>, vector<32x32xbf16>, vector<2x32xf32> -> vector<2x32xf32>
    %184 = arith.addf %179, %183 : vector<2x32xf32>
    %185 = math.tanh %184 : vector<2x32xf32>
    %c0_148 = arith.constant 0 : index
    %c0_149 = arith.constant 0 : index
    %c0_150 = arith.constant 0 : index
    %186 = vector.load %arg12[%c0_148, %c0_149, %c0_150] : memref<2x2x32xf32, #tpu.memory_space<vmem>>, vector<1x2x32xf32>
    %187 = vector.shape_cast %186 : vector<1x2x32xf32> to vector<2x32xf32>
    %188 = vector.shape_cast %185 : vector<2x32xf32> to vector<1x2x32xf32>
    tpu.vector_store %arg12[%c0_148, %c0_149, %c0_150], %188 {strides = array<i32>} : memref<2x2x32xf32, #tpu.memory_space<vmem>>, vector<1x2x32xf32>,
    %189 = arith.truncf %185 : vector<2x32xf32> to vector<2x32xbf16>
    %cst_151 = arith.constant dense<0.000000e+00> : vector<2x32xf32>
    %190 = tpu.matmul %189, %15, %cst_151 {dimension_numbers = #tpu.dot_dimension_numbers<[1], [0], [0], [1], [0, 0, 1, 1], [], []>} : vector<2x32xbf16>, vector<32x32xbf16>, vector<2x32xf32> -> vector<2x32xf32>
    %c1_152 = arith.constant 1 : index
    %c0_153 = arith.constant 0 : index
    %c0_154 = arith.constant 0 : index
    %191 = vector.load %arg12[%c1_152, %c0_153, %c0_154] : memref<2x2x32xf32, #tpu.memory_space<vmem>>, vector<1x2x32xf32>
    %192 = vector.shape_cast %191 : vector<1x2x32xf32> to vector<2x32xf32>
    %193 = arith.truncf %192 : vector<2x32xf32> to vector<2x32xbf16>
    %cst_155 = arith.constant dense<0.000000e+00> : vector<2x32xf32>
    %194 = tpu.matmul %193, %17, %cst_155 {dimension_numbers = #tpu.dot_dimension_numbers<[1], [0], [0], [1], [0, 0, 1, 1], [], []>} : vector<2x32xbf16>, vector<32x32xbf16>, vector<2x32xf32> -> vector<2x32xf32>
    %195 = arith.addf %190, %194 : vector<2x32xf32>
    %196 = arith.addf %195, %21 : vector<2x32xf32>
    %197 = math.tanh %196 : vector<2x32xf32>
    %c1_156 = arith.constant 1 : index
    %c0_157 = arith.constant 0 : index
    %c0_158 = arith.constant 0 : index
    %198 = vector.load %arg12[%c1_156, %c0_157, %c0_158] : memref<2x2x32xf32, #tpu.memory_space<vmem>>, vector<1x2x32xf32>
    %199 = vector.shape_cast %198 : vector<1x2x32xf32> to vector<2x32xf32>
    %200 = vector.shape_cast %197 : vector<2x32xf32> to vector<1x2x32xf32>
    tpu.vector_store %arg12[%c1_156, %c0_157, %c0_158], %200 {strides = array<i32>} : memref<2x2x32xf32, #tpu.memory_space<vmem>>, vector<1x2x32xf32>,
    %c0_159 = arith.constant 0 : index
    %c6_160 = arith.constant 6 : index
    %c0_161 = arith.constant 0 : index
    %201 = vector.load %arg13[%c0_159, %c6_160, %c0_161] : memref<2x8x32xf32, #tpu.memory_space<vmem>>, vector<2x1x32xf32>
    %202 = vector.shape_cast %201 : vector<2x1x32xf32> to vector<2x32xf32>
    %203 = vector.shape_cast %197 : vector<2x32xf32> to vector<2x1x32xf32>
    tpu.vector_store %arg13[%c0_159, %c6_160, %c0_161], %203 {strides = array<i32>} : memref<2x8x32xf32, #tpu.memory_space<vmem>>, vector<2x1x32xf32>,
    %c0_162 = arith.constant 0 : index
    %c7 = arith.constant 7 : index
    %c0_163 = arith.constant 0 : index
    %204 = vector.load %arg13[%c0_162, %c7, %c0_163] : memref<2x8x32xf32, #tpu.memory_space<vmem>>, vector<2x1x32xf32>
    %205 = vector.shape_cast %204 : vector<2x1x32xf32> to vector<2x32xf32>
    %c0_164 = arith.constant 0 : index
    %c0_165 = arith.constant 0 : index
    %c0_166 = arith.constant 0 : index
    %206 = vector.load %arg12[%c0_164, %c0_165, %c0_166] : memref<2x2x32xf32, #tpu.memory_space<vmem>>, vector<1x2x32xf32>
    %207 = vector.shape_cast %206 : vector<1x2x32xf32> to vector<2x32xf32>
    %208 = arith.truncf %207 : vector<2x32xf32> to vector<2x32xbf16>
    %cst_167 = arith.constant dense<0.000000e+00> : vector<2x32xf32>
    %209 = tpu.matmul %208, %13, %cst_167 {dimension_numbers = #tpu.dot_dimension_numbers<[1], [0], [0], [1], [0, 0, 1, 1], [], []>} : vector<2x32xbf16>, vector<32x32xbf16>, vector<2x32xf32> -> vector<2x32xf32>
    %210 = arith.addf %205, %209 : vector<2x32xf32>
    %211 = math.tanh %210 : vector<2x32xf32>
    %c0_168 = arith.constant 0 : index
    %c0_169 = arith.constant 0 : index
    %c0_170 = arith.constant 0 : index
    %212 = vector.load %arg12[%c0_168, %c0_169, %c0_170] : memref<2x2x32xf32, #tpu.memory_space<vmem>>, vector<1x2x32xf32>
    %213 = vector.shape_cast %212 : vector<1x2x32xf32> to vector<2x32xf32>
    %214 = vector.shape_cast %211 : vector<2x32xf32> to vector<1x2x32xf32>
    tpu.vector_store %arg12[%c0_168, %c0_169, %c0_170], %214 {strides = array<i32>} : memref<2x2x32xf32, #tpu.memory_space<vmem>>, vector<1x2x32xf32>,
    %215 = arith.truncf %211 : vector<2x32xf32> to vector<2x32xbf16>
    %cst_171 = arith.constant dense<0.000000e+00> : vector<2x32xf32>
    %216 = tpu.matmul %215, %15, %cst_171 {dimension_numbers = #tpu.dot_dimension_numbers<[1], [0], [0], [1], [0, 0, 1, 1], [], []>} : vector<2x32xbf16>, vector<32x32xbf16>, vector<2x32xf32> -> vector<2x32xf32>
    %c1_172 = arith.constant 1 : index
    %c0_173 = arith.constant 0 : index
    %c0_174 = arith.constant 0 : index
    %217 = vector.load %arg12[%c1_172, %c0_173, %c0_174] : memref<2x2x32xf32, #tpu.memory_space<vmem>>, vector<1x2x32xf32>
    %218 = vector.shape_cast %217 : vector<1x2x32xf32> to vector<2x32xf32>
    %219 = arith.truncf %218 : vector<2x32xf32> to vector<2x32xbf16>
    %cst_175 = arith.constant dense<0.000000e+00> : vector<2x32xf32>
    %220 = tpu.matmul %219, %17, %cst_175 {dimension_numbers = #tpu.dot_dimension_numbers<[1], [0], [0], [1], [0, 0, 1, 1], [], []>} : vector<2x32xbf16>, vector<32x32xbf16>, vector<2x32xf32> -> vector<2x32xf32>
    %221 = arith.addf %216, %220 : vector<2x32xf32>
    %222 = arith.addf %221, %21 : vector<2x32xf32>
    %223 = math.tanh %222 : vector<2x32xf32>
    %c1_176 = arith.constant 1 : index
    %c0_177 = arith.constant 0 : index
    %c0_178 = arith.constant 0 : index
    %224 = vector.load %arg12[%c1_176, %c0_177, %c0_178] : memref<2x2x32xf32, #tpu.memory_space<vmem>>, vector<1x2x32xf32>
    %225 = vector.shape_cast %224 : vector<1x2x32xf32> to vector<2x32xf32>
    %226 = vector.shape_cast %223 : vector<2x32xf32> to vector<1x2x32xf32>
    tpu.vector_store %arg12[%c1_176, %c0_177, %c0_178], %226 {strides = array<i32>} : memref<2x2x32xf32, #tpu.memory_space<vmem>>, vector<1x2x32xf32>,
    %c0_179 = arith.constant 0 : index
    %c7_180 = arith.constant 7 : index
    %c0_181 = arith.constant 0 : index
    %227 = vector.load %arg13[%c0_179, %c7_180, %c0_181] : memref<2x8x32xf32, #tpu.memory_space<vmem>>, vector<2x1x32xf32>
    %228 = vector.shape_cast %227 : vector<2x1x32xf32> to vector<2x32xf32>
    %229 = vector.shape_cast %223 : vector<2x32xf32> to vector<2x1x32xf32>
    tpu.vector_store %arg13[%c0_179, %c7_180, %c0_181], %229 {strides = array<i32>} : memref<2x8x32xf32, #tpu.memory_space<vmem>>, vector<2x1x32xf32>,
    %c0_182 = arith.constant 0 : index
    %c0_183 = arith.constant 0 : index
    %c0_184 = arith.constant 0 : index
    %230 = vector.load %arg13[%c0_182, %c0_183, %c0_184] : memref<2x8x32xf32, #tpu.memory_space<vmem>>, vector<2x8x32xf32>
    %231 = arith.truncf %230 : vector<2x8x32xf32> to vector<2x8x32xbf16>
    %232 = vector.shape_cast %231 : vector<2x8x32xbf16> to vector<16x32xbf16>
    %c0_185 = arith.constant 0 : index
    %c0_186 = arith.constant 0 : index
    %233 = vector.load %arg9[%c0_185, %c0_186] : memref<32x32xbf16, #tpu.memory_space<vmem>>, vector<32x32xbf16>
    %cst_187 = arith.constant dense<0.000000e+00> : vector<16x32xf32>
    %234 = tpu.matmul %232, %233, %cst_187 {dimension_numbers = #tpu.dot_dimension_numbers<[1], [0], [0], [1], [0, 0, 1, 1], [], []>} : vector<16x32xbf16>, vector<32x32xbf16>, vector<16x32xf32> -> vector<16x32xf32>
    %c0_188 = arith.constant 0 : index
    %c0_189 = arith.constant 0 : index
    %235 = vector.load %arg10[%c0_188, %c0_189] : memref<1x32xf32, #tpu.memory_space<vmem>>, vector<1x32xf32>
    %236 = vector.broadcast %235 : vector<1x32xf32> to vector<16x32xf32>
    %237 = arith.addf %234, %236 : vector<16x32xf32>
    %238 = vector.shape_cast %237 : vector<16x32xf32> to vector<2x8x32xf32>
    %c0_190 = arith.constant 0 : index
    %c0_191 = arith.constant 0 : index
    %c0_192 = arith.constant 0 : index
    %239 = vector.load %arg11[%c0_190, %c0_191, %c0_192] : memref<2x8x32xf32, #tpu.memory_space<vmem>>, vector<2x8x32xf32>
    tpu.vector_store %arg11[%c0_190, %c0_191, %c0_192], %238 {strides = array<i32>} : memref<2x8x32xf32, #tpu.memory_space<vmem>>, vector<2x8x32xf32>,
    return
  }
  func.func @transform_0(%arg0: i32, %arg1: i32) -> (i32, i32, i32) {
    %c0_i32 = arith.constant 0 : i32
    %c0_i32_0 = arith.constant 0 : i32
    return %arg0, %arg1, %c0_i32 : i32, i32, i32
  }
  func.func @transform_1(%arg0: i32, %arg1: i32) -> (i32, i32) {
    %c0_i32 = arith.constant 0 : i32
    %c0_i32_0 = arith.constant 0 : i32
    %c0_i32_1 = arith.constant 0 : i32
    return %c0_i32, %c0_i32_0 : i32, i32
  }
  func.func @transform_2(%arg0: i32, %arg1: i32) -> (i32, i32) {
    %c0_i32 = arith.constant 0 : i32
    %c0_i32_0 = arith.constant 0 : i32
    %c0_i32_1 = arith.constant 0 : i32
    return %c0_i32, %c0_i32_0 : i32, i32
  }
  func.func @transform_3(%arg0: i32, %arg1: i32) -> (i32, i32) {
    %c0_i32 = arith.constant 0 : i32
    %c0_i32_0 = arith.constant 0 : i32
    %c0_i32_1 = arith.constant 0 : i32
    return %c0_i32, %c0_i32_0 : i32, i32
  }
  func.func @transform_4(%arg0: i32, %arg1: i32) -> (i32, i32, i32) {
    %c0_i32 = arith.constant 0 : i32
    %c0_i32_0 = arith.constant 0 : i32
    %c0_i32_1 = arith.constant 0 : i32
    %c0_i32_2 = arith.constant 0 : i32
    return %c0_i32, %c0_i32_0, %c0_i32_1 : i32, i32, i32
  }
  func.func @transform_5(%arg0: i32, %arg1: i32) -> (i32, i32, i32) {
    %c0_i32 = arith.constant 0 : i32
    %c0_i32_0 = arith.constant 0 : i32
    %c0_i32_1 = arith.constant 0 : i32
    %c0_i32_2 = arith.constant 0 : i32
    return %c0_i32, %c0_i32_0, %c0_i32_1 : i32, i32, i32
  }
  func.func @transform_6(%arg0: i32, %arg1: i32) -> (i32, i32, i32) {
    %c0_i32 = arith.constant 0 : i32
    %c0_i32_0 = arith.constant 0 : i32
    %c0_i32_1 = arith.constant 0 : i32
    %c0_i32_2 = arith.constant 0 : i32
    return %c0_i32, %c0_i32_0, %c0_i32_1 : i32, i32, i32
  }
  func.func @transform_7(%arg0: i32, %arg1: i32) -> (i32, i32) {
    %c0_i32 = arith.constant 0 : i32
    %c0_i32_0 = arith.constant 0 : i32
    %c0_i32_1 = arith.constant 0 : i32
    return %c0_i32, %c0_i32_0 : i32, i32
  }
  func.func @transform_8(%arg0: i32, %arg1: i32) -> (i32, i32) {
    %c0_i32 = arith.constant 0 : i32
    %c0_i32_0 = arith.constant 0 : i32
    %c0_i32_1 = arith.constant 0 : i32
    return %c0_i32, %c0_i32_0 : i32, i32
  }
  func.func @transform_9(%arg0: i32, %arg1: i32) -> (i32, i32, i32) {
    %c0_i32 = arith.constant 0 : i32
    %c0_i32_0 = arith.constant 0 : i32
    return %arg0, %arg1, %c0_i32 : i32, i32, i32
  }
}

</mosaic_0001>

<llo_original>
// kernel: tpu_custom_call.1
$region0: #{tpu_custom_call.1}
  #allocation0 [shape = 'u32[]', space=smem, size = 0x4, offset = 0x4, fixed_abs, tag = 'smem constant byte address 0x4 - core index']
  #allocation1 [shape = 'u32[144,128]{1,0:T(1,128)}', space=vmem, size = 0x12000, scoped, tag = 'internal scratch']
  #allocation2 [shape = 'f32[2,2,32]{2,1,0:T(2,128)}', space=vmem, size = 0x800, scoped, tag = 'scratch operand']
  #allocation3 [shape = 'f32[2,8,32]{2,1,0:T(8,128)}', space=vmem, size = 0x2000, scoped, tag = 'scratch operand']
  %s0 = inlined_call_operand.hbm [shape: f32[2,8,16], index: 0, kind: input, shape index: {}]
  %s1 = inlined_call_operand.hbm [shape: bf16[16,32], index: 1, kind: input, shape index: {}]
  %s2 = inlined_call_operand.hbm [shape: bf16[32,32], index: 2, kind: input, shape index: {}]
  %s3 = inlined_call_operand.vmem [shape: f32[1,32], index: 3, kind: input, shape index: {}]
  %s4 = inlined_call_operand.hbm [shape: bf16[1,32,32], index: 4, kind: input, shape index: {}]
  %s5 = inlined_call_operand.hbm [shape: bf16[1,32,32], index: 5, kind: input, shape index: {}]
  %s6 = inlined_call_operand.vmem [shape: f32[1,1,32], index: 6, kind: input, shape index: {}]
  %s7 = inlined_call_operand.hbm [shape: bf16[32,32], index: 7, kind: input, shape index: {}]
  %s8 = inlined_call_operand.vmem [shape: f32[1,32], index: 8, kind: input, shape index: {}]
  %s9 = inlined_call_operand.hbm [shape: f32[2,8,32], index: 9, kind: output, shape index: {}]
  %s10 = sld [smem:[#allocation0]]
  $region74: #{tpu_custom_call.1} parent=0
    _
  %s12 = ssub.s32 1, %s10
  %s13 = scalar_select 0, %s12, %s10
  $region1: #{tpu_custom_call.1} parent=0
    #allocation4 [shape = 'u8[8192]{0}', space=vmem, size = 0x2000, scoped, tag = 'input window, operand 0, single buffered']
    #allocation5 [shape = 's32[1]{0}', space=sflag, size = 0x4, scoped, tag = 'scoped memory for tpu_custom_call.1']
    #allocation6 [shape = 's32[1]{0}', space=sflag, size = 0x4, scoped, tag = 'scoped memory for tpu_custom_call.1']
    #allocation7 [shape = 'u8[4096]{0}', space=vmem, size = 0x1000, scoped, tag = 'input window, operand 1, single buffered']
    #allocation8 [shape = 's32[1]{0}', space=sflag, size = 0x4, scoped, tag = 'scoped memory for tpu_custom_call.1']
    #allocation9 [shape = 'u8[8192]{0}', space=vmem, size = 0x2000, scoped, tag = 'input window, operand 2, single buffered']
    #allocation10 [shape = 'u8[8192]{0}', space=vmem, size = 0x2000, scoped, tag = 'input window, operand 4, single buffered']
    #allocation11 [shape = 's32[1]{0}', space=sflag, size = 0x4, scoped, tag = 'scoped memory for tpu_custom_call.1']
    #allocation12 [shape = 'u8[8192]{0}', space=vmem, size = 0x2000, scoped, tag = 'input window, operand 5, single buffered']
    #allocation13 [shape = 'u8[8192]{0}', space=vmem, size = 0x2000, scoped, tag = 'input window, operand 7, single buffered']
    #allocation14 [shape = 's32[1]{0}', space=sflag, size = 0x4, scoped, tag = 'scoped memory for tpu_custom_call.1']
    #allocation15 [shape = 'u8[8192]{0}', space=vmem, size = 0x2000, scoped, tag = 'output window, operand 0, single buffered']
    %14 = vsyncpa [#allocation5], 0
    %15 = vsyncpa [#allocation8], 0
    %16 = vsyncpa [#allocation11], 0
    %17 = vsyncpa [#allocation14], 0
    %18 = vsyncpa [#allocation6], 0
    // Predicated region
    $region2: #{tpu_custom_call.1} parent=1 // pred_check
      _
    $region3: #{tpu_custom_call.1} parent=1 // pred_check_branch
      %20 = sbr.rel (0) target = $region5
    $region4: #{tpu_custom_call.1} parent=1 // pred_region
      %s22 = ssub.s32 256, 256
      %23 = vsyncadd [#allocation5], %s22
      %s24 = sshll.u32 [#allocation4], 4
      %s25 = int_to_ptr.vmem [resolvable:$true] %s24
      %30 = dma.hbm_to_vmem [thread:$0]  %s0, 256, %s25, [#allocation5], 128, 128, 8
    $region5: #{tpu_custom_call.1} parent=1 // pred_fallthru
      _
    // Predicated region
    $region6: #{tpu_custom_call.1} parent=1 // pred_check
      _
    $region7: #{tpu_custom_call.1} parent=1 // pred_check_branch
      %32 = sbr.rel (0) target = $region9
    $region8: #{tpu_custom_call.1} parent=1 // pred_region
      %s34 = ssub.s32 128, 128
      %35 = vsyncadd [#allocation8], %s34
      %s36 = sshll.u32 [#allocation7], 4
      %s37 = int_to_ptr.vmem [resolvable:$true] %s36
      %42 = dma.hbm_to_vmem [thread:$0]  %s1, 128, %s37, [#allocation8], 64, 64, 4
    $region9: #{tpu_custom_call.1} parent=1 // pred_fallthru
      _
    // Predicated region
    $region10: #{tpu_custom_call.1} parent=1 // pred_check
      _
    $region11: #{tpu_custom_call.1} parent=1 // pred_check_branch
      %44 = sbr.rel (0) target = $region13
    $region12: #{tpu_custom_call.1} parent=1 // pred_region
      %s46 = ssub.s32 256, 256
      %47 = vsyncadd [#allocation8], %s46
      %s48 = sshll.u32 [#allocation9], 4
      %s49 = int_to_ptr.vmem [resolvable:$true] %s48
      %54 = dma.hbm_to_vmem [thread:$0]  %s2, 256, %s49, [#allocation8], 64, 64, 4
    $region13: #{tpu_custom_call.1} parent=1 // pred_fallthru
      _
    // Predicated region
    $region14: #{tpu_custom_call.1} parent=1 // pred_check
      _
    $region15: #{tpu_custom_call.1} parent=1 // pred_check_branch
      %56 = sbr.rel (0) target = $region17
    $region16: #{tpu_custom_call.1} parent=1 // pred_region
      _
    $region17: #{tpu_custom_call.1} parent=1 // pred_fallthru
      _
    // Predicated region
    $region18: #{tpu_custom_call.1} parent=1 // pred_check
      _
    $region19: #{tpu_custom_call.1} parent=1 // pred_check_branch
      %58 = sbr.rel (0) target = $region21
    $region20: #{tpu_custom_call.1} parent=1 // pred_region
      %s60 = ssub.s32 256, 256
      %61 = vsyncadd [#allocation11], %s60
      %s62 = sshll.u32 [#allocation10], 4
      %s63 = int_to_ptr.vmem [resolvable:$true] %s62
      %68 = dma.hbm_to_vmem [thread:$0]  %s4, 256, %s63, [#allocation11], 64, 64, 4
    $region21: #{tpu_custom_call.1} parent=1 // pred_fallthru
      _
    // Predicated region
    $region22: #{tpu_custom_call.1} parent=1 // pred_check
      _
    $region23: #{tpu_custom_call.1} parent=1 // pred_check_branch
      %70 = sbr.rel (0) target = $region25
    $region24: #{tpu_custom_call.1} parent=1 // pred_region
      %s72 = ssub.s32 256, 256
      %73 = vsyncadd [#allocation11], %s72
      %s74 = sshll.u32 [#allocation12], 4
      %s75 = int_to_ptr.vmem [resolvable:$true] %s74
      %80 = dma.hbm_to_vmem [thread:$0]  %s5, 256, %s75, [#allocation11], 64, 64, 4
    $region25: #{tpu_custom_call.1} parent=1 // pred_fallthru
      _
    // Predicated region
    $region26: #{tpu_custom_call.1} parent=1 // pred_check
      _
    $region27: #{tpu_custom_call.1} parent=1 // pred_check_branch
      %82 = sbr.rel (0) target = $region29
    $region28: #{tpu_custom_call.1} parent=1 // pred_region
      _
    $region29: #{tpu_custom_call.1} parent=1 // pred_fallthru
      _
    // Predicated region
    $region30: #{tpu_custom_call.1} parent=1 // pred_check
      _
    $region31: #{tpu_custom_call.1} parent=1 // pred_check_branch
      %84 = sbr.rel (0) target = $region33
    $region32: #{tpu_custom_call.1} parent=1 // pred_region
      %s86 = ssub.s32 256, 256
      %87 = vsyncadd [#allocation14], %s86
      %s88 = sshll.u32 [#allocation13], 4
      %s89 = int_to_ptr.vmem [resolvable:$true] %s88
      %94 = dma.hbm_to_vmem [thread:$0]  %s7, 256, %s89, [#allocation14], 64, 64, 4
    $region33: #{tpu_custom_call.1} parent=1 // pred_fallthru
      _
    // Predicated region
    $region34: #{tpu_custom_call.1} parent=1 // pred_check
      _
    $region35: #{tpu_custom_call.1} parent=1 // pred_check_branch
      %96 = sbr.rel (0) target = $region37
    $region36: #{tpu_custom_call.1} parent=1 // pred_region
      _
    $region37: #{tpu_custom_call.1} parent=1 // pred_fallthru
      _
    // Predicated region
    $region38: #{tpu_custom_call.1} parent=1 // pred_check
      _
    $region39: #{tpu_custom_call.1} parent=1 // pred_check_branch
      %98 = sbr.rel (0) target = $region41
    $region40: #{tpu_custom_call.1} parent=1 // pred_region
      %99 = dma.done [#allocation5], 256
    $region41: #{tpu_custom_call.1} parent=1 // pred_fallthru
      _
    // Predicated region
    $region42: #{tpu_custom_call.1} parent=1 // pred_check
      _
    $region43: #{tpu_custom_call.1} parent=1 // pred_check_branch
      %101 = sbr.rel (0) target = $region45
    $region44: #{tpu_custom_call.1} parent=1 // pred_region
      %102 = dma.done [#allocation8], 128
    $region45: #{tpu_custom_call.1} parent=1 // pred_fallthru
      _
    // Predicated region
    $region46: #{tpu_custom_call.1} parent=1 // pred_check
      _
    $region47: #{tpu_custom_call.1} parent=1 // pred_check_branch
      %104 = sbr.rel (0) target = $region49
    $region48: #{tpu_custom_call.1} parent=1 // pred_region
      %105 = dma.done [#allocation8], 256
    $region49: #{tpu_custom_call.1} parent=1 // pred_fallthru
      _
    // Predicated region
    $region50: #{tpu_custom_call.1} parent=1 // pred_check
      _
    $region51: #{tpu_custom_call.1} parent=1 // pred_check_branch
      %107 = sbr.rel (0) target = $region53
    $region52: #{tpu_custom_call.1} parent=1 // pred_region
      %108 = dma.done [#allocation11], 256
    $region53: #{tpu_custom_call.1} parent=1 // pred_fallthru
      _
    // Predicated region
    $region54: #{tpu_custom_call.1} parent=1 // pred_check
      _
    $region55: #{tpu_custom_call.1} parent=1 // pred_check_branch
      %110 = sbr.rel (0) target = $region57
    $region56: #{tpu_custom_call.1} parent=1 // pred_region
      %111 = dma.done [#allocation11], 256
    $region57: #{tpu_custom_call.1} parent=1 // pred_fallthru
      _
    // Predicated region
    $region58: #{tpu_custom_call.1} parent=1 // pred_check
      _
    $region59: #{tpu_custom_call.1} parent=1 // pred_check_branch
      %113 = sbr.rel (0) target = $region61
    $region60: #{tpu_custom_call.1} parent=1 // pred_region
      %114 = dma.done [#allocation14], 256
    $region61: #{tpu_custom_call.1} parent=1 // pred_fallthru
      _
    %p116 = scmp.eq.s32.totalorder 0, 0
    // Predicated region
    $region62: #{tpu_custom_call.1} parent=1 // pred_check
      %p117 = pneg %p116
    $region63: #{tpu_custom_call.1} parent=1 // pred_check_branch
      %119 = sbr.rel (%p117) target = $region65
    $region64: #{tpu_custom_call.1} parent=1 // pred_region
      %vm120 = vcmask 254976
      %121 = vst.msk [vmem:[#allocation2] sm:$0x3] %vm120, 0.0
      %122 = vst.msk [vmem:[#allocation2 + $0x2] sm:$0x3] %vm120, 0.0
    $region65: #{tpu_custom_call.1} parent=1 // pred_fallthru
      _
    %v123 = vld [vmem:[#allocation4] sm:$0xff]
    %v124 = vld [vmem:[#allocation4 + $0x8] sm:$0xff]
    %v125 = vpack.c.bf16 %v123, %v123
    %v126 = vpack.c.bf16 %v124, %v124
    %v127 = vld [vmem:[#allocation7] sm:$0xf]
    %v128 = vld [vmem:[#allocation7 + $0x4] sm:$0xf]
    %v129 = vld [vmem:[%s3] sm:$0x1]
    %v131 = vlaneseq
    %v132 = vshrl.u32 %v131, 7
    %v133 = vsub.s32 0, %v132
    %v134 = vrot.slane %v129, %v133
    %v138 = vunpack.c.l.b16 %v125
    %v139 = vunpack.c.l.b16 %v126
    %v140 = vpack.c.b16 %v139, %v138
    %v143 = vunpack.c.l.b16 %v127
    %v144 = vunpack.c.l.b16 %v128
    %v145 = vpack.c.b16 %v144, %v143
    %vm147 = vcmask 130048
    %v149 = vsel %vm147, %v140, 0
    %151 = vmatprep.subr.bf16.mxu0 0
    %152 = vmatpush1.bf16.msra.mxu0 0
    %153 = vmatprep.subr.bf16.mxu0 0
    %154 = vmatpush1.bf16.msra.mxu0 0
    %155 = vmatprep.subr.bf16.mxu0 0
    %156 = vmatpush1.bf16.msra.mxu0 0
    %157 = vmatprep.subr.bf16.mxu0 0
    %158 = vmatpush1.bf16.msra.mxu0 0
    %159 = vmatprep.subr.bf16.mxu0 0
    %160 = vmatpush1.bf16.msra.mxu0 0
    %161 = vmatprep.subr.bf16.mxu0 0
    %162 = vmatpush1.bf16.msra.mxu0 0
    %163 = vmatprep.subr.bf16.mxu0 0
    %164 = vmatpush1.bf16.msra.mxu0 0
    %165 = vmatprep.subr.bf16.mxu0 0
    %166 = vmatpush1.bf16.msra.mxu0 %v145
    %167 = vmatprep.subr.bf16.mxu0 0
    %168 = vmatpush2.bf16.msra.mxu0 0
    %169 = vmatprep.subr.bf16.mxu0 0
    %170 = vmatpush2.bf16.msra.mxu0 0
    %171 = vmatprep.subr.bf16.mxu0 0
    %172 = vmatpush2.bf16.msra.mxu0 0
    %173 = vmatprep.subr.bf16.mxu0 0
    %174 = vmatpush2.bf16.msra.mxu0 0
    %175 = vmatprep.subr.bf16.mxu0 0
    %176 = vmatpush2.bf16.msra.mxu0 0
    %177 = vmatprep.subr.bf16.mxu0 0
    %178 = vmatpush2.bf16.msra.mxu0 0
    %179 = vmatprep.subr.bf16.mxu0 0
    %180 = vmatpush2.bf16.msra.mxu0 0
    %181 = vmatprep.subr.bf16.mxu0 0
    %182 = vmatpush2.bf16.msra.mxu0 0
    %183 = vmatprep.mubr.bf16.mxu0 0
    %184 = vmatmul.mubr.bf16.gmra.mxu0 %v149
    %v185 = vpop.f32.mrf.mxu0
    %v186 = vadd.f32 %v134, %v185
    %v187 = vpop.f32.mrf.mxu0
    %v188 = vpop.f32.mrf.mxu0
    %v189 = vadd.f32 %v134, %v188
    %v190 = vpop.f32.mrf.mxu0
    %191 = vdwg.mxu0
    %vm192 = vcmask 261120
    %193 = vst.msk [vmem:[#allocation3] sm:$0xff] %vm192, %v186
    %194 = vst.msk [vmem:[#allocation3 + $0x8] sm:$0xff] %vm192, %v189
    %v195 = vld [vmem:[#allocation9] sm:$0xf]
    %v196 = vld [vmem:[#allocation9 + $0x4] sm:$0xf]
    %v197 = vld [vmem:[#allocation9 + $0x8] sm:$0xf]
    %v198 = vld [vmem:[#allocation9 + $0xc] sm:$0xf]
    %v199 = vld [vmem:[#allocation10] sm:$0xf]
    %v200 = vld [vmem:[#allocation10 + $0x4] sm:$0xf]
    %v201 = vld [vmem:[#allocation10 + $0x8] sm:$0xf]
    %v202 = vld [vmem:[#allocation10 + $0xc] sm:$0xf]
    %v203 = vld [vmem:[#allocation12] sm:$0xf]
    %v204 = vld [vmem:[#allocation12 + $0x4] sm:$0xf]
    %v205 = vld [vmem:[#allocation12 + $0x8] sm:$0xf]
    %v206 = vld [vmem:[#allocation12 + $0xc] sm:$0xf]
    %v207 = vld [vmem:[%s6] sm:$0x1]
    %v209 = vlaneseq
    %v210 = vshrl.u32 %v209, 7
    %v211 = vsub.s32 0, %v210
    %v212 = vrot.slane %v207, %v211
    %v214 = vld [vmem:[#allocation3] sm:$0x1]
    %v215 = vld [vmem:[#allocation3 + $0x8] sm:$0x1]
    %v216 = vld [vmem:[#allocation2] sm:$0x3]
    %v217 = vpack.c.bf16 %v216, %v216
    %v222 = vunpack.c.l.b16 %v195
    %v223 = vunpack.c.l.b16 %v196
    %v224 = vunpack.c.l.b16 %v197
    %v225 = vunpack.c.l.b16 %v198
    %v226 = vpack.c.b16 %v223, %v222
    %v227 = vpack.c.b16 %v225, %v224
    %v231 = vsel %vm192, %v217, 0
    %233 = vmatprep.subr.bf16.mxu0 0
    %234 = vmatpush1.bf16.msra.mxu0 0
    %235 = vmatprep.subr.bf16.mxu0 0
    %236 = vmatpush1.bf16.msra.mxu0 0
    %237 = vmatprep.subr.bf16.mxu0 0
    %238 = vmatpush1.bf16.msra.mxu0 0
    %239 = vmatprep.subr.bf16.mxu0 0
    %240 = vmatpush1.bf16.msra.mxu0 0
    %241 = vmatprep.subr.bf16.mxu0 0
    %242 = vmatpush1.bf16.msra.mxu0 0
    %243 = vmatprep.subr.bf16.mxu0 0
    %244 = vmatpush1.bf16.msra.mxu0 0
    %245 = vmatprep.subr.bf16.mxu0 0
    %246 = vmatpush1.bf16.msra.mxu0 %v227
    %247 = vmatprep.subr.bf16.mxu0 0
    %248 = vmatpush1.bf16.msra.mxu0 %v226
    %249 = vmatprep.subr.bf16.mxu0 0
    %250 = vmatpush2.bf16.msra.mxu0 0
    %251 = vmatprep.subr.bf16.mxu0 0
    %252 = vmatpush2.bf16.msra.mxu0 0
    %253 = vmatprep.subr.bf16.mxu0 0
    %254 = vmatpush2.bf16.msra.mxu0 0
    %255 = vmatprep.subr.bf16.mxu0 0
    %256 = vmatpush2.bf16.msra.mxu0 0
    %257 = vmatprep.subr.bf16.mxu0 0
    %258 = vmatpush2.bf16.msra.mxu0 0
    %259 = vmatprep.subr.bf16.mxu0 0
    %260 = vmatpush2.bf16.msra.mxu0 0
    %261 = vmatprep.subr.bf16.mxu0 0
    %262 = vmatpush2.bf16.msra.mxu0 0
    %263 = vmatprep.subr.bf16.mxu0 0
    %264 = vmatpush2.bf16.msra.mxu0 0
    %265 = vmatprep.mubr.bf16.mxu0 0
    %266 = vmatmul.mubr.bf16.gmra.mxu0 %v231
    %v267 = vpop.f32.mrf.mxu0
    %v268 = vadd.f32 0.0, %v267
    %v269 = vpop.f32.mrf.mxu0
    %v270 = vpop.f32.mrf.mxu0
    %v271 = vpop.f32.mrf.mxu0
    %272 = vdwg.mxu0
    %v274 = vrot.slane %v268, 1
    %v277 = vadd.f32 %v214, %v268
    %v278 = vadd.f32 %v215, %v274
    %v279 = vtanh.pop %v277
    %v280 = vtanh.pop %v278
    %v283 = vrot.slane %v280, 7
    %vm284 = vcmask 1041409
    %v285 = vsel %vm284, %v283, %v279
    %vm287 = vcmask 254976
    %288 = vst.msk [vmem:[#allocation2] sm:$0x3] %vm287, %v285
    %v289 = vpack.c.bf16 %v279, %v279
    %v290 = vpack.c.bf16 %v280, %v280
    %s291 = scalar_lea.vmem [#allocation2], 2
    %v292 = vld [vmem:[%s291] sm:$0x3]
    %v293 = vpack.c.bf16 %v292, %v292
    %v298 = vunpack.c.l.b16 %v203
    %v299 = vunpack.c.l.b16 %v204
    %v300 = vunpack.c.l.b16 %v205
    %v301 = vunpack.c.l.b16 %v206
    %v302 = vpack.c.b16 %v299, %v298
    %v303 = vpack.c.b16 %v301, %v300
    %v307 = vsel %vm192, %v293, 0
    %309 = vmatprep.subr.bf16.mxu0 0
    %310 = vmatpush1.bf16.msra.mxu0 0
    %311 = vmatprep.subr.bf16.mxu0 0
    %312 = vmatpush1.bf16.msra.mxu0 0
    %313 = vmatprep.subr.bf16.mxu0 0
    %314 = vmatpush1.bf16.msra.mxu0 0
    %315 = vmatprep.subr.bf16.mxu0 0
    %316 = vmatpush1.bf16.msra.mxu0 0
    %317 = vmatprep.subr.bf16.mxu0 0
    %318 = vmatpush1.bf16.msra.mxu0 0
    %319 = vmatprep.subr.bf16.mxu0 0
    %320 = vmatpush1.bf16.msra.mxu0 0
    %321 = vmatprep.subr.bf16.mxu0 0
    %322 = vmatpush1.bf16.msra.mxu0 %v303
    %323 = vmatprep.subr.bf16.mxu0 0
    %324 = vmatpush1.bf16.msra.mxu0 %v302
    %325 = vmatprep.subr.bf16.mxu0 0
    %326 = vmatpush2.bf16.msra.mxu0 0
    %327 = vmatprep.subr.bf16.mxu0 0
    %328 = vmatpush2.bf16.msra.mxu0 0
    %329 = vmatprep.subr.bf16.mxu0 0
    %330 = vmatpush2.bf16.msra.mxu0 0
    %331 = vmatprep.subr.bf16.mxu0 0
    %332 = vmatpush2.bf16.msra.mxu0 0
    %333 = vmatprep.subr.bf16.mxu0 0
    %334 = vmatpush2.bf16.msra.mxu0 0
    %335 = vmatprep.subr.bf16.mxu0 0
    %336 = vmatpush2.bf16.msra.mxu0 0
    %337 = vmatprep.subr.bf16.mxu0 0
    %338 = vmatpush2.bf16.msra.mxu0 0
    %339 = vmatprep.subr.bf16.mxu0 0
    %340 = vmatpush2.bf16.msra.mxu0 0
    %341 = vmatprep.mubr.bf16.mxu0 0
    %342 = vmatmul.mubr.bf16.gmra.mxu0 %v307
    %v343 = vpop.f32.mrf.mxu0
    %v344 = vadd.f32 0.0, %v343
    %v345 = vpop.f32.mrf.mxu0
    %v346 = vpop.f32.mrf.mxu0
    %v347 = vpop.f32.mrf.mxu0
    %348 = vdwg.mxu0
    %v351 = vunpack.c.l.b16 %v289
    %v352 = vunpack.c.l.b16 %v290
    %v353 = vrot.slane %v352, 7
    %v354 = vsel %vm284, %v353, %v351
    %v355 = vpack.c.b16 %v354, %v354
    %v360 = vunpack.c.l.b16 %v199
    %v361 = vunpack.c.l.b16 %v200
    %v362 = vunpack.c.l.b16 %v201
    %v363 = vunpack.c.l.b16 %v202
    %v364 = vpack.c.b16 %v361, %v360
    %v365 = vpack.c.b16 %v363, %v362
    %v369 = vsel %vm192, %v355, 0
    %371 = vmatprep.subr.bf16.mxu0 0
    %372 = vmatpush1.bf16.msra.mxu0 0
    %373 = vmatprep.subr.bf16.mxu0 0
    %374 = vmatpush1.bf16.msra.mxu0 0
    %375 = vmatprep.subr.bf16.mxu0 0
    %376 = vmatpush1.bf16.msra.mxu0 0
    %377 = vmatprep.subr.bf16.mxu0 0
    %378 = vmatpush1.bf16.msra.mxu0 0
    %379 = vmatprep.subr.bf16.mxu0 0
    %380 = vmatpush1.bf16.msra.mxu0 0
    %381 = vmatprep.subr.bf16.mxu0 0
    %382 = vmatpush1.bf16.msra.mxu0 0
    %383 = vmatprep.subr.bf16.mxu0 0
    %384 = vmatpush1.bf16.msra.mxu0 %v365
    %385 = vmatprep.subr.bf16.mxu0 0
    %386 = vmatpush1.bf16.msra.mxu0 %v364
    %387 = vmatprep.subr.bf16.mxu0 0
    %388 = vmatpush2.bf16.msra.mxu0 0
    %389 = vmatprep.subr.bf16.mxu0 0
    %390 = vmatpush2.bf16.msra.mxu0 0
    %391 = vmatprep.subr.bf16.mxu0 0
    %392 = vmatpush2.bf16.msra.mxu0 0
    %393 = vmatprep.subr.bf16.mxu0 0
    %394 = vmatpush2.bf16.msra.mxu0 0
    %395 = vmatprep.subr.bf16.mxu0 0
    %396 = vmatpush2.bf16.msra.mxu0 0
    %397 = vmatprep.subr.bf16.mxu0 0
    %398 = vmatpush2.bf16.msra.mxu0 0
    %399 = vmatprep.subr.bf16.mxu0 0
    %400 = vmatpush2.bf16.msra.mxu0 0
    %401 = vmatprep.subr.bf16.mxu0 0
    %402 = vmatpush2.bf16.msra.mxu0 0
    %403 = vmatprep.mubr.bf16.mxu0 0
    %404 = vmatmul.mubr.bf16.gmra.mxu0 %v369
    %v405 = vpop.f32.mrf.mxu0
    %v406 = vadd.f32 %v344, %v405
    %v407 = vpop.f32.mrf.mxu0
    %v408 = vpop.f32.mrf.mxu0
    %v409 = vpop.f32.mrf.mxu0
    %410 = vdwg.mxu0
    %v411 = vadd.f32 %v406, %v212
    %v412 = vtanh.pop %v411
    %413 = vst.msk [vmem:[%s291] sm:$0x3] %vm287, %v412
    %v416 = vunpack.c.l.s4 1966171168
    %v417 = vunpack.c.0.s8 %v416
    %v418 = vlaneseq
    %v419 = vshrl.u32 %v418, 7
    %v420 = vsub.s32 %v417, %v419
    %v421 = vrot.slane %v412, %v420
    %v422 = vcombine.high %v421, %v421
    %v424 = vunpack.c.l.s4 1966171168
    %v425 = vunpack.c.0.s8 %v424
    %v426 = vlaneseq
    %v427 = vshrl.u32 %v426, 7
    %v428 = vsub.s32 %v425, %v427
    %v429 = vrot.slane %v421, %v428
    %v431 = vunpack.c.l.s4 1966171168
    %v432 = vunpack.c.0.s8 %v431
    %v433 = vlaneseq
    %v434 = vshrl.u32 %v433, 7
    %v435 = vsub.s32 %v432, %v434
    %v436 = vrot.slane %v422, %v435
    %vm439 = vcmask 253952
    %440 = vst.msk [vmem:[#allocation3] sm:$0x1] %vm439, %v429
    %441 = vst.msk [vmem:[#allocation3 + $0x8] sm:$0x1] %vm439, %v436
    %v442 = vld [vmem:[#allocation3 + $0x1] sm:$0x1]
    %v443 = vld [vmem:[#allocation3 + $0x9] sm:$0x1]
    %v444 = vld [vmem:[#allocation2] sm:$0x3]
    %v445 = vpack.c.bf16 %v444, %v444
    %v447 = vsel %vm192, %v445, 0
    %449 = vmatprep.subr.bf16.mxu0 0
    %450 = vmatpush1.bf16.msra.mxu0 0
    %451 = vmatprep.subr.bf16.mxu0 0
    %452 = vmatpush1.bf16.msra.mxu0 0
    %453 = vmatprep.subr.bf16.mxu0 0
    %454 = vmatpush1.bf16.msra.mxu0 0
    %455 = vmatprep.subr.bf16.mxu0 0
    %456 = vmatpush1.bf16.msra.mxu0 0
    %457 = vmatprep.subr.bf16.mxu0 0
    %458 = vmatpush1.bf16.msra.mxu0 0
    %459 = vmatprep.subr.bf16.mxu0 0
    %460 = vmatpush1.bf16.msra.mxu0 0
    %461 = vmatprep.subr.bf16.mxu0 0
    %462 = vmatpush1.bf16.msra.mxu0 %v227
    %463 = vmatprep.subr.bf16.mxu0 0
    %464 = vmatpush1.bf16.msra.mxu0 %v226
    %465 = vmatprep.subr.bf16.mxu0 0
    %466 = vmatpush2.bf16.msra.mxu0 0
    %467 = vmatprep.subr.bf16.mxu0 0
    %468 = vmatpush2.bf16.msra.mxu0 0
    %469 = vmatprep.subr.bf16.mxu0 0
    %470 = vmatpush2.bf16.msra.mxu0 0
    %471 = vmatprep.subr.bf16.mxu0 0
    %472 = vmatpush2.bf16.msra.mxu0 0
    %473 = vmatprep.subr.bf16.mxu0 0
    %474 = vmatpush2.bf16.msra.mxu0 0
    %475 = vmatprep.subr.bf16.mxu0 0
    %476 = vmatpush2.bf16.msra.mxu0 0
    %477 = vmatprep.subr.bf16.mxu0 0
    %478 = vmatpush2.bf16.msra.mxu0 0
    %479 = vmatprep.subr.bf16.mxu0 0
    %480 = vmatpush2.bf16.msra.mxu0 0
    %481 = vmatprep.mubr.bf16.mxu0 0
    %482 = vmatmul.mubr.bf16.gmra.mxu0 %v447
    %v483 = vpop.f32.mrf.mxu0
    %v484 = vadd.f32 0.0, %v483
    %v485 = vpop.f32.mrf.mxu0
    %v486 = vpop.f32.mrf.mxu0
    %v487 = vpop.f32.mrf.mxu0
    %488 = vdwg.mxu0
    %v490 = vrot.slane %v484, 1
    %v493 = vadd.f32 %v442, %v484
    %v494 = vadd.f32 %v443, %v490
    %v495 = vtanh.pop %v493
    %v496 = vtanh.pop %v494
    %v499 = vrot.slane %v496, 7
    %v500 = vsel %vm284, %v499, %v495
    %502 = vst.msk [vmem:[#allocation2] sm:$0x3] %vm287, %v500
    %v503 = vpack.c.bf16 %v495, %v495
    %v504 = vpack.c.bf16 %v496, %v496
    %v505 = vld [vmem:[%s291] sm:$0x3]
    %v506 = vpack.c.bf16 %v505, %v505
    %v508 = vsel %vm192, %v506, 0
    %510 = vmatprep.subr.bf16.mxu0 0
    %511 = vmatpush1.bf16.msra.mxu0 0
    %512 = vmatprep.subr.bf16.mxu0 0
    %513 = vmatpush1.bf16.msra.mxu0 0
    %514 = vmatprep.subr.bf16.mxu0 0
    %515 = vmatpush1.bf16.msra.mxu0 0
    %516 = vmatprep.subr.bf16.mxu0 0
    %517 = vmatpush1.bf16.msra.mxu0 0
    %518 = vmatprep.subr.bf16.mxu0 0
    %519 = vmatpush1.bf16.msra.mxu0 0
    %520 = vmatprep.subr.bf16.mxu0 0
    %521 = vmatpush1.bf16.msra.mxu0 0
    %522 = vmatprep.subr.bf16.mxu0 0
    %523 = vmatpush1.bf16.msra.mxu0 %v303
    %524 = vmatprep.subr.bf16.mxu0 0
    %525 = vmatpush1.bf16.msra.mxu0 %v302
    %526 = vmatprep.subr.bf16.mxu0 0
    %527 = vmatpush2.bf16.msra.mxu0 0
    %528 = vmatprep.subr.bf16.mxu0 0
    %529 = vmatpush2.bf16.msra.mxu0 0
    %530 = vmatprep.subr.bf16.mxu0 0
    %531 = vmatpush2.bf16.msra.mxu0 0
    %532 = vmatprep.subr.bf16.mxu0 0
    %533 = vmatpush2.bf16.msra.mxu0 0
    %534 = vmatprep.subr.bf16.mxu0 0
    %535 = vmatpush2.bf16.msra.mxu0 0
    %536 = vmatprep.subr.bf16.mxu0 0
    %537 = vmatpush2.bf16.msra.mxu0 0
    %538 = vmatprep.subr.bf16.mxu0 0
    %539 = vmatpush2.bf16.msra.mxu0 0
    %540 = vmatprep.subr.bf16.mxu0 0
    %541 = vmatpush2.bf16.msra.mxu0 0
    %542 = vmatprep.mubr.bf16.mxu0 0
    %543 = vmatmul.mubr.bf16.gmra.mxu0 %v508
    %v544 = vpop.f32.mrf.mxu0
    %v545 = vadd.f32 0.0, %v544
    %v546 = vpop.f32.mrf.mxu0
    %v547 = vpop.f32.mrf.mxu0
    %v548 = vpop.f32.mrf.mxu0
    %549 = vdwg.mxu0
    %v552 = vunpack.c.l.b16 %v503
    %v553 = vunpack.c.l.b16 %v504
    %v554 = vrot.slane %v553, 7
    %v555 = vsel %vm284, %v554, %v552
    %v556 = vpack.c.b16 %v555, %v555
    %v558 = vsel %vm192, %v556, 0
    %560 = vmatprep.subr.bf16.mxu0 0
    %561 = vmatpush1.bf16.msra.mxu0 0
    %562 = vmatprep.subr.bf16.mxu0 0
    %563 = vmatpush1.bf16.msra.mxu0 0
    %564 = vmatprep.subr.bf16.mxu0 0
    %565 = vmatpush1.bf16.msra.mxu0 0
    %566 = vmatprep.subr.bf16.mxu0 0
    %567 = vmatpush1.bf16.msra.mxu0 0
    %568 = vmatprep.subr.bf16.mxu0 0
    %569 = vmatpush1.bf16.msra.mxu0 0
    %570 = vmatprep.subr.bf16.mxu0 0
    %571 = vmatpush1.bf16.msra.mxu0 0
    %572 = vmatprep.subr.bf16.mxu0 0
    %573 = vmatpush1.bf16.msra.mxu0 %v365
    %574 = vmatprep.subr.bf16.mxu0 0
    %575 = vmatpush1.bf16.msra.mxu0 %v364
    %576 = vmatprep.subr.bf16.mxu0 0
    %577 = vmatpush2.bf16.msra.mxu0 0
    %578 = vmatprep.subr.bf16.mxu0 0
    %579 = vmatpush2.bf16.msra.mxu0 0
    %580 = vmatprep.subr.bf16.mxu0 0
    %581 = vmatpush2.bf16.msra.mxu0 0
    %582 = vmatprep.subr.bf16.mxu0 0
    %583 = vmatpush2.bf16.msra.mxu0 0
    %584 = vmatprep.subr.bf16.mxu0 0
    %585 = vmatpush2.bf16.msra.mxu0 0
    %586 = vmatprep.subr.bf16.mxu0 0
    %587 = vmatpush2.bf16.msra.mxu0 0
    %588 = vmatprep.subr.bf16.mxu0 0
    %589 = vmatpush2.bf16.msra.mxu0 0
    %590 = vmatprep.subr.bf16.mxu0 0
    %591 = vmatpush2.bf16.msra.mxu0 0
    %592 = vmatprep.mubr.bf16.mxu0 0
    %593 = vmatmul.mubr.bf16.gmra.mxu0 %v558
    %v594 = vpop.f32.mrf.mxu0
    %v595 = vadd.f32 %v545, %v594
    %v596 = vpop.f32.mrf.mxu0
    %v597 = vpop.f32.mrf.mxu0
    %v598 = vpop.f32.mrf.mxu0
    %599 = vdwg.mxu0
    %v600 = vadd.f32 %v595, %v212
    %v601 = vtanh.pop %v600
    %602 = vst.msk [vmem:[%s291] sm:$0x3] %vm287, %v601
    %v605 = vunpack.c.l.s4 1966171168
    %v606 = vunpack.c.0.s8 %v605
    %v607 = vlaneseq
    %v608 = vshrl.u32 %v607, 7
    %v609 = vsub.s32 %v606, %v608
    %v610 = vrot.slane %v601, %v609
    %v611 = vcombine.high %v610, %v610
    %v613 = vunpack.c.l.s4 1966171168
    %v614 = vunpack.c.0.s8 %v613
    %v615 = vlaneseq
    %v616 = vshrl.u32 %v615, 7
    %v617 = vsub.s32 %v614, %v616
    %v618 = vrot.slane %v610, %v617
    %v620 = vunpack.c.l.s4 1966171168
    %v621 = vunpack.c.0.s8 %v620
    %v622 = vlaneseq
    %v623 = vshrl.u32 %v622, 7
    %v624 = vsub.s32 %v621, %v623
    %v625 = vrot.slane %v611, %v624
    %628 = vst.msk [vmem:[#allocation3 + $0x1] sm:$0x1] %vm439, %v618
    %629 = vst.msk [vmem:[#allocation3 + $0x9] sm:$0x1] %vm439, %v625
    %v630 = vld [vmem:[#allocation3 + $0x2] sm:$0x1]
    %v631 = vld [vmem:[#allocation3 + $0xa] sm:$0x1]
    %v632 = vld [vmem:[#allocation2] sm:$0x3]
    %v633 = vpack.c.bf16 %v632, %v632
    %v635 = vsel %vm192, %v633, 0
    %637 = vmatprep.subr.bf16.mxu0 0
    %638 = vmatpush1.bf16.msra.mxu0 0
    %639 = vmatprep.subr.bf16.mxu0 0
    %640 = vmatpush1.bf16.msra.mxu0 0
    %641 = vmatprep.subr.bf16.mxu0 0
    %642 = vmatpush1.bf16.msra.mxu0 0
    %643 = vmatprep.subr.bf16.mxu0 0
    %644 = vmatpush1.bf16.msra.mxu0 0
    %645 = vmatprep.subr.bf16.mxu0 0
    %646 = vmatpush1.bf16.msra.mxu0 0
    %647 = vmatprep.subr.bf16.mxu0 0
    %648 = vmatpush1.bf16.msra.mxu0 0
    %649 = vmatprep.subr.bf16.mxu0 0
    %650 = vmatpush1.bf16.msra.mxu0 %v227
    %651 = vmatprep.subr.bf16.mxu0 0
    %652 = vmatpush1.bf16.msra.mxu0 %v226
    %653 = vmatprep.subr.bf16.mxu0 0
    %654 = vmatpush2.bf16.msra.mxu0 0
    %655 = vmatprep.subr.bf16.mxu0 0
    %656 = vmatpush2.bf16.msra.mxu0 0
    %657 = vmatprep.subr.bf16.mxu0 0
    %658 = vmatpush2.bf16.msra.mxu0 0
    %659 = vmatprep.subr.bf16.mxu0 0
    %660 = vmatpush2.bf16.msra.mxu0 0
    %661 = vmatprep.subr.bf16.mxu0 0
    %662 = vmatpush2.bf16.msra.mxu0 0
    %663 = vmatprep.subr.bf16.mxu0 0
    %664 = vmatpush2.bf16.msra.mxu0 0
    %665 = vmatprep.subr.bf16.mxu0 0
    %666 = vmatpush2.bf16.msra.mxu0 0
    %667 = vmatprep.subr.bf16.mxu0 0
    %668 = vmatpush2.bf16.msra.mxu0 0
    %669 = vmatprep.mubr.bf16.mxu0 0
    %670 = vmatmul.mubr.bf16.gmra.mxu0 %v635
    %v671 = vpop.f32.mrf.mxu0
    %v672 = vadd.f32 0.0, %v671
    %v673 = vpop.f32.mrf.mxu0
    %v674 = vpop.f32.mrf.mxu0
    %v675 = vpop.f32.mrf.mxu0
    %676 = vdwg.mxu0
    %v678 = vrot.slane %v672, 1
    %v681 = vadd.f32 %v630, %v672
    %v682 = vadd.f32 %v631, %v678
    %v683 = vtanh.pop %v681
    %v684 = vtanh.pop %v682
    %v687 = vrot.slane %v684, 7
    %v688 = vsel %vm284, %v687, %v683
    %690 = vst.msk [vmem:[#allocation2] sm:$0x3] %vm287, %v688
    %v691 = vpack.c.bf16 %v683, %v683
    %v692 = vpack.c.bf16 %v684, %v684
    %v693 = vld [vmem:[%s291] sm:$0x3]
    %v694 = vpack.c.bf16 %v693, %v693
    %v696 = vsel %vm192, %v694, 0
    %698 = vmatprep.subr.bf16.mxu0 0
    %699 = vmatpush1.bf16.msra.mxu0 0
    %700 = vmatprep.subr.bf16.mxu0 0
    %701 = vmatpush1.bf16.msra.mxu0 0
    %702 = vmatprep.subr.bf16.mxu0 0
    %703 = vmatpush1.bf16.msra.mxu0 0
    %704 = vmatprep.subr.bf16.mxu0 0
    %705 = vmatpush1.bf16.msra.mxu0 0
    %706 = vmatprep.subr.bf16.mxu0 0
    %707 = vmatpush1.bf16.msra.mxu0 0
    %708 = vmatprep.subr.bf16.mxu0 0
    %709 = vmatpush1.bf16.msra.mxu0 0
    %710 = vmatprep.subr.bf16.mxu0 0
    %711 = vmatpush1.bf16.msra.mxu0 %v303
    %712 = vmatprep.subr.bf16.mxu0 0
    %713 = vmatpush1.bf16.msra.mxu0 %v302
    %714 = vmatprep.subr.bf16.mxu0 0
    %715 = vmatpush2.bf16.msra.mxu0 0
    %716 = vmatprep.subr.bf16.mxu0 0
    %717 = vmatpush2.bf16.msra.mxu0 0
    %718 = vmatprep.subr.bf16.mxu0 0
    %719 = vmatpush2.bf16.msra.mxu0 0
    %720 = vmatprep.subr.bf16.mxu0 0
    %721 = vmatpush2.bf16.msra.mxu0 0
    %722 = vmatprep.subr.bf16.mxu0 0
    %723 = vmatpush2.bf16.msra.mxu0 0
    %724 = vmatprep.subr.bf16.mxu0 0
    %725 = vmatpush2.bf16.msra.mxu0 0
    %726 = vmatprep.subr.bf16.mxu0 0
    %727 = vmatpush2.bf16.msra.mxu0 0
    %728 = vmatprep.subr.bf16.mxu0 0
    %729 = vmatpush2.bf16.msra.mxu0 0
    %730 = vmatprep.mubr.bf16.mxu0 0
    %731 = vmatmul.mubr.bf16.gmra.mxu0 %v696
    %v732 = vpop.f32.mrf.mxu0
    %v733 = vadd.f32 0.0, %v732
    %v734 = vpop.f32.mrf.mxu0
    %v735 = vpop.f32.mrf.mxu0
    %v736 = vpop.f32.mrf.mxu0
    %737 = vdwg.mxu0
    %v740 = vunpack.c.l.b16 %v691
    %v741 = vunpack.c.l.b16 %v692
    %v742 = vrot.slane %v741, 7
    %v743 = vsel %vm284, %v742, %v740
    %v744 = vpack.c.b16 %v743, %v743
    %v746 = vsel %vm192, %v744, 0
    %748 = vmatprep.subr.bf16.mxu0 0
    %749 = vmatpush1.bf16.msra.mxu0 0
    %750 = vmatprep.subr.bf16.mxu0 0
    %751 = vmatpush1.bf16.msra.mxu0 0
    %752 = vmatprep.subr.bf16.mxu0 0
    %753 = vmatpush1.bf16.msra.mxu0 0
    %754 = vmatprep.subr.bf16.mxu0 0
    %755 = vmatpush1.bf16.msra.mxu0 0
    %756 = vmatprep.subr.bf16.mxu0 0
    %757 = vmatpush1.bf16.msra.mxu0 0
    %758 = vmatprep.subr.bf16.mxu0 0
    %759 = vmatpush1.bf16.msra.mxu0 0
    %760 = vmatprep.subr.bf16.mxu0 0
    %761 = vmatpush1.bf16.msra.mxu0 %v365
    %762 = vmatprep.subr.bf16.mxu0 0
    %763 = vmatpush1.bf16.msra.mxu0 %v364
    %764 = vmatprep.subr.bf16.mxu0 0
    %765 = vmatpush2.bf16.msra.mxu0 0
    %766 = vmatprep.subr.bf16.mxu0 0
    %767 = vmatpush2.bf16.msra.mxu0 0
    %768 = vmatprep.subr.bf16.mxu0 0
    %769 = vmatpush2.bf16.msra.mxu0 0
    %770 = vmatprep.subr.bf16.mxu0 0
    %771 = vmatpush2.bf16.msra.mxu0 0
    %772 = vmatprep.subr.bf16.mxu0 0
    %773 = vmatpush2.bf16.msra.mxu0 0
    %774 = vmatprep.subr.bf16.mxu0 0
    %775 = vmatpush2.bf16.msra.mxu0 0
    %776 = vmatprep.subr.bf16.mxu0 0
    %777 = vmatpush2.bf16.msra.mxu0 0
    %778 = vmatprep.subr.bf16.mxu0 0
    %779 = vmatpush2.bf16.msra.mxu0 0
    %780 = vmatprep.mubr.bf16.mxu0 0
    %781 = vmatmul.mubr.bf16.gmra.mxu0 %v746
    %v782 = vpop.f32.mrf.mxu0
    %v783 = vadd.f32 %v733, %v782
    %v784 = vpop.f32.mrf.mxu0
    %v785 = vpop.f32.mrf.mxu0
    %v786 = vpop.f32.mrf.mxu0
    %787 = vdwg.mxu0
    %v788 = vadd.f32 %v783, %v212
    %v789 = vtanh.pop %v788
    %790 = vst.msk [vmem:[%s291] sm:$0x3] %vm287, %v789
    %v793 = vunpack.c.l.s4 1966171168
    %v794 = vunpack.c.0.s8 %v793
    %v795 = vlaneseq
    %v796 = vshrl.u32 %v795, 7
    %v797 = vsub.s32 %v794, %v796
    %v798 = vrot.slane %v789, %v797
    %v799 = vcombine.high %v798, %v798
    %v801 = vunpack.c.l.s4 1966171168
    %v802 = vunpack.c.0.s8 %v801
    %v803 = vlaneseq
    %v804 = vshrl.u32 %v803, 7
    %v805 = vsub.s32 %v802, %v804
    %v806 = vrot.slane %v798, %v805
    %v808 = vunpack.c.l.s4 1966171168
    %v809 = vunpack.c.0.s8 %v808
    %v810 = vlaneseq
    %v811 = vshrl.u32 %v810, 7
    %v812 = vsub.s32 %v809, %v811
    %v813 = vrot.slane %v799, %v812
    %816 = vst.msk [vmem:[#allocation3 + $0x2] sm:$0x1] %vm439, %v806
    %817 = vst.msk [vmem:[#allocation3 + $0xa] sm:$0x1] %vm439, %v813
    %v818 = vld [vmem:[#allocation3 + $0x3] sm:$0x1]
    %v819 = vld [vmem:[#allocation3 + $0xb] sm:$0x1]
    %v820 = vld [vmem:[#allocation2] sm:$0x3]
    %v821 = vpack.c.bf16 %v820, %v820
    %v823 = vsel %vm192, %v821, 0
    %825 = vmatprep.subr.bf16.mxu0 0
    %826 = vmatpush1.bf16.msra.mxu0 0
    %827 = vmatprep.subr.bf16.mxu0 0
    %828 = vmatpush1.bf16.msra.mxu0 0
    %829 = vmatprep.subr.bf16.mxu0 0
    %830 = vmatpush1.bf16.msra.mxu0 0
    %831 = vmatprep.subr.bf16.mxu0 0
    %832 = vmatpush1.bf16.msra.mxu0 0
    %833 = vmatprep.subr.bf16.mxu0 0
    %834 = vmatpush1.bf16.msra.mxu0 0
    %835 = vmatprep.subr.bf16.mxu0 0
    %836 = vmatpush1.bf16.msra.mxu0 0
    %837 = vmatprep.subr.bf16.mxu0 0
    %838 = vmatpush1.bf16.msra.mxu0 %v227
    %839 = vmatprep.subr.bf16.mxu0 0
    %840 = vmatpush1.bf16.msra.mxu0 %v226
    %841 = vmatprep.subr.bf16.mxu0 0
    %842 = vmatpush2.bf16.msra.mxu0 0
    %843 = vmatprep.subr.bf16.mxu0 0
    %844 = vmatpush2.bf16.msra.mxu0 0
    %845 = vmatprep.subr.bf16.mxu0 0
    %846 = vmatpush2.bf16.msra.mxu0 0
    %847 = vmatprep.subr.bf16.mxu0 0
    %848 = vmatpush2.bf16.msra.mxu0 0
    %849 = vmatprep.subr.bf16.mxu0 0
    %850 = vmatpush2.bf16.msra.mxu0 0
    %851 = vmatprep.subr.bf16.mxu0 0
    %852 = vmatpush2.bf16.msra.mxu0 0
    %853 = vmatprep.subr.bf16.mxu0 0
    %854 = vmatpush2.bf16.msra.mxu0 0
    %855 = vmatprep.subr.bf16.mxu0 0
    %856 = vmatpush2.bf16.msra.mxu0 0
    %857 = vmatprep.mubr.bf16.mxu0 0
    %858 = vmatmul.mubr.bf16.gmra.mxu0 %v823
    %v859 = vpop.f32.mrf.mxu0
    %v860 = vadd.f32 0.0, %v859
    %v861 = vpop.f32.mrf.mxu0
    %v862 = vpop.f32.mrf.mxu0
    %v863 = vpop.f32.mrf.mxu0
    %864 = vdwg.mxu0
    %v866 = vrot.slane %v860, 1
    %v869 = vadd.f32 %v818, %v860
    %v870 = vadd.f32 %v819, %v866
    %v871 = vtanh.pop %v869
    %v872 = vtanh.pop %v870
    %v875 = vrot.slane %v872, 7
    %v876 = vsel %vm284, %v875, %v871
    %878 = vst.msk [vmem:[#allocation2] sm:$0x3] %vm287, %v876
    %v879 = vpack.c.bf16 %v871, %v871
    %v880 = vpack.c.bf16 %v872, %v872
    %v881 = vld [vmem:[%s291] sm:$0x3]
    %v882 = vpack.c.bf16 %v881, %v881
    %v884 = vsel %vm192, %v882, 0
    %886 = vmatprep.subr.bf16.mxu0 0
    %887 = vmatpush1.bf16.msra.mxu0 0
    %888 = vmatprep.subr.bf16.mxu0 0
    %889 = vmatpush1.bf16.msra.mxu0 0
    %890 = vmatprep.subr.bf16.mxu0 0
    %891 = vmatpush1.bf16.msra.mxu0 0
    %892 = vmatprep.subr.bf16.mxu0 0
    %893 = vmatpush1.bf16.msra.mxu0 0
    %894 = vmatprep.subr.bf16.mxu0 0
    %895 = vmatpush1.bf16.msra.mxu0 0
    %896 = vmatprep.subr.bf16.mxu0 0
    %897 = vmatpush1.bf16.msra.mxu0 0
    %898 = vmatprep.subr.bf16.mxu0 0
    %899 = vmatpush1.bf16.msra.mxu0 %v303
    %900 = vmatprep.subr.bf16.mxu0 0
    %901 = vmatpush1.bf16.msra.mxu0 %v302
    %902 = vmatprep.subr.bf16.mxu0 0
    %903 = vmatpush2.bf16.msra.mxu0 0
    %904 = vmatprep.subr.bf16.mxu0 0
    %905 = vmatpush2.bf16.msra.mxu0 0
    %906 = vmatprep.subr.bf16.mxu0 0
    %907 = vmatpush2.bf16.msra.mxu0 0
    %908 = vmatprep.subr.bf16.mxu0 0
    %909 = vmatpush2.bf16.msra.mxu0 0
    %910 = vmatprep.subr.bf16.mxu0 0
    %911 = vmatpush2.bf16.msra.mxu0 0
    %912 = vmatprep.subr.bf16.mxu0 0
    %913 = vmatpush2.bf16.msra.mxu0 0
    %914 = vmatprep.subr.bf16.mxu0 0
    %915 = vmatpush2.bf16.msra.mxu0 0
    %916 = vmatprep.subr.bf16.mxu0 0
    %917 = vmatpush2.bf16.msra.mxu0 0
    %918 = vmatprep.mubr.bf16.mxu0 0
    %919 = vmatmul.mubr.bf16.gmra.mxu0 %v884
    %v920 = vpop.f32.mrf.mxu0
    %v921 = vadd.f32 0.0, %v920
    %v922 = vpop.f32.mrf.mxu0
    %v923 = vpop.f32.mrf.mxu0
    %v924 = vpop.f32.mrf.mxu0
    %925 = vdwg.mxu0
    %v928 = vunpack.c.l.b16 %v879
    %v929 = vunpack.c.l.b16 %v880
    %v930 = vrot.slane %v929, 7
    %v931 = vsel %vm284, %v930, %v928
    %v932 = vpack.c.b16 %v931, %v931
    %v934 = vsel %vm192, %v932, 0
    %936 = vmatprep.subr.bf16.mxu0 0
    %937 = vmatpush1.bf16.msra.mxu0 0
    %938 = vmatprep.subr.bf16.mxu0 0
    %939 = vmatpush1.bf16.msra.mxu0 0
    %940 = vmatprep.subr.bf16.mxu0 0
    %941 = vmatpush1.bf16.msra.mxu0 0
    %942 = vmatprep.subr.bf16.mxu0 0
    %943 = vmatpush1.bf16.msra.mxu0 0
    %944 = vmatprep.subr.bf16.mxu0 0
    %945 = vmatpush1.bf16.msra.mxu0 0
    %946 = vmatprep.subr.bf16.mxu0 0
    %947 = vmatpush1.bf16.msra.mxu0 0
    %948 = vmatprep.subr.bf16.mxu0 0
    %949 = vmatpush1.bf16.msra.mxu0 %v365
    %950 = vmatprep.subr.bf16.mxu0 0
    %951 = vmatpush1.bf16.msra.mxu0 %v364
    %952 = vmatprep.subr.bf16.mxu0 0
    %953 = vmatpush2.bf16.msra.mxu0 0
    %954 = vmatprep.subr.bf16.mxu0 0
    %955 = vmatpush2.bf16.msra.mxu0 0
    %956 = vmatprep.subr.bf16.mxu0 0
    %957 = vmatpush2.bf16.msra.mxu0 0
    %958 = vmatprep.subr.bf16.mxu0 0
    %959 = vmatpush2.bf16.msra.mxu0 0
    %960 = vmatprep.subr.bf16.mxu0 0
    %961 = vmatpush2.bf16.msra.mxu0 0
    %962 = vmatprep.subr.bf16.mxu0 0
    %963 = vmatpush2.bf16.msra.mxu0 0
    %964 = vmatprep.subr.bf16.mxu0 0
    %965 = vmatpush2.bf16.msra.mxu0 0
    %966 = vmatprep.subr.bf16.mxu0 0
    %967 = vmatpush2.bf16.msra.mxu0 0
    %968 = vmatprep.mubr.bf16.mxu0 0
    %969 = vmatmul.mubr.bf16.gmra.mxu0 %v934
    %v970 = vpop.f32.mrf.mxu0
    %v971 = vadd.f32 %v921, %v970
    %v972 = vpop.f32.mrf.mxu0
    %v973 = vpop.f32.mrf.mxu0
    %v974 = vpop.f32.mrf.mxu0
    %975 = vdwg.mxu0
    %v976 = vadd.f32 %v971, %v212
    %v977 = vtanh.pop %v976
    %978 = vst.msk [vmem:[%s291] sm:$0x3] %vm287, %v977
    %v981 = vunpack.c.l.s4 1966171168
    %v982 = vunpack.c.0.s8 %v981
    %v983 = vlaneseq
    %v984 = vshrl.u32 %v983, 7
    %v985 = vsub.s32 %v982, %v984
    %v986 = vrot.slane %v977, %v985
    %v987 = vcombine.high %v986, %v986
    %v989 = vunpack.c.l.s4 1966171168
    %v990 = vunpack.c.0.s8 %v989
    %v991 = vlaneseq
    %v992 = vshrl.u32 %v991, 7
    %v993 = vsub.s32 %v990, %v992
    %v994 = vrot.slane %v986, %v993
    %v996 = vunpack.c.l.s4 1966171168
    %v997 = vunpack.c.0.s8 %v996
    %v998 = vlaneseq
    %v999 = vshrl.u32 %v998, 7
    %v1000 = vsub.s32 %v997, %v999
    %v1001 = vrot.slane %v987, %v1000
    %1004 = vst.msk [vmem:[#allocation3 + $0x3] sm:$0x1] %vm439, %v994
    %1005 = vst.msk [vmem:[#allocation3 + $0xb] sm:$0x1] %vm439, %v1001
    %v1006 = vld [vmem:[#allocation3 + $0x4] sm:$0x1]
    %v1007 = vld [vmem:[#allocation3 + $0xc] sm:$0x1]
    %v1008 = vld [vmem:[#allocation2] sm:$0x3]
    %v1009 = vpack.c.bf16 %v1008, %v1008
    %v1011 = vsel %vm192, %v1009, 0
    %1013 = vmatprep.subr.bf16.mxu0 0
    %1014 = vmatpush1.bf16.msra.mxu0 0
    %1015 = vmatprep.subr.bf16.mxu0 0
    %1016 = vmatpush1.bf16.msra.mxu0 0
    %1017 = vmatprep.subr.bf16.mxu0 0
    %1018 = vmatpush1.bf16.msra.mxu0 0
    %1019 = vmatprep.subr.bf16.mxu0 0
    %1020 = vmatpush1.bf16.msra.mxu0 0
    %1021 = vmatprep.subr.bf16.mxu0 0
    %1022 = vmatpush1.bf16.msra.mxu0 0
    %1023 = vmatprep.subr.bf16.mxu0 0
    %1024 = vmatpush1.bf16.msra.mxu0 0
    %1025 = vmatprep.subr.bf16.mxu0 0
    %1026 = vmatpush1.bf16.msra.mxu0 %v227
    %1027 = vmatprep.subr.bf16.mxu0 0
    %1028 = vmatpush1.bf16.msra.mxu0 %v226
    %1029 = vmatprep.subr.bf16.mxu0 0
    %1030 = vmatpush2.bf16.msra.mxu0 0
    %1031 = vmatprep.subr.bf16.mxu0 0
    %1032 = vmatpush2.bf16.msra.mxu0 0
    %1033 = vmatprep.subr.bf16.mxu0 0
    %1034 = vmatpush2.bf16.msra.mxu0 0
    %1035 = vmatprep.subr.bf16.mxu0 0
    %1036 = vmatpush2.bf16.msra.mxu0 0
    %1037 = vmatprep.subr.bf16.mxu0 0
    %1038 = vmatpush2.bf16.msra.mxu0 0
    %1039 = vmatprep.subr.bf16.mxu0 0
    %1040 = vmatpush2.bf16.msra.mxu0 0
    %1041 = vmatprep.subr.bf16.mxu0 0
    %1042 = vmatpush2.bf16.msra.mxu0 0
    %1043 = vmatprep.subr.bf16.mxu0 0
    %1044 = vmatpush2.bf16.msra.mxu0 0
    %1045 = vmatprep.mubr.bf16.mxu0 0
    %1046 = vmatmul.mubr.bf16.gmra.mxu0 %v1011
    %v1047 = vpop.f32.mrf.mxu0
    %v1048 = vadd.f32 0.0, %v1047
    %v1049 = vpop.f32.mrf.mxu0
    %v1050 = vpop.f32.mrf.mxu0
    %v1051 = vpop.f32.mrf.mxu0
    %1052 = vdwg.mxu0
    %v1054 = vrot.slane %v1048, 1
    %v1057 = vadd.f32 %v1006, %v1048
    %v1058 = vadd.f32 %v1007, %v1054
    %v1059 = vtanh.pop %v1057
    %v1060 = vtanh.pop %v1058
    %v1063 = vrot.slane %v1060, 7
    %v1064 = vsel %vm284, %v1063, %v1059
    %1066 = vst.msk [vmem:[#allocation2] sm:$0x3] %vm287, %v1064
    %v1067 = vpack.c.bf16 %v1059, %v1059
    %v1068 = vpack.c.bf16 %v1060, %v1060
    %v1069 = vld [vmem:[%s291] sm:$0x3]
    %v1070 = vpack.c.bf16 %v1069, %v1069
    %v1072 = vsel %vm192, %v1070, 0
    %1074 = vmatprep.subr.bf16.mxu0 0
    %1075 = vmatpush1.bf16.msra.mxu0 0
    %1076 = vmatprep.subr.bf16.mxu0 0
    %1077 = vmatpush1.bf16.msra.mxu0 0
    %1078 = vmatprep.subr.bf16.mxu0 0
    %1079 = vmatpush1.bf16.msra.mxu0 0
    %1080 = vmatprep.subr.bf16.mxu0 0
    %1081 = vmatpush1.bf16.msra.mxu0 0
    %1082 = vmatprep.subr.bf16.mxu0 0
    %1083 = vmatpush1.bf16.msra.mxu0 0
    %1084 = vmatprep.subr.bf16.mxu0 0
    %1085 = vmatpush1.bf16.msra.mxu0 0
    %1086 = vmatprep.subr.bf16.mxu0 0
    %1087 = vmatpush1.bf16.msra.mxu0 %v303
    %1088 = vmatprep.subr.bf16.mxu0 0
    %1089 = vmatpush1.bf16.msra.mxu0 %v302
    %1090 = vmatprep.subr.bf16.mxu0 0
    %1091 = vmatpush2.bf16.msra.mxu0 0
    %1092 = vmatprep.subr.bf16.mxu0 0
    %1093 = vmatpush2.bf16.msra.mxu0 0
    %1094 = vmatprep.subr.bf16.mxu0 0
    %1095 = vmatpush2.bf16.msra.mxu0 0
    %1096 = vmatprep.subr.bf16.mxu0 0
    %1097 = vmatpush2.bf16.msra.mxu0 0
    %1098 = vmatprep.subr.bf16.mxu0 0
    %1099 = vmatpush2.bf16.msra.mxu0 0
    %1100 = vmatprep.subr.bf16.mxu0 0
    %1101 = vmatpush2.bf16.msra.mxu0 0
    %1102 = vmatprep.subr.bf16.mxu0 0
    %1103 = vmatpush2.bf16.msra.mxu0 0
    %1104 = vmatprep.subr.bf16.mxu0 0
    %1105 = vmatpush2.bf16.msra.mxu0 0
    %1106 = vmatprep.mubr.bf16.mxu0 0
    %1107 = vmatmul.mubr.bf16.gmra.mxu0 %v1072
    %v1108 = vpop.f32.mrf.mxu0
    %v1109 = vadd.f32 0.0, %v1108
    %v1110 = vpop.f32.mrf.mxu0
    %v1111 = vpop.f32.mrf.mxu0
    %v1112 = vpop.f32.mrf.mxu0
    %1113 = vdwg.mxu0
    %v1116 = vunpack.c.l.b16 %v1067
    %v1117 = vunpack.c.l.b16 %v1068
    %v1118 = vrot.slane %v1117, 7
    %v1119 = vsel %vm284, %v1118, %v1116
    %v1120 = vpack.c.b16 %v1119, %v1119
    %v1122 = vsel %vm192, %v1120, 0
    %1124 = vmatprep.subr.bf16.mxu0 0
    %1125 = vmatpush1.bf16.msra.mxu0 0
    %1126 = vmatprep.subr.bf16.mxu0 0
    %1127 = vmatpush1.bf16.msra.mxu0 0
    %1128 = vmatprep.subr.bf16.mxu0 0
    %1129 = vmatpush1.bf16.msra.mxu0 0
    %1130 = vmatprep.subr.bf16.mxu0 0
    %1131 = vmatpush1.bf16.msra.mxu0 0
    %1132 = vmatprep.subr.bf16.mxu0 0
    %1133 = vmatpush1.bf16.msra.mxu0 0
    %1134 = vmatprep.subr.bf16.mxu0 0
    %1135 = vmatpush1.bf16.msra.mxu0 0
    %1136 = vmatprep.subr.bf16.mxu0 0
    %1137 = vmatpush1.bf16.msra.mxu0 %v365
    %1138 = vmatprep.subr.bf16.mxu0 0
    %1139 = vmatpush1.bf16.msra.mxu0 %v364
    %1140 = vmatprep.subr.bf16.mxu0 0
    %1141 = vmatpush2.bf16.msra.mxu0 0
    %1142 = vmatprep.subr.bf16.mxu0 0
    %1143 = vmatpush2.bf16.msra.mxu0 0
    %1144 = vmatprep.subr.bf16.mxu0 0
    %1145 = vmatpush2.bf16.msra.mxu0 0
    %1146 = vmatprep.subr.bf16.mxu0 0
    %1147 = vmatpush2.bf16.msra.mxu0 0
    %1148 = vmatprep.subr.bf16.mxu0 0
    %1149 = vmatpush2.bf16.msra.mxu0 0
    %1150 = vmatprep.subr.bf16.mxu0 0
    %1151 = vmatpush2.bf16.msra.mxu0 0
    %1152 = vmatprep.subr.bf16.mxu0 0
    %1153 = vmatpush2.bf16.msra.mxu0 0
    %1154 = vmatprep.subr.bf16.mxu0 0
    %1155 = vmatpush2.bf16.msra.mxu0 0
    %1156 = vmatprep.mubr.bf16.mxu0 0
    %1157 = vmatmul.mubr.bf16.gmra.mxu0 %v1122
    %v1158 = vpop.f32.mrf.mxu0
    %v1159 = vadd.f32 %v1109, %v1158
    %v1160 = vpop.f32.mrf.mxu0
    %v1161 = vpop.f32.mrf.mxu0
    %v1162 = vpop.f32.mrf.mxu0
    %1163 = vdwg.mxu0
    %v1164 = vadd.f32 %v1159, %v212
    %v1165 = vtanh.pop %v1164
    %1166 = vst.msk [vmem:[%s291] sm:$0x3] %vm287, %v1165
    %v1169 = vunpack.c.l.s4 1966171168
    %v1170 = vunpack.c.0.s8 %v1169
    %v1171 = vlaneseq
    %v1172 = vshrl.u32 %v1171, 7
    %v1173 = vsub.s32 %v1170, %v1172
    %v1174 = vrot.slane %v1165, %v1173
    %v1175 = vcombine.high %v1174, %v1174
    %v1177 = vunpack.c.l.s4 1966171168
    %v1178 = vunpack.c.0.s8 %v1177
    %v1179 = vlaneseq
    %v1180 = vshrl.u32 %v1179, 7
    %v1181 = vsub.s32 %v1178, %v1180
    %v1182 = vrot.slane %v1174, %v1181
    %v1184 = vunpack.c.l.s4 1966171168
    %v1185 = vunpack.c.0.s8 %v1184
    %v1186 = vlaneseq
    %v1187 = vshrl.u32 %v1186, 7
    %v1188 = vsub.s32 %v1185, %v1187
    %v1189 = vrot.slane %v1175, %v1188
    %1192 = vst.msk [vmem:[#allocation3 + $0x4] sm:$0x1] %vm439, %v1182
    %1193 = vst.msk [vmem:[#allocation3 + $0xc] sm:$0x1] %vm439, %v1189
    %v1194 = vld [vmem:[#allocation3 + $0x5] sm:$0x1]
    %v1195 = vld [vmem:[#allocation3 + $0xd] sm:$0x1]
    %v1196 = vld [vmem:[#allocation2] sm:$0x3]
    %v1197 = vpack.c.bf16 %v1196, %v1196
    %v1199 = vsel %vm192, %v1197, 0
    %1201 = vmatprep.subr.bf16.mxu0 0
    %1202 = vmatpush1.bf16.msra.mxu0 0
    %1203 = vmatprep.subr.bf16.mxu0 0
    %1204 = vmatpush1.bf16.msra.mxu0 0
    %1205 = vmatprep.subr.bf16.mxu0 0
    %1206 = vmatpush1.bf16.msra.mxu0 0
    %1207 = vmatprep.subr.bf16.mxu0 0
    %1208 = vmatpush1.bf16.msra.mxu0 0
    %1209 = vmatprep.subr.bf16.mxu0 0
    %1210 = vmatpush1.bf16.msra.mxu0 0
    %1211 = vmatprep.subr.bf16.mxu0 0
    %1212 = vmatpush1.bf16.msra.mxu0 0
    %1213 = vmatprep.subr.bf16.mxu0 0
    %1214 = vmatpush1.bf16.msra.mxu0 %v227
    %1215 = vmatprep.subr.bf16.mxu0 0
    %1216 = vmatpush1.bf16.msra.mxu0 %v226
    %1217 = vmatprep.subr.bf16.mxu0 0
    %1218 = vmatpush2.bf16.msra.mxu0 0
    %1219 = vmatprep.subr.bf16.mxu0 0
    %1220 = vmatpush2.bf16.msra.mxu0 0
    %1221 = vmatprep.subr.bf16.mxu0 0
    %1222 = vmatpush2.bf16.msra.mxu0 0
    %1223 = vmatprep.subr.bf16.mxu0 0
    %1224 = vmatpush2.bf16.msra.mxu0 0
    %1225 = vmatprep.subr.bf16.mxu0 0
    %1226 = vmatpush2.bf16.msra.mxu0 0
    %1227 = vmatprep.subr.bf16.mxu0 0
    %1228 = vmatpush2.bf16.msra.mxu0 0
    %1229 = vmatprep.subr.bf16.mxu0 0
    %1230 = vmatpush2.bf16.msra.mxu0 0
    %1231 = vmatprep.subr.bf16.mxu0 0
    %1232 = vmatpush2.bf16.msra.mxu0 0
    %1233 = vmatprep.mubr.bf16.mxu0 0
    %1234 = vmatmul.mubr.bf16.gmra.mxu0 %v1199
    %v1235 = vpop.f32.mrf.mxu0
    %v1236 = vadd.f32 0.0, %v1235
    %v1237 = vpop.f32.mrf.mxu0
    %v1238 = vpop.f32.mrf.mxu0
    %v1239 = vpop.f32.mrf.mxu0
    %1240 = vdwg.mxu0
    %v1242 = vrot.slane %v1236, 1
    %v1245 = vadd.f32 %v1194, %v1236
    %v1246 = vadd.f32 %v1195, %v1242
    %v1247 = vtanh.pop %v1245
    %v1248 = vtanh.pop %v1246
    %v1251 = vrot.slane %v1248, 7
    %v1252 = vsel %vm284, %v1251, %v1247
    %1254 = vst.msk [vmem:[#allocation2] sm:$0x3] %vm287, %v1252
    %v1255 = vpack.c.bf16 %v1247, %v1247
    %v1256 = vpack.c.bf16 %v1248, %v1248
    %v1257 = vld [vmem:[%s291] sm:$0x3]
    %v1258 = vpack.c.bf16 %v1257, %v1257
    %v1260 = vsel %vm192, %v1258, 0
    %1262 = vmatprep.subr.bf16.mxu0 0
    %1263 = vmatpush1.bf16.msra.mxu0 0
    %1264 = vmatprep.subr.bf16.mxu0 0
    %1265 = vmatpush1.bf16.msra.mxu0 0
    %1266 = vmatprep.subr.bf16.mxu0 0
    %1267 = vmatpush1.bf16.msra.mxu0 0
    %1268 = vmatprep.subr.bf16.mxu0 0
    %1269 = vmatpush1.bf16.msra.mxu0 0
    %1270 = vmatprep.subr.bf16.mxu0 0
    %1271 = vmatpush1.bf16.msra.mxu0 0
    %1272 = vmatprep.subr.bf16.mxu0 0
    %1273 = vmatpush1.bf16.msra.mxu0 0
    %1274 = vmatprep.subr.bf16.mxu0 0
    %1275 = vmatpush1.bf16.msra.mxu0 %v303
    %1276 = vmatprep.subr.bf16.mxu0 0
    %1277 = vmatpush1.bf16.msra.mxu0 %v302
    %1278 = vmatprep.subr.bf16.mxu0 0
    %1279 = vmatpush2.bf16.msra.mxu0 0
    %1280 = vmatprep.subr.bf16.mxu0 0
    %1281 = vmatpush2.bf16.msra.mxu0 0
    %1282 = vmatprep.subr.bf16.mxu0 0
    %1283 = vmatpush2.bf16.msra.mxu0 0
    %1284 = vmatprep.subr.bf16.mxu0 0
    %1285 = vmatpush2.bf16.msra.mxu0 0
    %1286 = vmatprep.subr.bf16.mxu0 0
    %1287 = vmatpush2.bf16.msra.mxu0 0
    %1288 = vmatprep.subr.bf16.mxu0 0
    %1289 = vmatpush2.bf16.msra.mxu0 0
    %1290 = vmatprep.subr.bf16.mxu0 0
    %1291 = vmatpush2.bf16.msra.mxu0 0
    %1292 = vmatprep.subr.bf16.mxu0 0
    %1293 = vmatpush2.bf16.msra.mxu0 0
    %1294 = vmatprep.mubr.bf16.mxu0 0
    %1295 = vmatmul.mubr.bf16.gmra.mxu0 %v1260
    %v1296 = vpop.f32.mrf.mxu0
    %v1297 = vadd.f32 0.0, %v1296
    %v1298 = vpop.f32.mrf.mxu0
    %v1299 = vpop.f32.mrf.mxu0
    %v1300 = vpop.f32.mrf.mxu0
    %1301 = vdwg.mxu0
    %v1304 = vunpack.c.l.b16 %v1255
    %v1305 = vunpack.c.l.b16 %v1256
    %v1306 = vrot.slane %v1305, 7
    %v1307 = vsel %vm284, %v1306, %v1304
    %v1308 = vpack.c.b16 %v1307, %v1307
    %v1310 = vsel %vm192, %v1308, 0
    %1312 = vmatprep.subr.bf16.mxu0 0
    %1313 = vmatpush1.bf16.msra.mxu0 0
    %1314 = vmatprep.subr.bf16.mxu0 0
    %1315 = vmatpush1.bf16.msra.mxu0 0
    %1316 = vmatprep.subr.bf16.mxu0 0
    %1317 = vmatpush1.bf16.msra.mxu0 0
    %1318 = vmatprep.subr.bf16.mxu0 0
    %1319 = vmatpush1.bf16.msra.mxu0 0
    %1320 = vmatprep.subr.bf16.mxu0 0
    %1321 = vmatpush1.bf16.msra.mxu0 0
    %1322 = vmatprep.subr.bf16.mxu0 0
    %1323 = vmatpush1.bf16.msra.mxu0 0
    %1324 = vmatprep.subr.bf16.mxu0 0
    %1325 = vmatpush1.bf16.msra.mxu0 %v365
    %1326 = vmatprep.subr.bf16.mxu0 0
    %1327 = vmatpush1.bf16.msra.mxu0 %v364
    %1328 = vmatprep.subr.bf16.mxu0 0
    %1329 = vmatpush2.bf16.msra.mxu0 0
    %1330 = vmatprep.subr.bf16.mxu0 0
    %1331 = vmatpush2.bf16.msra.mxu0 0
    %1332 = vmatprep.subr.bf16.mxu0 0
    %1333 = vmatpush2.bf16.msra.mxu0 0
    %1334 = vmatprep.subr.bf16.mxu0 0
    %1335 = vmatpush2.bf16.msra.mxu0 0
    %1336 = vmatprep.subr.bf16.mxu0 0
    %1337 = vmatpush2.bf16.msra.mxu0 0
    %1338 = vmatprep.subr.bf16.mxu0 0
    %1339 = vmatpush2.bf16.msra.mxu0 0
    %1340 = vmatprep.subr.bf16.mxu0 0
    %1341 = vmatpush2.bf16.msra.mxu0 0
    %1342 = vmatprep.subr.bf16.mxu0 0
    %1343 = vmatpush2.bf16.msra.mxu0 0
    %1344 = vmatprep.mubr.bf16.mxu0 0
    %1345 = vmatmul.mubr.bf16.gmra.mxu0 %v1310
    %v1346 = vpop.f32.mrf.mxu0
    %v1347 = vadd.f32 %v1297, %v1346
    %v1348 = vpop.f32.mrf.mxu0
    %v1349 = vpop.f32.mrf.mxu0
    %v1350 = vpop.f32.mrf.mxu0
    %1351 = vdwg.mxu0
    %v1352 = vadd.f32 %v1347, %v212
    %v1353 = vtanh.pop %v1352
    %1354 = vst.msk [vmem:[%s291] sm:$0x3] %vm287, %v1353
    %v1357 = vunpack.c.l.s4 1966171168
    %v1358 = vunpack.c.0.s8 %v1357
    %v1359 = vlaneseq
    %v1360 = vshrl.u32 %v1359, 7
    %v1361 = vsub.s32 %v1358, %v1360
    %v1362 = vrot.slane %v1353, %v1361
    %v1363 = vcombine.high %v1362, %v1362
    %v1365 = vunpack.c.l.s4 1966171168
    %v1366 = vunpack.c.0.s8 %v1365
    %v1367 = vlaneseq
    %v1368 = vshrl.u32 %v1367, 7
    %v1369 = vsub.s32 %v1366, %v1368
    %v1370 = vrot.slane %v1362, %v1369
    %v1372 = vunpack.c.l.s4 1966171168
    %v1373 = vunpack.c.0.s8 %v1372
    %v1374 = vlaneseq
    %v1375 = vshrl.u32 %v1374, 7
    %v1376 = vsub.s32 %v1373, %v1375
    %v1377 = vrot.slane %v1363, %v1376
    %1380 = vst.msk [vmem:[#allocation3 + $0x5] sm:$0x1] %vm439, %v1370
    %1381 = vst.msk [vmem:[#allocation3 + $0xd] sm:$0x1] %vm439, %v1377
    %v1382 = vld [vmem:[#allocation3 + $0x6] sm:$0x1]
    %v1383 = vld [vmem:[#allocation3 + $0xe] sm:$0x1]
    %v1384 = vld [vmem:[#allocation2] sm:$0x3]
    %v1385 = vpack.c.bf16 %v1384, %v1384
    %v1387 = vsel %vm192, %v1385, 0
    %1389 = vmatprep.subr.bf16.mxu0 0
    %1390 = vmatpush1.bf16.msra.mxu0 0
    %1391 = vmatprep.subr.bf16.mxu0 0
    %1392 = vmatpush1.bf16.msra.mxu0 0
    %1393 = vmatprep.subr.bf16.mxu0 0
    %1394 = vmatpush1.bf16.msra.mxu0 0
    %1395 = vmatprep.subr.bf16.mxu0 0
    %1396 = vmatpush1.bf16.msra.mxu0 0
    %1397 = vmatprep.subr.bf16.mxu0 0
    %1398 = vmatpush1.bf16.msra.mxu0 0
    %1399 = vmatprep.subr.bf16.mxu0 0
    %1400 = vmatpush1.bf16.msra.mxu0 0
    %1401 = vmatprep.subr.bf16.mxu0 0
    %1402 = vmatpush1.bf16.msra.mxu0 %v227
    %1403 = vmatprep.subr.bf16.mxu0 0
    %1404 = vmatpush1.bf16.msra.mxu0 %v226
    %1405 = vmatprep.subr.bf16.mxu0 0
    %1406 = vmatpush2.bf16.msra.mxu0 0
    %1407 = vmatprep.subr.bf16.mxu0 0
    %1408 = vmatpush2.bf16.msra.mxu0 0
    %1409 = vmatprep.subr.bf16.mxu0 0
    %1410 = vmatpush2.bf16.msra.mxu0 0
    %1411 = vmatprep.subr.bf16.mxu0 0
    %1412 = vmatpush2.bf16.msra.mxu0 0
    %1413 = vmatprep.subr.bf16.mxu0 0
    %1414 = vmatpush2.bf16.msra.mxu0 0
    %1415 = vmatprep.subr.bf16.mxu0 0
    %1416 = vmatpush2.bf16.msra.mxu0 0
    %1417 = vmatprep.subr.bf16.mxu0 0
    %1418 = vmatpush2.bf16.msra.mxu0 0
    %1419 = vmatprep.subr.bf16.mxu0 0
    %1420 = vmatpush2.bf16.msra.mxu0 0
    %1421 = vmatprep.mubr.bf16.mxu0 0
    %1422 = vmatmul.mubr.bf16.gmra.mxu0 %v1387
    %v1423 = vpop.f32.mrf.mxu0
    %v1424 = vadd.f32 0.0, %v1423
    %v1425 = vpop.f32.mrf.mxu0
    %v1426 = vpop.f32.mrf.mxu0
    %v1427 = vpop.f32.mrf.mxu0
    %1428 = vdwg.mxu0
    %v1430 = vrot.slane %v1424, 1
    %v1433 = vadd.f32 %v1382, %v1424
    %v1434 = vadd.f32 %v1383, %v1430
    %v1435 = vtanh.pop %v1433
    %v1436 = vtanh.pop %v1434
    %v1439 = vrot.slane %v1436, 7
    %v1440 = vsel %vm284, %v1439, %v1435
    %1442 = vst.msk [vmem:[#allocation2] sm:$0x3] %vm287, %v1440
    %v1443 = vpack.c.bf16 %v1435, %v1435
    %v1444 = vpack.c.bf16 %v1436, %v1436
    %v1445 = vld [vmem:[%s291] sm:$0x3]
    %v1446 = vpack.c.bf16 %v1445, %v1445
    %v1448 = vsel %vm192, %v1446, 0
    %1450 = vmatprep.subr.bf16.mxu0 0
    %1451 = vmatpush1.bf16.msra.mxu0 0
    %1452 = vmatprep.subr.bf16.mxu0 0
    %1453 = vmatpush1.bf16.msra.mxu0 0
    %1454 = vmatprep.subr.bf16.mxu0 0
    %1455 = vmatpush1.bf16.msra.mxu0 0
    %1456 = vmatprep.subr.bf16.mxu0 0
    %1457 = vmatpush1.bf16.msra.mxu0 0
    %1458 = vmatprep.subr.bf16.mxu0 0
    %1459 = vmatpush1.bf16.msra.mxu0 0
    %1460 = vmatprep.subr.bf16.mxu0 0
    %1461 = vmatpush1.bf16.msra.mxu0 0
    %1462 = vmatprep.subr.bf16.mxu0 0
    %1463 = vmatpush1.bf16.msra.mxu0 %v303
    %1464 = vmatprep.subr.bf16.mxu0 0
    %1465 = vmatpush1.bf16.msra.mxu0 %v302
    %1466 = vmatprep.subr.bf16.mxu0 0
    %1467 = vmatpush2.bf16.msra.mxu0 0
    %1468 = vmatprep.subr.bf16.mxu0 0
    %1469 = vmatpush2.bf16.msra.mxu0 0
    %1470 = vmatprep.subr.bf16.mxu0 0
    %1471 = vmatpush2.bf16.msra.mxu0 0
    %1472 = vmatprep.subr.bf16.mxu0 0
    %1473 = vmatpush2.bf16.msra.mxu0 0
    %1474 = vmatprep.subr.bf16.mxu0 0
    %1475 = vmatpush2.bf16.msra.mxu0 0
    %1476 = vmatprep.subr.bf16.mxu0 0
    %1477 = vmatpush2.bf16.msra.mxu0 0
    %1478 = vmatprep.subr.bf16.mxu0 0
    %1479 = vmatpush2.bf16.msra.mxu0 0
    %1480 = vmatprep.subr.bf16.mxu0 0
    %1481 = vmatpush2.bf16.msra.mxu0 0
    %1482 = vmatprep.mubr.bf16.mxu0 0
    %1483 = vmatmul.mubr.bf16.gmra.mxu0 %v1448
    %v1484 = vpop.f32.mrf.mxu0
    %v1485 = vadd.f32 0.0, %v1484
    %v1486 = vpop.f32.mrf.mxu0
    %v1487 = vpop.f32.mrf.mxu0
    %v1488 = vpop.f32.mrf.mxu0
    %1489 = vdwg.mxu0
    %v1492 = vunpack.c.l.b16 %v1443
    %v1493 = vunpack.c.l.b16 %v1444
    %v1494 = vrot.slane %v1493, 7
    %v1495 = vsel %vm284, %v1494, %v1492
    %v1496 = vpack.c.b16 %v1495, %v1495
    %v1498 = vsel %vm192, %v1496, 0
    %1500 = vmatprep.subr.bf16.mxu0 0
    %1501 = vmatpush1.bf16.msra.mxu0 0
    %1502 = vmatprep.subr.bf16.mxu0 0
    %1503 = vmatpush1.bf16.msra.mxu0 0
    %1504 = vmatprep.subr.bf16.mxu0 0
    %1505 = vmatpush1.bf16.msra.mxu0 0
    %1506 = vmatprep.subr.bf16.mxu0 0
    %1507 = vmatpush1.bf16.msra.mxu0 0
    %1508 = vmatprep.subr.bf16.mxu0 0
    %1509 = vmatpush1.bf16.msra.mxu0 0
    %1510 = vmatprep.subr.bf16.mxu0 0
    %1511 = vmatpush1.bf16.msra.mxu0 0
    %1512 = vmatprep.subr.bf16.mxu0 0
    %1513 = vmatpush1.bf16.msra.mxu0 %v365
    %1514 = vmatprep.subr.bf16.mxu0 0
    %1515 = vmatpush1.bf16.msra.mxu0 %v364
    %1516 = vmatprep.subr.bf16.mxu0 0
    %1517 = vmatpush2.bf16.msra.mxu0 0
    %1518 = vmatprep.subr.bf16.mxu0 0
    %1519 = vmatpush2.bf16.msra.mxu0 0
    %1520 = vmatprep.subr.bf16.mxu0 0
    %1521 = vmatpush2.bf16.msra.mxu0 0
    %1522 = vmatprep.subr.bf16.mxu0 0
    %1523 = vmatpush2.bf16.msra.mxu0 0
    %1524 = vmatprep.subr.bf16.mxu0 0
    %1525 = vmatpush2.bf16.msra.mxu0 0
    %1526 = vmatprep.subr.bf16.mxu0 0
    %1527 = vmatpush2.bf16.msra.mxu0 0
    %1528 = vmatprep.subr.bf16.mxu0 0
    %1529 = vmatpush2.bf16.msra.mxu0 0
    %1530 = vmatprep.subr.bf16.mxu0 0
    %1531 = vmatpush2.bf16.msra.mxu0 0
    %1532 = vmatprep.mubr.bf16.mxu0 0
    %1533 = vmatmul.mubr.bf16.gmra.mxu0 %v1498
    %v1534 = vpop.f32.mrf.mxu0
    %v1535 = vadd.f32 %v1485, %v1534
    %v1536 = vpop.f32.mrf.mxu0
    %v1537 = vpop.f32.mrf.mxu0
    %v1538 = vpop.f32.mrf.mxu0
    %1539 = vdwg.mxu0
    %v1540 = vadd.f32 %v1535, %v212
    %v1541 = vtanh.pop %v1540
    %1542 = vst.msk [vmem:[%s291] sm:$0x3] %vm287, %v1541
    %v1545 = vunpack.c.l.s4 1966171168
    %v1546 = vunpack.c.0.s8 %v1545
    %v1547 = vlaneseq
    %v1548 = vshrl.u32 %v1547, 7
    %v1549 = vsub.s32 %v1546, %v1548
    %v1550 = vrot.slane %v1541, %v1549
    %v1551 = vcombine.high %v1550, %v1550
    %v1553 = vunpack.c.l.s4 1966171168
    %v1554 = vunpack.c.0.s8 %v1553
    %v1555 = vlaneseq
    %v1556 = vshrl.u32 %v1555, 7
    %v1557 = vsub.s32 %v1554, %v1556
    %v1558 = vrot.slane %v1550, %v1557
    %v1560 = vunpack.c.l.s4 1966171168
    %v1561 = vunpack.c.0.s8 %v1560
    %v1562 = vlaneseq
    %v1563 = vshrl.u32 %v1562, 7
    %v1564 = vsub.s32 %v1561, %v1563
    %v1565 = vrot.slane %v1551, %v1564
    %1568 = vst.msk [vmem:[#allocation3 + $0x6] sm:$0x1] %vm439, %v1558
    %1569 = vst.msk [vmem:[#allocation3 + $0xe] sm:$0x1] %vm439, %v1565
    %v1570 = vld [vmem:[#allocation3 + $0x7] sm:$0x1]
    %v1571 = vld [vmem:[#allocation3 + $0xf] sm:$0x1]
    %v1572 = vld [vmem:[#allocation2] sm:$0x3]
    %v1573 = vpack.c.bf16 %v1572, %v1572
    %v1575 = vsel %vm192, %v1573, 0
    %1577 = vmatprep.subr.bf16.mxu0 0
    %1578 = vmatpush1.bf16.msra.mxu0 0
    %1579 = vmatprep.subr.bf16.mxu0 0
    %1580 = vmatpush1.bf16.msra.mxu0 0
    %1581 = vmatprep.subr.bf16.mxu0 0
    %1582 = vmatpush1.bf16.msra.mxu0 0
    %1583 = vmatprep.subr.bf16.mxu0 0
    %1584 = vmatpush1.bf16.msra.mxu0 0
    %1585 = vmatprep.subr.bf16.mxu0 0
    %1586 = vmatpush1.bf16.msra.mxu0 0
    %1587 = vmatprep.subr.bf16.mxu0 0
    %1588 = vmatpush1.bf16.msra.mxu0 0
    %1589 = vmatprep.subr.bf16.mxu0 0
    %1590 = vmatpush1.bf16.msra.mxu0 %v227
    %1591 = vmatprep.subr.bf16.mxu0 0
    %1592 = vmatpush1.bf16.msra.mxu0 %v226
    %1593 = vmatprep.subr.bf16.mxu0 0
    %1594 = vmatpush2.bf16.msra.mxu0 0
    %1595 = vmatprep.subr.bf16.mxu0 0
    %1596 = vmatpush2.bf16.msra.mxu0 0
    %1597 = vmatprep.subr.bf16.mxu0 0
    %1598 = vmatpush2.bf16.msra.mxu0 0
    %1599 = vmatprep.subr.bf16.mxu0 0
    %1600 = vmatpush2.bf16.msra.mxu0 0
    %1601 = vmatprep.subr.bf16.mxu0 0
    %1602 = vmatpush2.bf16.msra.mxu0 0
    %1603 = vmatprep.subr.bf16.mxu0 0
    %1604 = vmatpush2.bf16.msra.mxu0 0
    %1605 = vmatprep.subr.bf16.mxu0 0
    %1606 = vmatpush2.bf16.msra.mxu0 0
    %1607 = vmatprep.subr.bf16.mxu0 0
    %1608 = vmatpush2.bf16.msra.mxu0 0
    %1609 = vmatprep.mubr.bf16.mxu0 0
    %1610 = vmatmul.mubr.bf16.gmra.mxu0 %v1575
    %v1611 = vpop.f32.mrf.mxu0
    %v1612 = vadd.f32 0.0, %v1611
    %v1613 = vpop.f32.mrf.mxu0
    %v1614 = vpop.f32.mrf.mxu0
    %v1615 = vpop.f32.mrf.mxu0
    %1616 = vdwg.mxu0
    %v1618 = vrot.slane %v1612, 1
    %v1621 = vadd.f32 %v1570, %v1612
    %v1622 = vadd.f32 %v1571, %v1618
    %v1623 = vtanh.pop %v1621
    %v1624 = vtanh.pop %v1622
    %v1627 = vrot.slane %v1624, 7
    %v1628 = vsel %vm284, %v1627, %v1623
    %1630 = vst.msk [vmem:[#allocation2] sm:$0x3] %vm287, %v1628
    %v1631 = vpack.c.bf16 %v1623, %v1623
    %v1632 = vpack.c.bf16 %v1624, %v1624
    %v1633 = vld [vmem:[%s291] sm:$0x3]
    %v1634 = vpack.c.bf16 %v1633, %v1633
    %v1636 = vsel %vm192, %v1634, 0
    %1638 = vmatprep.subr.bf16.mxu0 0
    %1639 = vmatpush1.bf16.msra.mxu0 0
    %1640 = vmatprep.subr.bf16.mxu0 0
    %1641 = vmatpush1.bf16.msra.mxu0 0
    %1642 = vmatprep.subr.bf16.mxu0 0
    %1643 = vmatpush1.bf16.msra.mxu0 0
    %1644 = vmatprep.subr.bf16.mxu0 0
    %1645 = vmatpush1.bf16.msra.mxu0 0
    %1646 = vmatprep.subr.bf16.mxu0 0
    %1647 = vmatpush1.bf16.msra.mxu0 0
    %1648 = vmatprep.subr.bf16.mxu0 0
    %1649 = vmatpush1.bf16.msra.mxu0 0
    %1650 = vmatprep.subr.bf16.mxu0 0
    %1651 = vmatpush1.bf16.msra.mxu0 %v303
    %1652 = vmatprep.subr.bf16.mxu0 0
    %1653 = vmatpush1.bf16.msra.mxu0 %v302
    %1654 = vmatprep.subr.bf16.mxu0 0
    %1655 = vmatpush2.bf16.msra.mxu0 0
    %1656 = vmatprep.subr.bf16.mxu0 0
    %1657 = vmatpush2.bf16.msra.mxu0 0
    %1658 = vmatprep.subr.bf16.mxu0 0
    %1659 = vmatpush2.bf16.msra.mxu0 0
    %1660 = vmatprep.subr.bf16.mxu0 0
    %1661 = vmatpush2.bf16.msra.mxu0 0
    %1662 = vmatprep.subr.bf16.mxu0 0
    %1663 = vmatpush2.bf16.msra.mxu0 0
    %1664 = vmatprep.subr.bf16.mxu0 0
    %1665 = vmatpush2.bf16.msra.mxu0 0
    %1666 = vmatprep.subr.bf16.mxu0 0
    %1667 = vmatpush2.bf16.msra.mxu0 0
    %1668 = vmatprep.subr.bf16.mxu0 0
    %1669 = vmatpush2.bf16.msra.mxu0 0
    %1670 = vmatprep.mubr.bf16.mxu0 0
    %1671 = vmatmul.mubr.bf16.gmra.mxu0 %v1636
    %v1672 = vpop.f32.mrf.mxu0
    %v1673 = vadd.f32 0.0, %v1672
    %v1674 = vpop.f32.mrf.mxu0
    %v1675 = vpop.f32.mrf.mxu0
    %v1676 = vpop.f32.mrf.mxu0
    %1677 = vdwg.mxu0
    %v1680 = vunpack.c.l.b16 %v1631
    %v1681 = vunpack.c.l.b16 %v1632
    %v1682 = vrot.slane %v1681, 7
    %v1683 = vsel %vm284, %v1682, %v1680
    %v1684 = vpack.c.b16 %v1683, %v1683
    %v1686 = vsel %vm192, %v1684, 0
    %1688 = vmatprep.subr.bf16.mxu0 0
    %1689 = vmatpush1.bf16.msra.mxu0 0
    %1690 = vmatprep.subr.bf16.mxu0 0
    %1691 = vmatpush1.bf16.msra.mxu0 0
    %1692 = vmatprep.subr.bf16.mxu0 0
    %1693 = vmatpush1.bf16.msra.mxu0 0
    %1694 = vmatprep.subr.bf16.mxu0 0
    %1695 = vmatpush1.bf16.msra.mxu0 0
    %1696 = vmatprep.subr.bf16.mxu0 0
    %1697 = vmatpush1.bf16.msra.mxu0 0
    %1698 = vmatprep.subr.bf16.mxu0 0
    %1699 = vmatpush1.bf16.msra.mxu0 0
    %1700 = vmatprep.subr.bf16.mxu0 0
    %1701 = vmatpush1.bf16.msra.mxu0 %v365
    %1702 = vmatprep.subr.bf16.mxu0 0
    %1703 = vmatpush1.bf16.msra.mxu0 %v364
    %1704 = vmatprep.subr.bf16.mxu0 0
    %1705 = vmatpush2.bf16.msra.mxu0 0
    %1706 = vmatprep.subr.bf16.mxu0 0
    %1707 = vmatpush2.bf16.msra.mxu0 0
    %1708 = vmatprep.subr.bf16.mxu0 0
    %1709 = vmatpush2.bf16.msra.mxu0 0
    %1710 = vmatprep.subr.bf16.mxu0 0
    %1711 = vmatpush2.bf16.msra.mxu0 0
    %1712 = vmatprep.subr.bf16.mxu0 0
    %1713 = vmatpush2.bf16.msra.mxu0 0
    %1714 = vmatprep.subr.bf16.mxu0 0
    %1715 = vmatpush2.bf16.msra.mxu0 0
    %1716 = vmatprep.subr.bf16.mxu0 0
    %1717 = vmatpush2.bf16.msra.mxu0 0
    %1718 = vmatprep.subr.bf16.mxu0 0
    %1719 = vmatpush2.bf16.msra.mxu0 0
    %1720 = vmatprep.mubr.bf16.mxu0 0
    %1721 = vmatmul.mubr.bf16.gmra.mxu0 %v1686
    %v1722 = vpop.f32.mrf.mxu0
    %v1723 = vadd.f32 %v1673, %v1722
    %v1724 = vpop.f32.mrf.mxu0
    %v1725 = vpop.f32.mrf.mxu0
    %v1726 = vpop.f32.mrf.mxu0
    %1727 = vdwg.mxu0
    %v1728 = vadd.f32 %v1723, %v212
    %v1729 = vtanh.pop %v1728
    %1730 = vst.msk [vmem:[%s291] sm:$0x3] %vm287, %v1729
    %v1733 = vunpack.c.l.s4 1966171168
    %v1734 = vunpack.c.0.s8 %v1733
    %v1735 = vlaneseq
    %v1736 = vshrl.u32 %v1735, 7
    %v1737 = vsub.s32 %v1734, %v1736
    %v1738 = vrot.slane %v1729, %v1737
    %v1739 = vcombine.high %v1738, %v1738
    %v1741 = vunpack.c.l.s4 1966171168
    %v1742 = vunpack.c.0.s8 %v1741
    %v1743 = vlaneseq
    %v1744 = vshrl.u32 %v1743, 7
    %v1745 = vsub.s32 %v1742, %v1744
    %v1746 = vrot.slane %v1738, %v1745
    %v1748 = vunpack.c.l.s4 1966171168
    %v1749 = vunpack.c.0.s8 %v1748
    %v1750 = vlaneseq
    %v1751 = vshrl.u32 %v1750, 7
    %v1752 = vsub.s32 %v1749, %v1751
    %v1753 = vrot.slane %v1739, %v1752
    %1756 = vst.msk [vmem:[#allocation3 + $0x7] sm:$0x1] %vm439, %v1746
    %1757 = vst.msk [vmem:[#allocation3 + $0xf] sm:$0x1] %vm439, %v1753
    %v1758 = vld [vmem:[#allocation3] sm:$0xff]
    %v1759 = vld [vmem:[#allocation3 + $0x8] sm:$0xff]
    %v1760 = vpack.c.bf16 %v1758, %v1758
    %v1761 = vpack.c.bf16 %v1759, %v1759
    %v1762 = vld [vmem:[#allocation13] sm:$0xf]
    %v1763 = vld [vmem:[#allocation13 + $0x4] sm:$0xf]
    %v1764 = vld [vmem:[#allocation13 + $0x8] sm:$0xf]
    %v1765 = vld [vmem:[#allocation13 + $0xc] sm:$0xf]
    %v1766 = vld [vmem:[%s8] sm:$0x1]
    %v1768 = vlaneseq
    %v1769 = vshrl.u32 %v1768, 7
    %v1770 = vsub.s32 0, %v1769
    %v1771 = vrot.slane %v1766, %v1770
    %v1775 = vunpack.c.l.b16 %v1760
    %v1776 = vunpack.c.l.b16 %v1761
    %v1777 = vpack.c.b16 %v1776, %v1775
    %v1782 = vunpack.c.l.b16 %v1762
    %v1783 = vunpack.c.l.b16 %v1763
    %v1784 = vunpack.c.l.b16 %v1764
    %v1785 = vunpack.c.l.b16 %v1765
    %v1786 = vpack.c.b16 %v1783, %v1782
    %v1787 = vpack.c.b16 %v1785, %v1784
    %v1791 = vsel %vm192, %v1777, 0
    %1793 = vmatprep.subr.bf16.mxu0 0
    %1794 = vmatpush1.bf16.msra.mxu0 0
    %1795 = vmatprep.subr.bf16.mxu0 0
    %1796 = vmatpush1.bf16.msra.mxu0 0
    %1797 = vmatprep.subr.bf16.mxu0 0
    %1798 = vmatpush1.bf16.msra.mxu0 0
    %1799 = vmatprep.subr.bf16.mxu0 0
    %1800 = vmatpush1.bf16.msra.mxu0 0
    %1801 = vmatprep.subr.bf16.mxu0 0
    %1802 = vmatpush1.bf16.msra.mxu0 0
    %1803 = vmatprep.subr.bf16.mxu0 0
    %1804 = vmatpush1.bf16.msra.mxu0 0
    %1805 = vmatprep.subr.bf16.mxu0 0
    %1806 = vmatpush1.bf16.msra.mxu0 %v1787
    %1807 = vmatprep.subr.bf16.mxu0 0
    %1808 = vmatpush1.bf16.msra.mxu0 %v1786
    %1809 = vmatprep.subr.bf16.mxu0 0
    %1810 = vmatpush2.bf16.msra.mxu0 0
    %1811 = vmatprep.subr.bf16.mxu0 0
    %1812 = vmatpush2.bf16.msra.mxu0 0
    %1813 = vmatprep.subr.bf16.mxu0 0
    %1814 = vmatpush2.bf16.msra.mxu0 0
    %1815 = vmatprep.subr.bf16.mxu0 0
    %1816 = vmatpush2.bf16.msra.mxu0 0
    %1817 = vmatprep.subr.bf16.mxu0 0
    %1818 = vmatpush2.bf16.msra.mxu0 0
    %1819 = vmatprep.subr.bf16.mxu0 0
    %1820 = vmatpush2.bf16.msra.mxu0 0
    %1821 = vmatprep.subr.bf16.mxu0 0
    %1822 = vmatpush2.bf16.msra.mxu0 0
    %1823 = vmatprep.subr.bf16.mxu0 0
    %1824 = vmatpush2.bf16.msra.mxu0 0
    %1825 = vmatprep.mubr.bf16.mxu0 0
    %1826 = vmatmul.mubr.bf16.gmra.mxu0 %v1791
    %v1827 = vpop.f32.mrf.mxu0
    %v1828 = vadd.f32 %v1771, %v1827
    %v1829 = vpop.f32.mrf.mxu0
    %v1830 = vpop.f32.mrf.mxu0
    %v1831 = vadd.f32 %v1771, %v1830
    %v1832 = vpop.f32.mrf.mxu0
    %1833 = vdwg.mxu0
    %1834 = vst.msk [vmem:[#allocation15] sm:$0xff] %vm192, %v1828
    %1835 = vst.msk [vmem:[#allocation15 + $0x8] sm:$0xff] %vm192, %v1831
    // Predicated region
    $region66: #{tpu_custom_call.1} parent=1 // pred_check
      _
    $region67: #{tpu_custom_call.1} parent=1 // pred_check_branch
      %1837 = sbr.rel (0) target = $region69
    $region68: #{tpu_custom_call.1} parent=1 // pred_region
      %s1839 = ssub.s32 256, 256
      %1840 = vsyncadd [#allocation6], %s1839
      %s1841 = sshll.u32 [#allocation15], 4
      %s1842 = int_to_ptr.vmem [resolvable:$true] %s1841
      %1847 = dma.vmem_to_hbm [thread:$0]  %s1842, 256, %s9, [#allocation6], 128, 128, 8
    $region69: #{tpu_custom_call.1} parent=1 // pred_fallthru
      _
    // Predicated region
    $region70: #{tpu_custom_call.1} parent=1 // pred_check
      _
    $region71: #{tpu_custom_call.1} parent=1 // pred_check_branch
      %1849 = sbr.rel (0) target = $region73
    $region72: #{tpu_custom_call.1} parent=1 // pred_region
      %1850 = dma.done [#allocation6], 256
    $region73: #{tpu_custom_call.1} parent=1 // pred_fallthru
      _
    %1851 = vsyncpa [#allocation5], 1
    %1852 = vsyncpa [#allocation8], 1
    %1853 = vsyncpa [#allocation11], 1
    %1854 = vsyncpa [#allocation14], 1
    %1855 = vsyncpa [#allocation6], 1

// kernel: tpu_custom_call.1
$region0: #{tpu_custom_call.1}
  #allocation0 [shape = 'u32[]', space=smem, size = 0x4, offset = 0x4, fixed_abs, tag = 'smem constant byte address 0x4 - core index']
  #allocation1 [shape = 'u32[144,128]{1,0:T(1,128)}', space=vmem, size = 0x12000, scoped, tag = 'internal scratch']
  #allocation2 [shape = 'f32[2,2,32]{2,1,0:T(2,128)}', space=vmem, size = 0x800, scoped, tag = 'scratch operand']
  #allocation3 [shape = 'f32[2,8,32]{2,1,0:T(8,128)}', space=vmem, size = 0x2000, scoped, tag = 'scratch operand']
  %s0 = inlined_call_operand.hbm [shape: f32[2,8,16], index: 0, kind: input, shape index: {}]
  %s1 = inlined_call_operand.hbm [shape: bf16[16,32], index: 1, kind: input, shape index: {}]
  %s2 = inlined_call_operand.hbm [shape: bf16[32,32], index: 2, kind: input, shape index: {}]
  %s3 = inlined_call_operand.vmem [shape: f32[1,32], index: 3, kind: input, shape index: {}]
  %s4 = inlined_call_operand.hbm [shape: bf16[1,32,32], index: 4, kind: input, shape index: {}]
  %s5 = inlined_call_operand.hbm [shape: bf16[1,32,32], index: 5, kind: input, shape index: {}]
  %s6 = inlined_call_operand.vmem [shape: f32[1,1,32], index: 6, kind: input, shape index: {}]
  %s7 = inlined_call_operand.hbm [shape: bf16[32,32], index: 7, kind: input, shape index: {}]
  %s8 = inlined_call_operand.vmem [shape: f32[1,32], index: 8, kind: input, shape index: {}]
  %s9 = inlined_call_operand.hbm [shape: f32[2,8,32], index: 9, kind: output, shape index: {}]
  %s10 = sld [smem:[#allocation0]]
  $region74: #{tpu_custom_call.1} parent=0
    _
  %s12 = ssub.s32 1, %s10
  %s13 = scalar_select 0, %s12, %s10
  $region1: #{tpu_custom_call.1} parent=0
    #allocation4 [shape = 'u8[8192]{0}', space=vmem, size = 0x2000, scoped, tag = 'input window, operand 0, single buffered']
    #allocation5 [shape = 's32[1]{0}', space=sflag, size = 0x4, scoped, tag = 'scoped memory for tpu_custom_call.1']
    #allocation6 [shape = 's32[1]{0}', space=sflag, size = 0x4, scoped, tag = 'scoped memory for tpu_custom_call.1']
    #allocation7 [shape = 'u8[4096]{0}', space=vmem, size = 0x1000, scoped, tag = 'input window, operand 1, single buffered']
    #allocation8 [shape = 's32[1]{0}', space=sflag, size = 0x4, scoped, tag = 'scoped memory for tpu_custom_call.1']
    #allocation9 [shape = 'u8[8192]{0}', space=vmem, size = 0x2000, scoped, tag = 'input window, operand 2, single buffered']
    #allocation10 [shape = 'u8[8192]{0}', space=vmem, size = 0x2000, scoped, tag = 'input window, operand 4, single buffered']
    #allocation11 [shape = 's32[1]{0}', space=sflag, size = 0x4, scoped, tag = 'scoped memory for tpu_custom_call.1']
    #allocation12 [shape = 'u8[8192]{0}', space=vmem, size = 0x2000, scoped, tag = 'input window, operand 5, single buffered']
    #allocation13 [shape = 'u8[8192]{0}', space=vmem, size = 0x2000, scoped, tag = 'input window, operand 7, single buffered']
    #allocation14 [shape = 's32[1]{0}', space=sflag, size = 0x4, scoped, tag = 'scoped memory for tpu_custom_call.1']
    #allocation15 [shape = 'u8[8192]{0}', space=vmem, size = 0x2000, scoped, tag = 'output window, operand 0, single buffered']
    %14 = vsyncpa [#allocation5], 0
    %15 = vsyncpa [#allocation8], 0
    %16 = vsyncpa [#allocation11], 0
    %17 = vsyncpa [#allocation14], 0
    %18 = vsyncpa [#allocation6], 0
    // Predicated region
    $region2: #{tpu_custom_call.1} parent=1 // pred_check
      _
    $region3: #{tpu_custom_call.1} parent=1 // pred_check_branch
      %20 = sbr.rel (0) target = $region5
    $region4: #{tpu_custom_call.1} parent=1 // pred_region
      %s22 = ssub.s32 256, 256
      %23 = vsyncadd [#allocation5], %s22
      %s24 = sshll.u32 [#allocation4], 4
      %s25 = int_to_ptr.vmem [resolvable:$true] %s24
      %30 = dma.hbm_to_vmem [thread:$0]  %s0, 256, %s25, [#allocation5], 128, 128, 8
    $region5: #{tpu_custom_call.1} parent=1 // pred_fallthru
      _
    // Predicated region
    $region6: #{tpu_custom_call.1} parent=1 // pred_check
      _
    $region7: #{tpu_custom_call.1} parent=1 // pred_check_branch
      %32 = sbr.rel (0) target = $region9
    $region8: #{tpu_custom_call.1} parent=1 // pred_region
      %s34 = ssub.s32 128, 128
      %35 = vsyncadd [#allocation8], %s34
      %s36 = sshll.u32 [#allocation7], 4
      %s37 = int_to_ptr.vmem [resolvable:$true] %s36
      %42 = dma.hbm_to_vmem [thread:$0]  %s1, 128, %s37, [#allocation8], 64, 64, 4
    $region9: #{tpu_custom_call.1} parent=1 // pred_fallthru
      _
    // Predicated region
    $region10: #{tpu_custom_call.1} parent=1 // pred_check
      _
    $region11: #{tpu_custom_call.1} parent=1 // pred_check_branch
      %44 = sbr.rel (0) target = $region13
    $region12: #{tpu_custom_call.1} parent=1 // pred_region
      %s46 = ssub.s32 256, 256
      %47 = vsyncadd [#allocation8], %s46
      %s48 = sshll.u32 [#allocation9], 4
      %s49 = int_to_ptr.vmem [resolvable:$true] %s48
      %54 = dma.hbm_to_vmem [thread:$0]  %s2, 256, %s49, [#allocation8], 64, 64, 4
    $region13: #{tpu_custom_call.1} parent=1 // pred_fallthru
      _
    // Predicated region
    $region14: #{tpu_custom_call.1} parent=1 // pred_check
      _
    $region15: #{tpu_custom_call.1} parent=1 // pred_check_branch
      %56 = sbr.rel (0) target = $region17
    $region16: #{tpu_custom_call.1} parent=1 // pred_region
      _
    $region17: #{tpu_custom_call.1} parent=1 // pred_fallthru
      _
    // Predicated region
    $region18: #{tpu_custom_call.1} parent=1 // pred_check
      _
    $region19: #{tpu_custom_call.1} parent=1 // pred_check_branch
      %58 = sbr.rel (0) target = $region21
    $region20: #{tpu_custom_call.1} parent=1 // pred_region
      %s60 = ssub.s32 256, 256
      %61 = vsyncadd [#allocation11], %s60
      %s62 = sshll.u32 [#allocation10], 4
      %s63 = int_to_ptr.vmem [resolvable:$true] %s62
      %68 = dma.hbm_to_vmem [thread:$0]  %s4, 256, %s63, [#allocation11], 64, 64, 4
    $region21: #{tpu_custom_call.1} parent=1 // pred_fallthru
      _
    // Predicated region
    $region22: #{tpu_custom_call.1} parent=1 // pred_check
      _
    $region23: #{tpu_custom_call.1} parent=1 // pred_check_branch
      %70 = sbr.rel (0) target = $region25
    $region24: #{tpu_custom_call.1} parent=1 // pred_region
      %s72 = ssub.s32 256, 256
      %73 = vsyncadd [#allocation11], %s72
      %s74 = sshll.u32 [#allocation12], 4
      %s75 = int_to_ptr.vmem [resolvable:$true] %s74
      %80 = dma.hbm_to_vmem [thread:$0]  %s5, 256, %s75, [#allocation11], 64, 64, 4
    $region25: #{tpu_custom_call.1} parent=1 // pred_fallthru
      _
    // Predicated region
    $region26: #{tpu_custom_call.1} parent=1 // pred_check
      _
    $region27: #{tpu_custom_call.1} parent=1 // pred_check_branch
      %82 = sbr.rel (0) target = $region29
    $region28: #{tpu_custom_call.1} parent=1 // pred_region
      _
    $region29: #{tpu_custom_call.1} parent=1 // pred_fallthru
      _
    // Predicated region
    $region30: #{tpu_custom_call.1} parent=1 // pred_check
      _
    $region31: #{tpu_custom_call.1} parent=1 // pred_check_branch
      %84 = sbr.rel (0) target = $region33
    $region32: #{tpu_custom_call.1} parent=1 // pred_region
      %s86 = ssub.s32 256, 256
      %87 = vsyncadd [#allocation14], %s86
      %s88 = sshll.u32 [#allocation13], 4
      %s89 = int_to_ptr.vmem [resolvable:$true] %s88
      %94 = dma.hbm_to_vmem [thread:$0]  %s7, 256, %s89, [#allocation14], 64, 64, 4
    $region33: #{tpu_custom_call.1} parent=1 // pred_fallthru
      _
    // Predicated region
    $region34: #{tpu_custom_call.1} parent=1 // pred_check
      _
    $region35: #{tpu_custom_call.1} parent=1 // pred_check_branch
      %96 = sbr.rel (0) target = $region37
    $region36: #{tpu_custom_call.1} parent=1 // pred_region
      _
    $region37: #{tpu_custom_call.1} parent=1 // pred_fallthru
      _
    // Predicated region
    $region38: #{tpu_custom_call.1} parent=1 // pred_check
      _
    $region39: #{tpu_custom_call.1} parent=1 // pred_check_branch
      %98 = sbr.rel (0) target = $region41
    $region40: #{tpu_custom_call.1} parent=1 // pred_region
      %99 = dma.done [#allocation5], 256
    $region41: #{tpu_custom_call.1} parent=1 // pred_fallthru
      _
    // Predicated region
    $region42: #{tpu_custom_call.1} parent=1 // pred_check
      _
    $region43: #{tpu_custom_call.1} parent=1 // pred_check_branch
      %101 = sbr.rel (0) target = $region45
    $region44: #{tpu_custom_call.1} parent=1 // pred_region
      %102 = dma.done [#allocation8], 128
    $region45: #{tpu_custom_call.1} parent=1 // pred_fallthru
      _
    // Predicated region
    $region46: #{tpu_custom_call.1} parent=1 // pred_check
      _
    $region47: #{tpu_custom_call.1} parent=1 // pred_check_branch
      %104 = sbr.rel (0) target = $region49
    $region48: #{tpu_custom_call.1} parent=1 // pred_region
      %105 = dma.done [#allocation8], 256
    $region49: #{tpu_custom_call.1} parent=1 // pred_fallthru
      _
    // Predicated region
    $region50: #{tpu_custom_call.1} parent=1 // pred_check
      _
    $region51: #{tpu_custom_call.1} parent=1 // pred_check_branch
      %107 = sbr.rel (0) target = $region53
    $region52: #{tpu_custom_call.1} parent=1 // pred_region
      %108 = dma.done [#allocation11], 256
    $region53: #{tpu_custom_call.1} parent=1 // pred_fallthru
      _
    // Predicated region
    $region54: #{tpu_custom_call.1} parent=1 // pred_check
      _
    $region55: #{tpu_custom_call.1} parent=1 // pred_check_branch
      %110 = sbr.rel (0) target = $region57
    $region56: #{tpu_custom_call.1} parent=1 // pred_region
      %111 = dma.done [#allocation11], 256
    $region57: #{tpu_custom_call.1} parent=1 // pred_fallthru
      _
    // Predicated region
    $region58: #{tpu_custom_call.1} parent=1 // pred_check
      _
    $region59: #{tpu_custom_call.1} parent=1 // pred_check_branch
      %113 = sbr.rel (0) target = $region61
    $region60: #{tpu_custom_call.1} parent=1 // pred_region
      %114 = dma.done [#allocation14], 256
    $region61: #{tpu_custom_call.1} parent=1 // pred_fallthru
      _
    %p116 = scmp.eq.s32.totalorder 0, 0
    // Predicated region
    $region62: #{tpu_custom_call.1} parent=1 // pred_check
      %p117 = pneg %p116
    $region63: #{tpu_custom_call.1} parent=1 // pred_check_branch
      %119 = sbr.rel (%p117) target = $region65
    $region64: #{tpu_custom_call.1} parent=1 // pred_region
      %vm120 = vcmask 254976
      %121 = vst.msk [vmem:[#allocation2] sm:$0x3] %vm120, 0.0
      %122 = vst.msk [vmem:[#allocation2 + $0x2] sm:$0x3] %vm120, 0.0
    $region65: #{tpu_custom_call.1} parent=1 // pred_fallthru
      _
    %v123 = vld [vmem:[#allocation4] sm:$0xff]
    %v124 = vld [vmem:[#allocation4 + $0x8] sm:$0xff]
    %v125 = vpack.c.bf16 %v123, %v123
    %v126 = vpack.c.bf16 %v124, %v124
    %v127 = vld [vmem:[#allocation7] sm:$0xf]
    %v128 = vld [vmem:[#allocation7 + $0x4] sm:$0xf]
    %v129 = vld [vmem:[%s3] sm:$0x1]
    %v131 = vlaneseq
    %v132 = vshrl.u32 %v131, 7
    %v133 = vsub.s32 0, %v132
    %v134 = vrot.slane %v129, %v133
    %v138 = vunpack.c.l.b16 %v125
    %v139 = vunpack.c.l.b16 %v126
    %v140 = vpack.c.b16 %v139, %v138
    %v143 = vunpack.c.l.b16 %v127
    %v144 = vunpack.c.l.b16 %v128
    %v145 = vpack.c.b16 %v144, %v143
    %vm147 = vcmask 130048
    %v149 = vsel %vm147, %v140, 0
    %151 = vmatprep.subr.bf16.mxu0 0
    %152 = vmatpush1.bf16.msra.mxu0 0
    %153 = vmatprep.subr.bf16.mxu0 0
    %154 = vmatpush1.bf16.msra.mxu0 0
    %155 = vmatprep.subr.bf16.mxu0 0
    %156 = vmatpush1.bf16.msra.mxu0 0
    %157 = vmatprep.subr.bf16.mxu0 0
    %158 = vmatpush1.bf16.msra.mxu0 0
    %159 = vmatprep.subr.bf16.mxu0 0
    %160 = vmatpush1.bf16.msra.mxu0 0
    %161 = vmatprep.subr.bf16.mxu0 0
    %162 = vmatpush1.bf16.msra.mxu0 0
    %163 = vmatprep.subr.bf16.mxu0 0
    %164 = vmatpush1.bf16.msra.mxu0 0
    %165 = vmatprep.subr.bf16.mxu0 0
    %166 = vmatpush1.bf16.msra.mxu0 %v145
    %167 = vmatprep.subr.bf16.mxu0 0
    %168 = vmatpush2.bf16.msra.mxu0 0
    %169 = vmatprep.subr.bf16.mxu0 0
    %170 = vmatpush2.bf16.msra.mxu0 0
    %171 = vmatprep.subr.bf16.mxu0 0
    %172 = vmatpush2.bf16.msra.mxu0 0
    %173 = vmatprep.subr.bf16.mxu0 0
    %174 = vmatpush2.bf16.msra.mxu0 0
    %175 = vmatprep.subr.bf16.mxu0 0
    %176 = vmatpush2.bf16.msra.mxu0 0
    %177 = vmatprep.subr.bf16.mxu0 0
    %178 = vmatpush2.bf16.msra.mxu0 0
    %179 = vmatprep.subr.bf16.mxu0 0
    %180 = vmatpush2.bf16.msra.mxu0 0
    %181 = vmatprep.subr.bf16.mxu0 0
    %182 = vmatpush2.bf16.msra.mxu0 0
    %183 = vmatprep.mubr.bf16.mxu0 0
    %184 = vmatmul.mubr.bf16.gmra.mxu0 %v149
    %v185 = vpop.f32.mrf.mxu0
    %v186 = vadd.f32 %v134, %v185
    %v187 = vpop.f32.mrf.mxu0
    %v188 = vpop.f32.mrf.mxu0
    %v189 = vadd.f32 %v134, %v188
    %v190 = vpop.f32.mrf.mxu0
    %191 = vdwg.mxu0
    %vm192 = vcmask 261120
    %193 = vst.msk [vmem:[#allocation3] sm:$0xff] %vm192, %v186
    %194 = vst.msk [vmem:[#allocation3 + $0x8] sm:$0xff] %vm192, %v189
    %v195 = vld [vmem:[#allocation9] sm:$0xf]
    %v196 = vld [vmem:[#allocation9 + $0x4] sm:$0xf]
    %v197 = vld [vmem:[#allocation9 + $0x8] sm:$0xf]
    %v198 = vld [vmem:[#allocation9 + $0xc] sm:$0xf]
    %v199 = vld [vmem:[#allocation10] sm:$0xf]
    %v200 = vld [vmem:[#allocation10 + $0x4] sm:$0xf]
    %v201 = vld [vmem:[#allocation10 + $0x8] sm:$0xf]
    %v202 = vld [vmem:[#allocation10 + $0xc] sm:$0xf]
    %v203 = vld [vmem:[#allocation12] sm:$0xf]
    %v204 = vld [vmem:[#allocation12 + $0x4] sm:$0xf]
    %v205 = vld [vmem:[#allocation12 + $0x8] sm:$0xf]
    %v206 = vld [vmem:[#allocation12 + $0xc] sm:$0xf]
    %v207 = vld [vmem:[%s6] sm:$0x1]
    %v209 = vlaneseq
    %v210 = vshrl.u32 %v209, 7
    %v211 = vsub.s32 0, %v210
    %v212 = vrot.slane %v207, %v211
    %v214 = vld [vmem:[#allocation3] sm:$0x1]
    %v215 = vld [vmem:[#allocation3 + $0x8] sm:$0x1]
    %v216 = vld [vmem:[#allocation2] sm:$0x3]
    %v217 = vpack.c.bf16 %v216, %v216
    %v222 = vunpack.c.l.b16 %v195
    %v223 = vunpack.c.l.b16 %v196
    %v224 = vunpack.c.l.b16 %v197
    %v225 = vunpack.c.l.b16 %v198
    %v226 = vpack.c.b16 %v223, %v222
    %v227 = vpack.c.b16 %v225, %v224
    %v231 = vsel %vm192, %v217, 0
    %233 = vmatprep.subr.bf16.mxu0 0
    %234 = vmatpush1.bf16.msra.mxu0 0
    %235 = vmatprep.subr.bf16.mxu0 0
    %236 = vmatpush1.bf16.msra.mxu0 0
    %237 = vmatprep.subr.bf16.mxu0 0
    %238 = vmatpush1.bf16.msra.mxu0 0
    %239 = vmatprep.subr.bf16.mxu0 0
    %240 = vmatpush1.bf16.msra.mxu0 0
    %241 = vmatprep.subr.bf16.mxu0 0
    %242 = vmatpush1.bf16.msra.mxu0 0
    %243 = vmatprep.subr.bf16.mxu0 0
    %244 = vmatpush1.bf16.msra.mxu0 0
    %245 = vmatprep.subr.bf16.mxu0 0
    %246 = vmatpush1.bf16.msra.mxu0 %v227
    %247 = vmatprep.subr.bf16.mxu0 0
    %248 = vmatpush1.bf16.msra.mxu0 %v226
    %249 = vmatprep.subr.bf16.mxu0 0
    %250 = vmatpush2.bf16.msra.mxu0 0
    %251 = vmatprep.subr.bf16.mxu0 0
    %252 = vmatpush2.bf16.msra.mxu0 0
    %253 = vmatprep.subr.bf16.mxu0 0
    %254 = vmatpush2.bf16.msra.mxu0 0
    %255 = vmatprep.subr.bf16.mxu0 0
    %256 = vmatpush2.bf16.msra.mxu0 0
    %257 = vmatprep.subr.bf16.mxu0 0
    %258 = vmatpush2.bf16.msra.mxu0 0
    %259 = vmatprep.subr.bf16.mxu0 0
    %260 = vmatpush2.bf16.msra.mxu0 0
    %261 = vmatprep.subr.bf16.mxu0 0
    %262 = vmatpush2.bf16.msra.mxu0 0
    %263 = vmatprep.subr.bf16.mxu0 0
    %264 = vmatpush2.bf16.msra.mxu0 0
    %265 = vmatprep.mubr.bf16.mxu0 0
    %266 = vmatmul.mubr.bf16.gmra.mxu0 %v231
    %v267 = vpop.f32.mrf.mxu0
    %v268 = vadd.f32 0.0, %v267
    %v269 = vpop.f32.mrf.mxu0
    %v270 = vpop.f32.mrf.mxu0
    %v271 = vpop.f32.mrf.mxu0
    %272 = vdwg.mxu0
    %v274 = vrot.slane %v268, 1
    %v277 = vadd.f32 %v214, %v268
    %v278 = vadd.f32 %v215, %v274
    %v279 = vtanh.pop %v277
    %v280 = vtanh.pop %v278
    %v283 = vrot.slane %v280, 7
    %vm284 = vcmask 1041409
    %v285 = vsel %vm284, %v283, %v279
    %vm287 = vcmask 254976
    %288 = vst.msk [vmem:[#allocation2] sm:$0x3] %vm287, %v285
    %v289 = vpack.c.bf16 %v279, %v279
    %v290 = vpack.c.bf16 %v280, %v280
    %s291 = scalar_lea.vmem [#allocation2], 2
    %v292 = vld [vmem:[%s291] sm:$0x3]
    %v293 = vpack.c.bf16 %v292, %v292
    %v298 = vunpack.c.l.b16 %v203
    %v299 = vunpack.c.l.b16 %v204
    %v300 = vunpack.c.l.b16 %v205
    %v301 = vunpack.c.l.b16 %v206
    %v302 = vpack.c.b16 %v299, %v298
    %v303 = vpack.c.b16 %v301, %v300
    %v307 = vsel %vm192, %v293, 0
    %309 = vmatprep.subr.bf16.mxu0 0
    %310 = vmatpush1.bf16.msra.mxu0 0
    %311 = vmatprep.subr.bf16.mxu0 0
    %312 = vmatpush1.bf16.msra.mxu0 0
    %313 = vmatprep.subr.bf16.mxu0 0
    %314 = vmatpush1.bf16.msra.mxu0 0
    %315 = vmatprep.subr.bf16.mxu0 0
    %316 = vmatpush1.bf16.msra.mxu0 0
    %317 = vmatprep.subr.bf16.mxu0 0
    %318 = vmatpush1.bf16.msra.mxu0 0
    %319 = vmatprep.subr.bf16.mxu0 0
    %320 = vmatpush1.bf16.msra.mxu0 0
    %321 = vmatprep.subr.bf16.mxu0 0
    %322 = vmatpush1.bf16.msra.mxu0 %v303
    %323 = vmatprep.subr.bf16.mxu0 0
    %324 = vmatpush1.bf16.msra.mxu0 %v302
    %325 = vmatprep.subr.bf16.mxu0 0
    %326 = vmatpush2.bf16.msra.mxu0 0
    %327 = vmatprep.subr.bf16.mxu0 0
    %328 = vmatpush2.bf16.msra.mxu0 0
    %329 = vmatprep.subr.bf16.mxu0 0
    %330 = vmatpush2.bf16.msra.mxu0 0
    %331 = vmatprep.subr.bf16.mxu0 0
    %332 = vmatpush2.bf16.msra.mxu0 0
    %333 = vmatprep.subr.bf16.mxu0 0
    %334 = vmatpush2.bf16.msra.mxu0 0
    %335 = vmatprep.subr.bf16.mxu0 0
    %336 = vmatpush2.bf16.msra.mxu0 0
    %337 = vmatprep.subr.bf16.mxu0 0
    %338 = vmatpush2.bf16.msra.mxu0 0
    %339 = vmatprep.subr.bf16.mxu0 0
    %340 = vmatpush2.bf16.msra.mxu0 0
    %341 = vmatprep.mubr.bf16.mxu0 0
    %342 = vmatmul.mubr.bf16.gmra.mxu0 %v307
    %v343 = vpop.f32.mrf.mxu0
    %v344 = vadd.f32 0.0, %v343
    %v345 = vpop.f32.mrf.mxu0
    %v346 = vpop.f32.mrf.mxu0
    %v347 = vpop.f32.mrf.mxu0
    %348 = vdwg.mxu0
    %v351 = vunpack.c.l.b16 %v289
    %v352 = vunpack.c.l.b16 %v290
    %v353 = vrot.slane %v352, 7
    %v354 = vsel %vm284, %v353, %v351
    %v355 = vpack.c.b16 %v354, %v354
    %v360 = vunpack.c.l.b16 %v199
    %v361 = vunpack.c.l.b16 %v200
    %v362 = vunpack.c.l.b16 %v201
    %v363 = vunpack.c.l.b16 %v202
    %v364 = vpack.c.b16 %v361, %v360
    %v365 = vpack.c.b16 %v363, %v362
    %v369 = vsel %vm192, %v355, 0
    %371 = vmatprep.subr.bf16.mxu0 0
    %372 = vmatpush1.bf16.msra.mxu0 0
    %373 = vmatprep.subr.bf16.mxu0 0
    %374 = vmatpush1.bf16.msra.mxu0 0
    %375 = vmatprep.subr.bf16.mxu0 0
    %376 = vmatpush1.bf16.msra.mxu0 0
    %377 = vmatprep.subr.bf16.mxu0 0
    %378 = vmatpush1.bf16.msra.mxu0 0
    %379 = vmatprep.subr.bf16.mxu0 0
    %380 = vmatpush1.bf16.msra.mxu0 0
    %381 = vmatprep.subr.bf16.mxu0 0
    %382 = vmatpush1.bf16.msra.mxu0 0
    %383 = vmatprep.subr.bf16.mxu0 0
    %384 = vmatpush1.bf16.msra.mxu0 %v365
    %385 = vmatprep.subr.bf16.mxu0 0
    %386 = vmatpush1.bf16.msra.mxu0 %v364
    %387 = vmatprep.subr.bf16.mxu0 0
    %388 = vmatpush2.bf16.msra.mxu0 0
    %389 = vmatprep.subr.bf16.mxu0 0
    %390 = vmatpush2.bf16.msra.mxu0 0
    %391 = vmatprep.subr.bf16.mxu0 0
    %392 = vmatpush2.bf16.msra.mxu0 0
    %393 = vmatprep.subr.bf16.mxu0 0
    %394 = vmatpush2.bf16.msra.mxu0 0
    %395 = vmatprep.subr.bf16.mxu0 0
    %396 = vmatpush2.bf16.msra.mxu0 0
    %397 = vmatprep.subr.bf16.mxu0 0
    %398 = vmatpush2.bf16.msra.mxu0 0
    %399 = vmatprep.subr.bf16.mxu0 0
    %400 = vmatpush2.bf16.msra.mxu0 0
    %401 = vmatprep.subr.bf16.mxu0 0
    %402 = vmatpush2.bf16.msra.mxu0 0
    %403 = vmatprep.mubr.bf16.mxu0 0
    %404 = vmatmul.mubr.bf16.gmra.mxu0 %v369
    %v405 = vpop.f32.mrf.mxu0
    %v406 = vadd.f32 %v344, %v405
    %v407 = vpop.f32.mrf.mxu0
    %v408 = vpop.f32.mrf.mxu0
    %v409 = vpop.f32.mrf.mxu0
    %410 = vdwg.mxu0
    %v411 = vadd.f32 %v406, %v212
    %v412 = vtanh.pop %v411
    %413 = vst.msk [vmem:[%s291] sm:$0x3] %vm287, %v412
    %v416 = vunpack.c.l.s4 1966171168
    %v417 = vunpack.c.0.s8 %v416
    %v418 = vlaneseq
    %v419 = vshrl.u32 %v418, 7
    %v420 = vsub.s32 %v417, %v419
    %v421 = vrot.slane %v412, %v420
    %v422 = vcombine.high %v421, %v421
    %v424 = vunpack.c.l.s4 1966171168
    %v425 = vunpack.c.0.s8 %v424
    %v426 = vlaneseq
    %v427 = vshrl.u32 %v426, 7
    %v428 = vsub.s32 %v425, %v427
    %v429 = vrot.slane %v421, %v428
    %v431 = vunpack.c.l.s4 1966171168
    %v432 = vunpack.c.0.s8 %v431
    %v433 = vlaneseq
    %v434 = vshrl.u32 %v433, 7
    %v435 = vsub.s32 %v432, %v434
    %v436 = vrot.slane %v422, %v435
    %vm439 = vcmask 253952
    %440 = vst.msk [vmem:[#allocation3] sm:$0x1] %vm439, %v429
    %441 = vst.msk [vmem:[#allocation3 + $0x8] sm:$0x1] %vm439, %v436
    %v442 = vld [vmem:[#allocation3 + $0x1] sm:$0x1]
    %v443 = vld [vmem:[#allocation3 + $0x9] sm:$0x1]
    %v444 = vld [vmem:[#allocation2] sm:$0x3]
    %v445 = vpack.c.bf16 %v444, %v444
    %v447 = vsel %vm192, %v445, 0
    %449 = vmatprep.subr.bf16.mxu0 0
    %450 = vmatpush1.bf16.msra.mxu0 0
    %451 = vmatprep.subr.bf16.mxu0 0
    %452 = vmatpush1.bf16.msra.mxu0 0
    %453 = vmatprep.subr.bf16.mxu0 0
    %454 = vmatpush1.bf16.msra.mxu0 0
    %455 = vmatprep.subr.bf16.mxu0 0
    %456 = vmatpush1.bf16.msra.mxu0 0
    %457 = vmatprep.subr.bf16.mxu0 0
    %458 = vmatpush1.bf16.msra.mxu0 0
    %459 = vmatprep.subr.bf16.mxu0 0
    %460 = vmatpush1.bf16.msra.mxu0 0
    %461 = vmatprep.subr.bf16.mxu0 0
    %462 = vmatpush1.bf16.msra.mxu0 %v227
    %463 = vmatprep.subr.bf16.mxu0 0
    %464 = vmatpush1.bf16.msra.mxu0 %v226
    %465 = vmatprep.subr.bf16.mxu0 0
    %466 = vmatpush2.bf16.msra.mxu0 0
    %467 = vmatprep.subr.bf16.mxu0 0
    %468 = vmatpush2.bf16.msra.mxu0 0
    %469 = vmatprep.subr.bf16.mxu0 0
    %470 = vmatpush2.bf16.msra.mxu0 0
    %471 = vmatprep.subr.bf16.mxu0 0
    %472 = vmatpush2.bf16.msra.mxu0 0
    %473 = vmatprep.subr.bf16.mxu0 0
    %474 = vmatpush2.bf16.msra.mxu0 0
    %475 = vmatprep.subr.bf16.mxu0 0
    %476 = vmatpush2.bf16.msra.mxu0 0
    %477 = vmatprep.subr.bf16.mxu0 0
    %478 = vmatpush2.bf16.msra.mxu0 0
    %479 = vmatprep.subr.bf16.mxu0 0
    %480 = vmatpush2.bf16.msra.mxu0 0
    %481 = vmatprep.mubr.bf16.mxu0 0
    %482 = vmatmul.mubr.bf16.gmra.mxu0 %v447
    %v483 = vpop.f32.mrf.mxu0
    %v484 = vadd.f32 0.0, %v483
    %v485 = vpop.f32.mrf.mxu0
    %v486 = vpop.f32.mrf.mxu0
    %v487 = vpop.f32.mrf.mxu0
    %488 = vdwg.mxu0
    %v490 = vrot.slane %v484, 1
    %v493 = vadd.f32 %v442, %v484
    %v494 = vadd.f32 %v443, %v490
    %v495 = vtanh.pop %v493
    %v496 = vtanh.pop %v494
    %v499 = vrot.slane %v496, 7
    %v500 = vsel %vm284, %v499, %v495
    %502 = vst.msk [vmem:[#allocation2] sm:$0x3] %vm287, %v500
    %v503 = vpack.c.bf16 %v495, %v495
    %v504 = vpack.c.bf16 %v496, %v496
    %v505 = vld [vmem:[%s291] sm:$0x3]
    %v506 = vpack.c.bf16 %v505, %v505
    %v508 = vsel %vm192, %v506, 0
    %510 = vmatprep.subr.bf16.mxu0 0
    %511 = vmatpush1.bf16.msra.mxu0 0
    %512 = vmatprep.subr.bf16.mxu0 0
    %513 = vmatpush1.bf16.msra.mxu0 0
    %514 = vmatprep.subr.bf16.mxu0 0
    %515 = vmatpush1.bf16.msra.mxu0 0
    %516 = vmatprep.subr.bf16.mxu0 0
    %517 = vmatpush1.bf16.msra.mxu0 0
    %518 = vmatprep.subr.bf16.mxu0 0
    %519 = vmatpush1.bf16.msra.mxu0 0
    %520 = vmatprep.subr.bf16.mxu0 0
    %521 = vmatpush1.bf16.msra.mxu0 0
    %522 = vmatprep.subr.bf16.mxu0 0
    %523 = vmatpush1.bf16.msra.mxu0 %v303
    %524 = vmatprep.subr.bf16.mxu0 0
    %525 = vmatpush1.bf16.msra.mxu0 %v302
    %526 = vmatprep.subr.bf16.mxu0 0
    %527 = vmatpush2.bf16.msra.mxu0 0
    %528 = vmatprep.subr.bf16.mxu0 0
    %529 = vmatpush2.bf16.msra.mxu0 0
    %530 = vmatprep.subr.bf16.mxu0 0
    %531 = vmatpush2.bf16.msra.mxu0 0
    %532 = vmatprep.subr.bf16.mxu0 0
    %533 = vmatpush2.bf16.msra.mxu0 0
    %534 = vmatprep.subr.bf16.mxu0 0
    %535 = vmatpush2.bf16.msra.mxu0 0
    %536 = vmatprep.subr.bf16.mxu0 0
    %537 = vmatpush2.bf16.msra.mxu0 0
    %538 = vmatprep.subr.bf16.mxu0 0
    %539 = vmatpush2.bf16.msra.mxu0 0
    %540 = vmatprep.subr.bf16.mxu0 0
    %541 = vmatpush2.bf16.msra.mxu0 0
    %542 = vmatprep.mubr.bf16.mxu0 0
    %543 = vmatmul.mubr.bf16.gmra.mxu0 %v508
    %v544 = vpop.f32.mrf.mxu0
    %v545 = vadd.f32 0.0, %v544
    %v546 = vpop.f32.mrf.mxu0
    %v547 = vpop.f32.mrf.mxu0
    %v548 = vpop.f32.mrf.mxu0
    %549 = vdwg.mxu0
    %v552 = vunpack.c.l.b16 %v503
    %v553 = vunpack.c.l.b16 %v504
    %v554 = vrot.slane %v553, 7
    %v555 = vsel %vm284, %v554, %v552
    %v556 = vpack.c.b16 %v555, %v555
    %v558 = vsel %vm192, %v556, 0
    %560 = vmatprep.subr.bf16.mxu0 0
    %561 = vmatpush1.bf16.msra.mxu0 0
    %562 = vmatprep.subr.bf16.mxu0 0
    %563 = vmatpush1.bf16.msra.mxu0 0
    %564 = vmatprep.subr.bf16.mxu0 0
    %565 = vmatpush1.bf16.msra.mxu0 0
    %566 = vmatprep.subr.bf16.mxu0 0
    %567 = vmatpush1.bf16.msra.mxu0 0
    %568 = vmatprep.subr.bf16.mxu0 0
    %569 = vmatpush1.bf16.msra.mxu0 0
    %570 = vmatprep.subr.bf16.mxu0 0
    %571 = vmatpush1.bf16.msra.mxu0 0
    %572 = vmatprep.subr.bf16.mxu0 0
    %573 = vmatpush1.bf16.msra.mxu0 %v365
    %574 = vmatprep.subr.bf16.mxu0 0
    %575 = vmatpush1.bf16.msra.mxu0 %v364
    %576 = vmatprep.subr.bf16.mxu0 0
    %577 = vmatpush2.bf16.msra.mxu0 0
    %578 = vmatprep.subr.bf16.mxu0 0
    %579 = vmatpush2.bf16.msra.mxu0 0
    %580 = vmatprep.subr.bf16.mxu0 0
    %581 = vmatpush2.bf16.msra.mxu0 0
    %582 = vmatprep.subr.bf16.mxu0 0
    %583 = vmatpush2.bf16.msra.mxu0 0
    %584 = vmatprep.subr.bf16.mxu0 0
    %585 = vmatpush2.bf16.msra.mxu0 0
    %586 = vmatprep.subr.bf16.mxu0 0
    %587 = vmatpush2.bf16.msra.mxu0 0
    %588 = vmatprep.subr.bf16.mxu0 0
    %589 = vmatpush2.bf16.msra.mxu0 0
    %590 = vmatprep.subr.bf16.mxu0 0
    %591 = vmatpush2.bf16.msra.mxu0 0
    %592 = vmatprep.mubr.bf16.mxu0 0
    %593 = vmatmul.mubr.bf16.gmra.mxu0 %v558
    %v594 = vpop.f32.mrf.mxu0
    %v595 = vadd.f32 %v545, %v594
    %v596 = vpop.f32.mrf.mxu0
    %v597 = vpop.f32.mrf.mxu0
    %v598 = vpop.f32.mrf.mxu0
    %599 = vdwg.mxu0
    %v600 = vadd.f32 %v595, %v212
    %v601 = vtanh.pop %v600
    %602 = vst.msk [vmem:[%s291] sm:$0x3] %vm287, %v601
    %v605 = vunpack.c.l.s4 1966171168
    %v606 = vunpack.c.0.s8 %v605
    %v607 = vlaneseq
    %v608 = vshrl.u32 %v607, 7
    %v609 = vsub.s32 %v606, %v608
    %v610 = vrot.slane %v601, %v609
    %v611 = vcombine.high %v610, %v610
    %v613 = vunpack.c.l.s4 1966171168
    %v614 = vunpack.c.0.s8 %v613
    %v615 = vlaneseq
    %v616 = vshrl.u32 %v615, 7
    %v617 = vsub.s32 %v614, %v616
    %v618 = vrot.slane %v610, %v617
    %v620 = vunpack.c.l.s4 1966171168
    %v621 = vunpack.c.0.s8 %v620
    %v622 = vlaneseq
    %v623 = vshrl.u32 %v622, 7
    %v624 = vsub.s32 %v621, %v623
    %v625 = vrot.slane %v611, %v624
    %628 = vst.msk [vmem:[#allocation3 + $0x1] sm:$0x1] %vm439, %v618
    %629 = vst.msk [vmem:[#allocation3 + $0x9] sm:$0x1] %vm439, %v625
    %v630 = vld [vmem:[#allocation3 + $0x2] sm:$0x1]
    %v631 = vld [vmem:[#allocation3 + $0xa] sm:$0x1]
    %v632 = vld [vmem:[#allocation2] sm:$0x3]
    %v633 = vpack.c.bf16 %v632, %v632
    %v635 = vsel %vm192, %v633, 0
    %637 = vmatprep.subr.bf16.mxu0 0
    %638 = vmatpush1.bf16.msra.mxu0 0
    %639 = vmatprep.subr.bf16.mxu0 0
    %640 = vmatpush1.bf16.msra.mxu0 0
    %641 = vmatprep.subr.bf16.mxu0 0
    %642 = vmatpush1.bf16.msra.mxu0 0
    %643 = vmatprep.subr.bf16.mxu0 0
    %644 = vmatpush1.bf16.msra.mxu0 0
    %645 = vmatprep.subr.bf16.mxu0 0
    %646 = vmatpush1.bf16.msra.mxu0 0
    %647 = vmatprep.subr.bf16.mxu0 0
    %648 = vmatpush1.bf16.msra.mxu0 0
    %649 = vmatprep.subr.bf16.mxu0 0
    %650 = vmatpush1.bf16.msra.mxu0 %v227
    %651 = vmatprep.subr.bf16.mxu0 0
    %652 = vmatpush1.bf16.msra.mxu0 %v226
    %653 = vmatprep.subr.bf16.mxu0 0
    %654 = vmatpush2.bf16.msra.mxu0 0
    %655 = vmatprep.subr.bf16.mxu0 0
    %656 = vmatpush2.bf16.msra.mxu0 0
    %657 = vmatprep.subr.bf16.mxu0 0
    %658 = vmatpush2.bf16.msra.mxu0 0
    %659 = vmatprep.subr.bf16.mxu0 0
    %660 = vmatpush2.bf16.msra.mxu0 0
    %661 = vmatprep.subr.bf16.mxu0 0
    %662 = vmatpush2.bf16.msra.mxu0 0
    %663 = vmatprep.subr.bf16.mxu0 0
    %664 = vmatpush2.bf16.msra.mxu0 0
    %665 = vmatprep.subr.bf16.mxu0 0
    %666 = vmatpush2.bf16.msra.mxu0 0
    %667 = vmatprep.subr.bf16.mxu0 0
    %668 = vmatpush2.bf16.msra.mxu0 0
    %669 = vmatprep.mubr.bf16.mxu0 0
    %670 = vmatmul.mubr.bf16.gmra.mxu0 %v635
    %v671 = vpop.f32.mrf.mxu0
    %v672 = vadd.f32 0.0, %v671
    %v673 = vpop.f32.mrf.mxu0
    %v674 = vpop.f32.mrf.mxu0
    %v675 = vpop.f32.mrf.mxu0
    %676 = vdwg.mxu0
    %v678 = vrot.slane %v672, 1
    %v681 = vadd.f32 %v630, %v672
    %v682 = vadd.f32 %v631, %v678
    %v683 = vtanh.pop %v681
    %v684 = vtanh.pop %v682
    %v687 = vrot.slane %v684, 7
    %v688 = vsel %vm284, %v687, %v683
    %690 = vst.msk [vmem:[#allocation2] sm:$0x3] %vm287, %v688
    %v691 = vpack.c.bf16 %v683, %v683
    %v692 = vpack.c.bf16 %v684, %v684
    %v693 = vld [vmem:[%s291] sm:$0x3]
    %v694 = vpack.c.bf16 %v693, %v693
    %v696 = vsel %vm192, %v694, 0
    %698 = vmatprep.subr.bf16.mxu0 0
    %699 = vmatpush1.bf16.msra.mxu0 0
    %700 = vmatprep.subr.bf16.mxu0 0
    %701 = vmatpush1.bf16.msra.mxu0 0
    %702 = vmatprep.subr.bf16.mxu0 0
    %703 = vmatpush1.bf16.msra.mxu0 0
    %704 = vmatprep.subr.bf16.mxu0 0
    %705 = vmatpush1.bf16.msra.mxu0 0
    %706 = vmatprep.subr.bf16.mxu0 0
    %707 = vmatpush1.bf16.msra.mxu0 0
    %708 = vmatprep.subr.bf16.mxu0 0
    %709 = vmatpush1.bf16.msra.mxu0 0
    %710 = vmatprep.subr.bf16.mxu0 0
    %711 = vmatpush1.bf16.msra.mxu0 %v303
    %712 = vmatprep.subr.bf16.mxu0 0
    %713 = vmatpush1.bf16.msra.mxu0 %v302
    %714 = vmatprep.subr.bf16.mxu0 0
    %715 = vmatpush2.bf16.msra.mxu0 0
    %716 = vmatprep.subr.bf16.mxu0 0
    %717 = vmatpush2.bf16.msra.mxu0 0
    %718 = vmatprep.subr.bf16.mxu0 0
    %719 = vmatpush2.bf16.msra.mxu0 0
    %720 = vmatprep.subr.bf16.mxu0 0
    %721 = vmatpush2.bf16.msra.mxu0 0
    %722 = vmatprep.subr.bf16.mxu0 0
    %723 = vmatpush2.bf16.msra.mxu0 0
    %724 = vmatprep.subr.bf16.mxu0 0
    %725 = vmatpush2.bf16.msra.mxu0 0
    %726 = vmatprep.subr.bf16.mxu0 0
    %727 = vmatpush2.bf16.msra.mxu0 0
    %728 = vmatprep.subr.bf16.mxu0 0
    %729 = vmatpush2.bf16.msra.mxu0 0
    %730 = vmatprep.mubr.bf16.mxu0 0
    %731 = vmatmul.mubr.bf16.gmra.mxu0 %v696
    %v732 = vpop.f32.mrf.mxu0
    %v733 = vadd.f32 0.0, %v732
    %v734 = vpop.f32.mrf.mxu0
    %v735 = vpop.f32.mrf.mxu0
    %v736 = vpop.f32.mrf.mxu0
    %737 = vdwg.mxu0
    %v740 = vunpack.c.l.b16 %v691
    %v741 = vunpack.c.l.b16 %v692
    %v742 = vrot.slane %v741, 7
    %v743 = vsel %vm284, %v742, %v740
    %v744 = vpack.c.b16 %v743, %v743
    %v746 = vsel %vm192, %v744, 0
    %748 = vmatprep.subr.bf16.mxu0 0
    %749 = vmatpush1.bf16.msra.mxu0 0
    %750 = vmatprep.subr.bf16.mxu0 0
    %751 = vmatpush1.bf16.msra.mxu0 0
    %752 = vmatprep.subr.bf16.mxu0 0
    %753 = vmatpush1.bf16.msra.mxu0 0
    %754 = vmatprep.subr.bf16.mxu0 0
    %755 = vmatpush1.bf16.msra.mxu0 0
    %756 = vmatprep.subr.bf16.mxu0 0
    %757 = vmatpush1.bf16.msra.mxu0 0
    %758 = vmatprep.subr.bf16.mxu0 0
    %759 = vmatpush1.bf16.msra.mxu0 0
    %760 = vmatprep.subr.bf16.mxu0 0
    %761 = vmatpush1.bf16.msra.mxu0 %v365
    %762 = vmatprep.subr.bf16.mxu0 0
    %763 = vmatpush1.bf16.msra.mxu0 %v364
    %764 = vmatprep.subr.bf16.mxu0 0
    %765 = vmatpush2.bf16.msra.mxu0 0
    %766 = vmatprep.subr.bf16.mxu0 0
    %767 = vmatpush2.bf16.msra.mxu0 0
    %768 = vmatprep.subr.bf16.mxu0 0
    %769 = vmatpush2.bf16.msra.mxu0 0
    %770 = vmatprep.subr.bf16.mxu0 0
    %771 = vmatpush2.bf16.msra.mxu0 0
    %772 = vmatprep.subr.bf16.mxu0 0
    %773 = vmatpush2.bf16.msra.mxu0 0
    %774 = vmatprep.subr.bf16.mxu0 0
    %775 = vmatpush2.bf16.msra.mxu0 0
    %776 = vmatprep.subr.bf16.mxu0 0
    %777 = vmatpush2.bf16.msra.mxu0 0
    %778 = vmatprep.subr.bf16.mxu0 0
    %779 = vmatpush2.bf16.msra.mxu0 0
    %780 = vmatprep.mubr.bf16.mxu0 0
    %781 = vmatmul.mubr.bf16.gmra.mxu0 %v746
    %v782 = vpop.f32.mrf.mxu0
    %v783 = vadd.f32 %v733, %v782
    %v784 = vpop.f32.mrf.mxu0
    %v785 = vpop.f32.mrf.mxu0
    %v786 = vpop.f32.mrf.mxu0
    %787 = vdwg.mxu0
    %v788 = vadd.f32 %v783, %v212
    %v789 = vtanh.pop %v788
    %790 = vst.msk [vmem:[%s291] sm:$0x3] %vm287, %v789
    %v793 = vunpack.c.l.s4 1966171168
    %v794 = vunpack.c.0.s8 %v793
    %v795 = vlaneseq
    %v796 = vshrl.u32 %v795, 7
    %v797 = vsub.s32 %v794, %v796
    %v798 = vrot.slane %v789, %v797
    %v799 = vcombine.high %v798, %v798
    %v801 = vunpack.c.l.s4 1966171168
    %v802 = vunpack.c.0.s8 %v801
    %v803 = vlaneseq
    %v804 = vshrl.u32 %v803, 7
    %v805 = vsub.s32 %v802, %v804
    %v806 = vrot.slane %v798, %v805
    %v808 = vunpack.c.l.s4 1966171168
    %v809 = vunpack.c.0.s8 %v808
    %v810 = vlaneseq
    %v811 = vshrl.u32 %v810, 7
    %v812 = vsub.s32 %v809, %v811
    %v813 = vrot.slane %v799, %v812
    %816 = vst.msk [vmem:[#allocation3 + $0x2] sm:$0x1] %vm439, %v806
    %817 = vst.msk [vmem:[#allocation3 + $0xa] sm:$0x1] %vm439, %v813
    %v818 = vld [vmem:[#allocation3 + $0x3] sm:$0x1]
    %v819 = vld [vmem:[#allocation3 + $0xb] sm:$0x1]
    %v820 = vld [vmem:[#allocation2] sm:$0x3]
    %v821 = vpack.c.bf16 %v820, %v820
    %v823 = vsel %vm192, %v821, 0
    %825 = vmatprep.subr.bf16.mxu0 0
    %826 = vmatpush1.bf16.msra.mxu0 0
    %827 = vmatprep.subr.bf16.mxu0 0
    %828 = vmatpush1.bf16.msra.mxu0 0
    %829 = vmatprep.subr.bf16.mxu0 0
    %830 = vmatpush1.bf16.msra.mxu0 0
    %831 = vmatprep.subr.bf16.mxu0 0
    %832 = vmatpush1.bf16.msra.mxu0 0
    %833 = vmatprep.subr.bf16.mxu0 0
    %834 = vmatpush1.bf16.msra.mxu0 0
    %835 = vmatprep.subr.bf16.mxu0 0
    %836 = vmatpush1.bf16.msra.mxu0 0
    %837 = vmatprep.subr.bf16.mxu0 0
    %838 = vmatpush1.bf16.msra.mxu0 %v227
    %839 = vmatprep.subr.bf16.mxu0 0
    %840 = vmatpush1.bf16.msra.mxu0 %v226
    %841 = vmatprep.subr.bf16.mxu0 0
    %842 = vmatpush2.bf16.msra.mxu0 0
    %843 = vmatprep.subr.bf16.mxu0 0
    %844 = vmatpush2.bf16.msra.mxu0 0
    %845 = vmatprep.subr.bf16.mxu0 0
    %846 = vmatpush2.bf16.msra.mxu0 0
    %847 = vmatprep.subr.bf16.mxu0 0
    %848 = vmatpush2.bf16.msra.mxu0 0
    %849 = vmatprep.subr.bf16.mxu0 0
    %850 = vmatpush2.bf16.msra.mxu0 0
    %851 = vmatprep.subr.bf16.mxu0 0
    %852 = vmatpush2.bf16.msra.mxu0 0
    %853 = vmatprep.subr.bf16.mxu0 0
    %854 = vmatpush2.bf16.msra.mxu0 0
    %855 = vmatprep.subr.bf16.mxu0 0
    %856 = vmatpush2.bf16.msra.mxu0 0
    %857 = vmatprep.mubr.bf16.mxu0 0
    %858 = vmatmul.mubr.bf16.gmra.mxu0 %v823
    %v859 = vpop.f32.mrf.mxu0
    %v860 = vadd.f32 0.0, %v859
    %v861 = vpop.f32.mrf.mxu0
    %v862 = vpop.f32.mrf.mxu0
    %v863 = vpop.f32.mrf.mxu0
    %864 = vdwg.mxu0
    %v866 = vrot.slane %v860, 1
    %v869 = vadd.f32 %v818, %v860
    %v870 = vadd.f32 %v819, %v866
    %v871 = vtanh.pop %v869
    %v872 = vtanh.pop %v870
    %v875 = vrot.slane %v872, 7
    %v876 = vsel %vm284, %v875, %v871
    %878 = vst.msk [vmem:[#allocation2] sm:$0x3] %vm287, %v876
    %v879 = vpack.c.bf16 %v871, %v871
    %v880 = vpack.c.bf16 %v872, %v872
    %v881 = vld [vmem:[%s291] sm:$0x3]
    %v882 = vpack.c.bf16 %v881, %v881
    %v884 = vsel %vm192, %v882, 0
    %886 = vmatprep.subr.bf16.mxu0 0
    %887 = vmatpush1.bf16.msra.mxu0 0
    %888 = vmatprep.subr.bf16.mxu0 0
    %889 = vmatpush1.bf16.msra.mxu0 0
    %890 = vmatprep.subr.bf16.mxu0 0
    %891 = vmatpush1.bf16.msra.mxu0 0
    %892 = vmatprep.subr.bf16.mxu0 0
    %893 = vmatpush1.bf16.msra.mxu0 0
    %894 = vmatprep.subr.bf16.mxu0 0
    %895 = vmatpush1.bf16.msra.mxu0 0
    %896 = vmatprep.subr.bf16.mxu0 0
    %897 = vmatpush1.bf16.msra.mxu0 0
    %898 = vmatprep.subr.bf16.mxu0 0
    %899 = vmatpush1.bf16.msra.mxu0 %v303
    %900 = vmatprep.subr.bf16.mxu0 0
    %901 = vmatpush1.bf16.msra.mxu0 %v302
    %902 = vmatprep.subr.bf16.mxu0 0
    %903 = vmatpush2.bf16.msra.mxu0 0
    %904 = vmatprep.subr.bf16.mxu0 0
    %905 = vmatpush2.bf16.msra.mxu0 0
    %906 = vmatprep.subr.bf16.mxu0 0
    %907 = vmatpush2.bf16.msra.mxu0 0
    %908 = vmatprep.subr.bf16.mxu0 0
    %909 = vmatpush2.bf16.msra.mxu0 0
    %910 = vmatprep.subr.bf16.mxu0 0
    %911 = vmatpush2.bf16.msra.mxu0 0
    %912 = vmatprep.subr.bf16.mxu0 0
    %913 = vmatpush2.bf16.msra.mxu0 0
    %914 = vmatprep.subr.bf16.mxu0 0
    %915 = vmatpush2.bf16.msra.mxu0 0
    %916 = vmatprep.subr.bf16.mxu0 0
    %917 = vmatpush2.bf16.msra.mxu0 0
    %918 = vmatprep.mubr.bf16.mxu0 0
    %919 = vmatmul.mubr.bf16.gmra.mxu0 %v884
    %v920 = vpop.f32.mrf.mxu0
    %v921 = vadd.f32 0.0, %v920
    %v922 = vpop.f32.mrf.mxu0
    %v923 = vpop.f32.mrf.mxu0
    %v924 = vpop.f32.mrf.mxu0
    %925 = vdwg.mxu0
    %v928 = vunpack.c.l.b16 %v879
    %v929 = vunpack.c.l.b16 %v880
    %v930 = vrot.slane %v929, 7
    %v931 = vsel %vm284, %v930, %v928
    %v932 = vpack.c.b16 %v931, %v931
    %v934 = vsel %vm192, %v932, 0
    %936 = vmatprep.subr.bf16.mxu0 0
    %937 = vmatpush1.bf16.msra.mxu0 0
    %938 = vmatprep.subr.bf16.mxu0 0
    %939 = vmatpush1.bf16.msra.mxu0 0
    %940 = vmatprep.subr.bf16.mxu0 0
    %941 = vmatpush1.bf16.msra.mxu0 0
    %942 = vmatprep.subr.bf16.mxu0 0
    %943 = vmatpush1.bf16.msra.mxu0 0
    %944 = vmatprep.subr.bf16.mxu0 0
    %945 = vmatpush1.bf16.msra.mxu0 0
    %946 = vmatprep.subr.bf16.mxu0 0
    %947 = vmatpush1.bf16.msra.mxu0 0
    %948 = vmatprep.subr.bf16.mxu0 0
    %949 = vmatpush1.bf16.msra.mxu0 %v365
    %950 = vmatprep.subr.bf16.mxu0 0
    %951 = vmatpush1.bf16.msra.mxu0 %v364
    %952 = vmatprep.subr.bf16.mxu0 0
    %953 = vmatpush2.bf16.msra.mxu0 0
    %954 = vmatprep.subr.bf16.mxu0 0
    %955 = vmatpush2.bf16.msra.mxu0 0
    %956 = vmatprep.subr.bf16.mxu0 0
    %957 = vmatpush2.bf16.msra.mxu0 0
    %958 = vmatprep.subr.bf16.mxu0 0
    %959 = vmatpush2.bf16.msra.mxu0 0
    %960 = vmatprep.subr.bf16.mxu0 0
    %961 = vmatpush2.bf16.msra.mxu0 0
    %962 = vmatprep.subr.bf16.mxu0 0
    %963 = vmatpush2.bf16.msra.mxu0 0
    %964 = vmatprep.subr.bf16.mxu0 0
    %965 = vmatpush2.bf16.msra.mxu0 0
    %966 = vmatprep.subr.bf16.mxu0 0
    %967 = vmatpush2.bf16.msra.mxu0 0
    %968 = vmatprep.mubr.bf16.mxu0 0
    %969 = vmatmul.mubr.bf16.gmra.mxu0 %v934
    %v970 = vpop.f32.mrf.mxu0
    %v971 = vadd.f32 %v921, %v970
    %v972 = vpop.f32.mrf.mxu0
    %v973 = vpop.f32.mrf.mxu0
    %v974 = vpop.f32.mrf.mxu0
    %975 = vdwg.mxu0
    %v976 = vadd.f32 %v971, %v212
    %v977 = vtanh.pop %v976
    %978 = vst.msk [vmem:[%s291] sm:$0x3] %vm287, %v977
    %v981 = vunpack.c.l.s4 1966171168
    %v982 = vunpack.c.0.s8 %v981
    %v983 = vlaneseq
    %v984 = vshrl.u32 %v983, 7
    %v985 = vsub.s32 %v982, %v984
    %v986 = vrot.slane %v977, %v985
    %v987 = vcombine.high %v986, %v986
    %v989 = vunpack.c.l.s4 1966171168
    %v990 = vunpack.c.0.s8 %v989
    %v991 = vlaneseq
    %v992 = vshrl.u32 %v991, 7
    %v993 = vsub.s32 %v990, %v992
    %v994 = vrot.slane %v986, %v993
    %v996 = vunpack.c.l.s4 1966171168
    %v997 = vunpack.c.0.s8 %v996
    %v998 = vlaneseq
    %v999 = vshrl.u32 %v998, 7
    %v1000 = vsub.s32 %v997, %v999
    %v1001 = vrot.slane %v987, %v1000
    %1004 = vst.msk [vmem:[#allocation3 + $0x3] sm:$0x1] %vm439, %v994
    %1005 = vst.msk [vmem:[#allocation3 + $0xb] sm:$0x1] %vm439, %v1001
    %v1006 = vld [vmem:[#allocation3 + $0x4] sm:$0x1]
    %v1007 = vld [vmem:[#allocation3 + $0xc] sm:$0x1]
    %v1008 = vld [vmem:[#allocation2] sm:$0x3]
    %v1009 = vpack.c.bf16 %v1008, %v1008
    %v1011 = vsel %vm192, %v1009, 0
    %1013 = vmatprep.subr.bf16.mxu0 0
    %1014 = vmatpush1.bf16.msra.mxu0 0
    %1015 = vmatprep.subr.bf16.mxu0 0
    %1016 = vmatpush1.bf16.msra.mxu0 0
    %1017 = vmatprep.subr.bf16.mxu0 0
    %1018 = vmatpush1.bf16.msra.mxu0 0
    %1019 = vmatprep.subr.bf16.mxu0 0
    %1020 = vmatpush1.bf16.msra.mxu0 0
    %1021 = vmatprep.subr.bf16.mxu0 0
    %1022 = vmatpush1.bf16.msra.mxu0 0
    %1023 = vmatprep.subr.bf16.mxu0 0
    %1024 = vmatpush1.bf16.msra.mxu0 0
    %1025 = vmatprep.subr.bf16.mxu0 0
    %1026 = vmatpush1.bf16.msra.mxu0 %v227
    %1027 = vmatprep.subr.bf16.mxu0 0
    %1028 = vmatpush1.bf16.msra.mxu0 %v226
    %1029 = vmatprep.subr.bf16.mxu0 0
    %1030 = vmatpush2.bf16.msra.mxu0 0
    %1031 = vmatprep.subr.bf16.mxu0 0
    %1032 = vmatpush2.bf16.msra.mxu0 0
    %1033 = vmatprep.subr.bf16.mxu0 0
    %1034 = vmatpush2.bf16.msra.mxu0 0
    %1035 = vmatprep.subr.bf16.mxu0 0
    %1036 = vmatpush2.bf16.msra.mxu0 0
    %1037 = vmatprep.subr.bf16.mxu0 0
    %1038 = vmatpush2.bf16.msra.mxu0 0
    %1039 = vmatprep.subr.bf16.mxu0 0
    %1040 = vmatpush2.bf16.msra.mxu0 0
    %1041 = vmatprep.subr.bf16.mxu0 0
    %1042 = vmatpush2.bf16.msra.mxu0 0
    %1043 = vmatprep.subr.bf16.mxu0 0
    %1044 = vmatpush2.bf16.msra.mxu0 0
    %1045 = vmatprep.mubr.bf16.mxu0 0
    %1046 = vmatmul.mubr.bf16.gmra.mxu0 %v1011
    %v1047 = vpop.f32.mrf.mxu0
    %v1048 = vadd.f32 0.0, %v1047
    %v1049 = vpop.f32.mrf.mxu0
    %v1050 = vpop.f32.mrf.mxu0
    %v1051 = vpop.f32.mrf.mxu0
    %1052 = vdwg.mxu0
    %v1054 = vrot.slane %v1048, 1
    %v1057 = vadd.f32 %v1006, %v1048
    %v1058 = vadd.f32 %v1007, %v1054
    %v1059 = vtanh.pop %v1057
    %v1060 = vtanh.pop %v1058
    %v1063 = vrot.slane %v1060, 7
    %v1064 = vsel %vm284, %v1063, %v1059
    %1066 = vst.msk [vmem:[#allocation2] sm:$0x3] %vm287, %v1064
    %v1067 = vpack.c.bf16 %v1059, %v1059
    %v1068 = vpack.c.bf16 %v1060, %v1060
    %v1069 = vld [vmem:[%s291] sm:$0x3]
    %v1070 = vpack.c.bf16 %v1069, %v1069
    %v1072 = vsel %vm192, %v1070, 0
    %1074 = vmatprep.subr.bf16.mxu0 0
    %1075 = vmatpush1.bf16.msra.mxu0 0
    %1076 = vmatprep.subr.bf16.mxu0 0
    %1077 = vmatpush1.bf16.msra.mxu0 0
    %1078 = vmatprep.subr.bf16.mxu0 0
    %1079 = vmatpush1.bf16.msra.mxu0 0
    %1080 = vmatprep.subr.bf16.mxu0 0
    %1081 = vmatpush1.bf16.msra.mxu0 0
    %1082 = vmatprep.subr.bf16.mxu0 0
    %1083 = vmatpush1.bf16.msra.mxu0 0
    %1084 = vmatprep.subr.bf16.mxu0 0
    %1085 = vmatpush1.bf16.msra.mxu0 0
    %1086 = vmatprep.subr.bf16.mxu0 0
    %1087 = vmatpush1.bf16.msra.mxu0 %v303
    %1088 = vmatprep.subr.bf16.mxu0 0
    %1089 = vmatpush1.bf16.msra.mxu0 %v302
    %1090 = vmatprep.subr.bf16.mxu0 0
    %1091 = vmatpush2.bf16.msra.mxu0 0
    %1092 = vmatprep.subr.bf16.mxu0 0
    %1093 = vmatpush2.bf16.msra.mxu0 0
    %1094 = vmatprep.subr.bf16.mxu0 0
    %1095 = vmatpush2.bf16.msra.mxu0 0
    %1096 = vmatprep.subr.bf16.mxu0 0
    %1097 = vmatpush2.bf16.msra.mxu0 0
    %1098 = vmatprep.subr.bf16.mxu0 0
    %1099 = vmatpush2.bf16.msra.mxu0 0
    %1100 = vmatprep.subr.bf16.mxu0 0
    %1101 = vmatpush2.bf16.msra.mxu0 0
    %1102 = vmatprep.subr.bf16.mxu0 0
    %1103 = vmatpush2.bf16.msra.mxu0 0
    %1104 = vmatprep.subr.bf16.mxu0 0
    %1105 = vmatpush2.bf16.msra.mxu0 0
    %1106 = vmatprep.mubr.bf16.mxu0 0
    %1107 = vmatmul.mubr.bf16.gmra.mxu0 %v1072
    %v1108 = vpop.f32.mrf.mxu0
    %v1109 = vadd.f32 0.0, %v1108
    %v1110 = vpop.f32.mrf.mxu0
    %v1111 = vpop.f32.mrf.mxu0
    %v1112 = vpop.f32.mrf.mxu0
    %1113 = vdwg.mxu0
    %v1116 = vunpack.c.l.b16 %v1067
    %v1117 = vunpack.c.l.b16 %v1068
    %v1118 = vrot.slane %v1117, 7
    %v1119 = vsel %vm284, %v1118, %v1116
    %v1120 = vpack.c.b16 %v1119, %v1119
    %v1122 = vsel %vm192, %v1120, 0
    %1124 = vmatprep.subr.bf16.mxu0 0
    %1125 = vmatpush1.bf16.msra.mxu0 0
    %1126 = vmatprep.subr.bf16.mxu0 0
    %1127 = vmatpush1.bf16.msra.mxu0 0
    %1128 = vmatprep.subr.bf16.mxu0 0
    %1129 = vmatpush1.bf16.msra.mxu0 0
    %1130 = vmatprep.subr.bf16.mxu0 0
    %1131 = vmatpush1.bf16.msra.mxu0 0
    %1132 = vmatprep.subr.bf16.mxu0 0
    %1133 = vmatpush1.bf16.msra.mxu0 0
    %1134 = vmatprep.subr.bf16.mxu0 0
    %1135 = vmatpush1.bf16.msra.mxu0 0
    %1136 = vmatprep.subr.bf16.mxu0 0
    %1137 = vmatpush1.bf16.msra.mxu0 %v365
    %1138 = vmatprep.subr.bf16.mxu0 0
    %1139 = vmatpush1.bf16.msra.mxu0 %v364
    %1140 = vmatprep.subr.bf16.mxu0 0
    %1141 = vmatpush2.bf16.msra.mxu0 0
    %1142 = vmatprep.subr.bf16.mxu0 0
    %1143 = vmatpush2.bf16.msra.mxu0 0
    %1144 = vmatprep.subr.bf16.mxu0 0
    %1145 = vmatpush2.bf16.msra.mxu0 0
    %1146 = vmatprep.subr.bf16.mxu0 0
    %1147 = vmatpush2.bf16.msra.mxu0 0
    %1148 = vmatprep.subr.bf16.mxu0 0
    %1149 = vmatpush2.bf16.msra.mxu0 0
    %1150 = vmatprep.subr.bf16.mxu0 0
    %1151 = vmatpush2.bf16.msra.mxu0 0
    %1152 = vmatprep.subr.bf16.mxu0 0
    %1153 = vmatpush2.bf16.msra.mxu0 0
    %1154 = vmatprep.subr.bf16.mxu0 0
    %1155 = vmatpush2.bf16.msra.mxu0 0
    %1156 = vmatprep.mubr.bf16.mxu0 0
    %1157 = vmatmul.mubr.bf16.gmra.mxu0 %v1122
    %v1158 = vpop.f32.mrf.mxu0
    %v1159 = vadd.f32 %v1109, %v1158
    %v1160 = vpop.f32.mrf.mxu0
    %v1161 = vpop.f32.mrf.mxu0
    %v1162 = vpop.f32.mrf.mxu0
    %1163 = vdwg.mxu0
    %v1164 = vadd.f32 %v1159, %v212
    %v1165 = vtanh.pop %v1164
    %1166 = vst.msk [vmem:[%s291] sm:$0x3] %vm287, %v1165
    %v1169 = vunpack.c.l.s4 1966171168
    %v1170 = vunpack.c.0.s8 %v1169
    %v1171 = vlaneseq
    %v1172 = vshrl.u32 %v1171, 7
    %v1173 = vsub.s32 %v1170, %v1172
    %v1174 = vrot.slane %v1165, %v1173
    %v1175 = vcombine.high %v1174, %v1174
    %v1177 = vunpack.c.l.s4 1966171168
    %v1178 = vunpack.c.0.s8 %v1177
    %v1179 = vlaneseq
    %v1180 = vshrl.u32 %v1179, 7
    %v1181 = vsub.s32 %v1178, %v1180
    %v1182 = vrot.slane %v1174, %v1181
    %v1184 = vunpack.c.l.s4 1966171168
    %v1185 = vunpack.c.0.s8 %v1184
    %v1186 = vlaneseq
    %v1187 = vshrl.u32 %v1186, 7
    %v1188 = vsub.s32 %v1185, %v1187
    %v1189 = vrot.slane %v1175, %v1188
    %1192 = vst.msk [vmem:[#allocation3 + $0x4] sm:$0x1] %vm439, %v1182
    %1193 = vst.msk [vmem:[#allocation3 + $0xc] sm:$0x1] %vm439, %v1189
    %v1194 = vld [vmem:[#allocation3 + $0x5] sm:$0x1]
    %v1195 = vld [vmem:[#allocation3 + $0xd] sm:$0x1]
    %v1196 = vld [vmem:[#allocation2] sm:$0x3]
    %v1197 = vpack.c.bf16 %v1196, %v1196
    %v1199 = vsel %vm192, %v1197, 0
    %1201 = vmatprep.subr.bf16.mxu0 0
    %1202 = vmatpush1.bf16.msra.mxu0 0
    %1203 = vmatprep.subr.bf16.mxu0 0
    %1204 = vmatpush1.bf16.msra.mxu0 0
    %1205 = vmatprep.subr.bf16.mxu0 0
    %1206 = vmatpush1.bf16.msra.mxu0 0
    %1207 = vmatprep.subr.bf16.mxu0 0
    %1208 = vmatpush1.bf16.msra.mxu0 0
    %1209 = vmatprep.subr.bf16.mxu0 0
    %1210 = vmatpush1.bf16.msra.mxu0 0
    %1211 = vmatprep.subr.bf16.mxu0 0
    %1212 = vmatpush1.bf16.msra.mxu0 0
    %1213 = vmatprep.subr.bf16.mxu0 0
    %1214 = vmatpush1.bf16.msra.mxu0 %v227
    %1215 = vmatprep.subr.bf16.mxu0 0
    %1216 = vmatpush1.bf16.msra.mxu0 %v226
    %1217 = vmatprep.subr.bf16.mxu0 0
    %1218 = vmatpush2.bf16.msra.mxu0 0
    %1219 = vmatprep.subr.bf16.mxu0 0
    %1220 = vmatpush2.bf16.msra.mxu0 0
    %1221 = vmatprep.subr.bf16.mxu0 0
    %1222 = vmatpush2.bf16.msra.mxu0 0
    %1223 = vmatprep.subr.bf16.mxu0 0
    %1224 = vmatpush2.bf16.msra.mxu0 0
    %1225 = vmatprep.subr.bf16.mxu0 0
    %1226 = vmatpush2.bf16.msra.mxu0 0
    %1227 = vmatprep.subr.bf16.mxu0 0
    %1228 = vmatpush2.bf16.msra.mxu0 0
    %1229 = vmatprep.subr.bf16.mxu0 0
    %1230 = vmatpush2.bf16.msra.mxu0 0
    %1231 = vmatprep.subr.bf16.mxu0 0
    %1232 = vmatpush2.bf16.msra.mxu0 0
    %1233 = vmatprep.mubr.bf16.mxu0 0
    %1234 = vmatmul.mubr.bf16.gmra.mxu0 %v1199
    %v1235 = vpop.f32.mrf.mxu0
    %v1236 = vadd.f32 0.0, %v1235
    %v1237 = vpop.f32.mrf.mxu0
    %v1238 = vpop.f32.mrf.mxu0
    %v1239 = vpop.f32.mrf.mxu0
    %1240 = vdwg.mxu0
    %v1242 = vrot.slane %v1236, 1
    %v1245 = vadd.f32 %v1194, %v1236
    %v1246 = vadd.f32 %v1195, %v1242
    %v1247 = vtanh.pop %v1245
    %v1248 = vtanh.pop %v1246
    %v1251 = vrot.slane %v1248, 7
    %v1252 = vsel %vm284, %v1251, %v1247
    %1254 = vst.msk [vmem:[#allocation2] sm:$0x3] %vm287, %v1252
    %v1255 = vpack.c.bf16 %v1247, %v1247
    %v1256 = vpack.c.bf16 %v1248, %v1248
    %v1257 = vld [vmem:[%s291] sm:$0x3]
    %v1258 = vpack.c.bf16 %v1257, %v1257
    %v1260 = vsel %vm192, %v1258, 0
    %1262 = vmatprep.subr.bf16.mxu0 0
    %1263 = vmatpush1.bf16.msra.mxu0 0
    %1264 = vmatprep.subr.bf16.mxu0 0
    %1265 = vmatpush1.bf16.msra.mxu0 0
    %1266 = vmatprep.subr.bf16.mxu0 0
    %1267 = vmatpush1.bf16.msra.mxu0 0
    %1268 = vmatprep.subr.bf16.mxu0 0
    %1269 = vmatpush1.bf16.msra.mxu0 0
    %1270 = vmatprep.subr.bf16.mxu0 0
    %1271 = vmatpush1.bf16.msra.mxu0 0
    %1272 = vmatprep.subr.bf16.mxu0 0
    %1273 = vmatpush1.bf16.msra.mxu0 0
    %1274 = vmatprep.subr.bf16.mxu0 0
    %1275 = vmatpush1.bf16.msra.mxu0 %v303
    %1276 = vmatprep.subr.bf16.mxu0 0
    %1277 = vmatpush1.bf16.msra.mxu0 %v302
    %1278 = vmatprep.subr.bf16.mxu0 0
    %1279 = vmatpush2.bf16.msra.mxu0 0
    %1280 = vmatprep.subr.bf16.mxu0 0
    %1281 = vmatpush2.bf16.msra.mxu0 0
    %1282 = vmatprep.subr.bf16.mxu0 0
    %1283 = vmatpush2.bf16.msra.mxu0 0
    %1284 = vmatprep.subr.bf16.mxu0 0
    %1285 = vmatpush2.bf16.msra.mxu0 0
    %1286 = vmatprep.subr.bf16.mxu0 0
    %1287 = vmatpush2.bf16.msra.mxu0 0
    %1288 = vmatprep.subr.bf16.mxu0 0
    %1289 = vmatpush2.bf16.msra.mxu0 0
    %1290 = vmatprep.subr.bf16.mxu0 0
    %1291 = vmatpush2.bf16.msra.mxu0 0
    %1292 = vmatprep.subr.bf16.mxu0 0
    %1293 = vmatpush2.bf16.msra.mxu0 0
    %1294 = vmatprep.mubr.bf16.mxu0 0
    %1295 = vmatmul.mubr.bf16.gmra.mxu0 %v1260
    %v1296 = vpop.f32.mrf.mxu0
    %v1297 = vadd.f32 0.0, %v1296
    %v1298 = vpop.f32.mrf.mxu0
    %v1299 = vpop.f32.mrf.mxu0
    %v1300 = vpop.f32.mrf.mxu0
    %1301 = vdwg.mxu0
    %v1304 = vunpack.c.l.b16 %v1255
    %v1305 = vunpack.c.l.b16 %v1256
    %v1306 = vrot.slane %v1305, 7
    %v1307 = vsel %vm284, %v1306, %v1304
    %v1308 = vpack.c.b16 %v1307, %v1307
    %v1310 = vsel %vm192, %v1308, 0
    %1312 = vmatprep.subr.bf16.mxu0 0
    %1313 = vmatpush1.bf16.msra.mxu0 0
    %1314 = vmatprep.subr.bf16.mxu0 0
    %1315 = vmatpush1.bf16.msra.mxu0 0
    %1316 = vmatprep.subr.bf16.mxu0 0
    %1317 = vmatpush1.bf16.msra.mxu0 0
    %1318 = vmatprep.subr.bf16.mxu0 0
    %1319 = vmatpush1.bf16.msra.mxu0 0
    %1320 = vmatprep.subr.bf16.mxu0 0
    %1321 = vmatpush1.bf16.msra.mxu0 0
    %1322 = vmatprep.subr.bf16.mxu0 0
    %1323 = vmatpush1.bf16.msra.mxu0 0
    %1324 = vmatprep.subr.bf16.mxu0 0
    %1325 = vmatpush1.bf16.msra.mxu0 %v365
    %1326 = vmatprep.subr.bf16.mxu0 0
    %1327 = vmatpush1.bf16.msra.mxu0 %v364
    %1328 = vmatprep.subr.bf16.mxu0 0
    %1329 = vmatpush2.bf16.msra.mxu0 0
    %1330 = vmatprep.subr.bf16.mxu0 0
    %1331 = vmatpush2.bf16.msra.mxu0 0
    %1332 = vmatprep.subr.bf16.mxu0 0
    %1333 = vmatpush2.bf16.msra.mxu0 0
    %1334 = vmatprep.subr.bf16.mxu0 0
    %1335 = vmatpush2.bf16.msra.mxu0 0
    %1336 = vmatprep.subr.bf16.mxu0 0
    %1337 = vmatpush2.bf16.msra.mxu0 0
    %1338 = vmatprep.subr.bf16.mxu0 0
    %1339 = vmatpush2.bf16.msra.mxu0 0
    %1340 = vmatprep.subr.bf16.mxu0 0
    %1341 = vmatpush2.bf16.msra.mxu0 0
    %1342 = vmatprep.subr.bf16.mxu0 0
    %1343 = vmatpush2.bf16.msra.mxu0 0
    %1344 = vmatprep.mubr.bf16.mxu0 0
    %1345 = vmatmul.mubr.bf16.gmra.mxu0 %v1310
    %v1346 = vpop.f32.mrf.mxu0
    %v1347 = vadd.f32 %v1297, %v1346
    %v1348 = vpop.f32.mrf.mxu0
    %v1349 = vpop.f32.mrf.mxu0
    %v1350 = vpop.f32.mrf.mxu0
    %1351 = vdwg.mxu0
    %v1352 = vadd.f32 %v1347, %v212
    %v1353 = vtanh.pop %v1352
    %1354 = vst.msk [vmem:[%s291] sm:$0x3] %vm287, %v1353
    %v1357 = vunpack.c.l.s4 1966171168
    %v1358 = vunpack.c.0.s8 %v1357
    %v1359 = vlaneseq
    %v1360 = vshrl.u32 %v1359, 7
    %v1361 = vsub.s32 %v1358, %v1360
    %v1362 = vrot.slane %v1353, %v1361
    %v1363 = vcombine.high %v1362, %v1362
    %v1365 = vunpack.c.l.s4 1966171168
    %v1366 = vunpack.c.0.s8 %v1365
    %v1367 = vlaneseq
    %v1368 = vshrl.u32 %v1367, 7
    %v1369 = vsub.s32 %v1366, %v1368
    %v1370 = vrot.slane %v1362, %v1369
    %v1372 = vunpack.c.l.s4 1966171168
    %v1373 = vunpack.c.0.s8 %v1372
    %v1374 = vlaneseq
    %v1375 = vshrl.u32 %v1374, 7
    %v1376 = vsub.s32 %v1373, %v1375
    %v1377 = vrot.slane %v1363, %v1376
    %1380 = vst.msk [vmem:[#allocation3 + $0x5] sm:$0x1] %vm439, %v1370
    %1381 = vst.msk [vmem:[#allocation3 + $0xd] sm:$0x1] %vm439, %v1377
    %v1382 = vld [vmem:[#allocation3 + $0x6] sm:$0x1]
    %v1383 = vld [vmem:[#allocation3 + $0xe] sm:$0x1]
    %v1384 = vld [vmem:[#allocation2] sm:$0x3]
    %v1385 = vpack.c.bf16 %v1384, %v1384
    %v1387 = vsel %vm192, %v1385, 0
    %1389 = vmatprep.subr.bf16.mxu0 0
    %1390 = vmatpush1.bf16.msra.mxu0 0
    %1391 = vmatprep.subr.bf16.mxu0 0
    %1392 = vmatpush1.bf16.msra.mxu0 0
    %1393 = vmatprep.subr.bf16.mxu0 0
    %1394 = vmatpush1.bf16.msra.mxu0 0
    %1395 = vmatprep.subr.bf16.mxu0 0
    %1396 = vmatpush1.bf16.msra.mxu0 0
    %1397 = vmatprep.subr.bf16.mxu0 0
    %1398 = vmatpush1.bf16.msra.mxu0 0
    %1399 = vmatprep.subr.bf16.mxu0 0
    %1400 = vmatpush1.bf16.msra.mxu0 0
    %1401 = vmatprep.subr.bf16.mxu0 0
    %1402 = vmatpush1.bf16.msra.mxu0 %v227
    %1403 = vmatprep.subr.bf16.mxu0 0
    %1404 = vmatpush1.bf16.msra.mxu0 %v226
    %1405 = vmatprep.subr.bf16.mxu0 0
    %1406 = vmatpush2.bf16.msra.mxu0 0
    %1407 = vmatprep.subr.bf16.mxu0 0
    %1408 = vmatpush2.bf16.msra.mxu0 0
    %1409 = vmatprep.subr.bf16.mxu0 0
    %1410 = vmatpush2.bf16.msra.mxu0 0
    %1411 = vmatprep.subr.bf16.mxu0 0
    %1412 = vmatpush2.bf16.msra.mxu0 0
    %1413 = vmatprep.subr.bf16.mxu0 0
    %1414 = vmatpush2.bf16.msra.mxu0 0
    %1415 = vmatprep.subr.bf16.mxu0 0
    %1416 = vmatpush2.bf16.msra.mxu0 0
    %1417 = vmatprep.subr.bf16.mxu0 0
    %1418 = vmatpush2.bf16.msra.mxu0 0
    %1419 = vmatprep.subr.bf16.mxu0 0
    %1420 = vmatpush2.bf16.msra.mxu0 0
    %1421 = vmatprep.mubr.bf16.mxu0 0
    %1422 = vmatmul.mubr.bf16.gmra.mxu0 %v1387
    %v1423 = vpop.f32.mrf.mxu0
    %v1424 = vadd.f32 0.0, %v1423
    %v1425 = vpop.f32.mrf.mxu0
    %v1426 = vpop.f32.mrf.mxu0
    %v1427 = vpop.f32.mrf.mxu0
    %1428 = vdwg.mxu0
    %v1430 = vrot.slane %v1424, 1
    %v1433 = vadd.f32 %v1382, %v1424
    %v1434 = vadd.f32 %v1383, %v1430
    %v1435 = vtanh.pop %v1433
    %v1436 = vtanh.pop %v1434
    %v1439 = vrot.slane %v1436, 7
    %v1440 = vsel %vm284, %v1439, %v1435
    %1442 = vst.msk [vmem:[#allocation2] sm:$0x3] %vm287, %v1440
    %v1443 = vpack.c.bf16 %v1435, %v1435
    %v1444 = vpack.c.bf16 %v1436, %v1436
    %v1445 = vld [vmem:[%s291] sm:$0x3]
    %v1446 = vpack.c.bf16 %v1445, %v1445
    %v1448 = vsel %vm192, %v1446, 0
    %1450 = vmatprep.subr.bf16.mxu0 0
    %1451 = vmatpush1.bf16.msra.mxu0 0
    %1452 = vmatprep.subr.bf16.mxu0 0
    %1453 = vmatpush1.bf16.msra.mxu0 0
    %1454 = vmatprep.subr.bf16.mxu0 0
    %1455 = vmatpush1.bf16.msra.mxu0 0
    %1456 = vmatprep.subr.bf16.mxu0 0
    %1457 = vmatpush1.bf16.msra.mxu0 0
    %1458 = vmatprep.subr.bf16.mxu0 0
    %1459 = vmatpush1.bf16.msra.mxu0 0
    %1460 = vmatprep.subr.bf16.mxu0 0
    %1461 = vmatpush1.bf16.msra.mxu0 0
    %1462 = vmatprep.subr.bf16.mxu0 0
    %1463 = vmatpush1.bf16.msra.mxu0 %v303
    %1464 = vmatprep.subr.bf16.mxu0 0
    %1465 = vmatpush1.bf16.msra.mxu0 %v302
    %1466 = vmatprep.subr.bf16.mxu0 0
    %1467 = vmatpush2.bf16.msra.mxu0 0
    %1468 = vmatprep.subr.bf16.mxu0 0
    %1469 = vmatpush2.bf16.msra.mxu0 0
    %1470 = vmatprep.subr.bf16.mxu0 0
    %1471 = vmatpush2.bf16.msra.mxu0 0
    %1472 = vmatprep.subr.bf16.mxu0 0
    %1473 = vmatpush2.bf16.msra.mxu0 0
    %1474 = vmatprep.subr.bf16.mxu0 0
    %1475 = vmatpush2.bf16.msra.mxu0 0
    %1476 = vmatprep.subr.bf16.mxu0 0
    %1477 = vmatpush2.bf16.msra.mxu0 0
    %1478 = vmatprep.subr.bf16.mxu0 0
    %1479 = vmatpush2.bf16.msra.mxu0 0
    %1480 = vmatprep.subr.bf16.mxu0 0
    %1481 = vmatpush2.bf16.msra.mxu0 0
    %1482 = vmatprep.mubr.bf16.mxu0 0
    %1483 = vmatmul.mubr.bf16.gmra.mxu0 %v1448
    %v1484 = vpop.f32.mrf.mxu0
    %v1485 = vadd.f32 0.0, %v1484
    %v1486 = vpop.f32.mrf.mxu0
    %v1487 = vpop.f32.mrf.mxu0
    %v1488 = vpop.f32.mrf.mxu0
    %1489 = vdwg.mxu0
    %v1492 = vunpack.c.l.b16 %v1443
    %v1493 = vunpack.c.l.b16 %v1444
    %v1494 = vrot.slane %v1493, 7
    %v1495 = vsel %vm284, %v1494, %v1492
    %v1496 = vpack.c.b16 %v1495, %v1495
    %v1498 = vsel %vm192, %v1496, 0
    %1500 = vmatprep.subr.bf16.mxu0 0
    %1501 = vmatpush1.bf16.msra.mxu0 0
    %1502 = vmatprep.subr.bf16.mxu0 0
    %1503 = vmatpush1.bf16.msra.mxu0 0
    %1504 = vmatprep.subr.bf16.mxu0 0
    %1505 = vmatpush1.bf16.msra.mxu0 0
    %1506 = vmatprep.subr.bf16.mxu0 0
    %1507 = vmatpush1.bf16.msra.mxu0 0
    %1508 = vmatprep.subr.bf16.mxu0 0
    %1509 = vmatpush1.bf16.msra.mxu0 0
    %1510 = vmatprep.subr.bf16.mxu0 0
    %1511 = vmatpush1.bf16.msra.mxu0 0
    %1512 = vmatprep.subr.bf16.mxu0 0
    %1513 = vmatpush1.bf16.msra.mxu0 %v365
    %1514 = vmatprep.subr.bf16.mxu0 0
    %1515 = vmatpush1.bf16.msra.mxu0 %v364
    %1516 = vmatprep.subr.bf16.mxu0 0
    %1517 = vmatpush2.bf16.msra.mxu0 0
    %1518 = vmatprep.subr.bf16.mxu0 0
    %1519 = vmatpush2.bf16.msra.mxu0 0
    %1520 = vmatprep.subr.bf16.mxu0 0
    %1521 = vmatpush2.bf16.msra.mxu0 0
    %1522 = vmatprep.subr.bf16.mxu0 0
    %1523 = vmatpush2.bf16.msra.mxu0 0
    %1524 = vmatprep.subr.bf16.mxu0 0
    %1525 = vmatpush2.bf16.msra.mxu0 0
    %1526 = vmatprep.subr.bf16.mxu0 0
    %1527 = vmatpush2.bf16.msra.mxu0 0
    %1528 = vmatprep.subr.bf16.mxu0 0
    %1529 = vmatpush2.bf16.msra.mxu0 0
    %1530 = vmatprep.subr.bf16.mxu0 0
    %1531 = vmatpush2.bf16.msra.mxu0 0
    %1532 = vmatprep.mubr.bf16.mxu0 0
    %1533 = vmatmul.mubr.bf16.gmra.mxu0 %v1498
    %v1534 = vpop.f32.mrf.mxu0
    %v1535 = vadd.f32 %v1485, %v1534
    %v1536 = vpop.f32.mrf.mxu0
    %v1537 = vpop.f32.mrf.mxu0
    %v1538 = vpop.f32.mrf.mxu0
    %1539 = vdwg.mxu0
    %v1540 = vadd.f32 %v1535, %v212
    %v1541 = vtanh.pop %v1540
    %1542 = vst.msk [vmem:[%s291] sm:$0x3] %vm287, %v1541
    %v1545 = vunpack.c.l.s4 1966171168
    %v1546 = vunpack.c.0.s8 %v1545
    %v1547 = vlaneseq
    %v1548 = vshrl.u32 %v1547, 7
    %v1549 = vsub.s32 %v1546, %v1548
    %v1550 = vrot.slane %v1541, %v1549
    %v1551 = vcombine.high %v1550, %v1550
    %v1553 = vunpack.c.l.s4 1966171168
    %v1554 = vunpack.c.0.s8 %v1553
    %v1555 = vlaneseq
    %v1556 = vshrl.u32 %v1555, 7
    %v1557 = vsub.s32 %v1554, %v1556
    %v1558 = vrot.slane %v1550, %v1557
    %v1560 = vunpack.c.l.s4 1966171168
    %v1561 = vunpack.c.0.s8 %v1560
    %v1562 = vlaneseq
    %v1563 = vshrl.u32 %v1562, 7
    %v1564 = vsub.s32 %v1561, %v1563
    %v1565 = vrot.slane %v1551, %v1564
    %1568 = vst.msk [vmem:[#allocation3 + $0x6] sm:$0x1] %vm439, %v1558
    %1569 = vst.msk [vmem:[#allocation3 + $0xe] sm:$0x1] %vm439, %v1565
    %v1570 = vld [vmem:[#allocation3 + $0x7] sm:$0x1]
    %v1571 = vld [vmem:[#allocation3 + $0xf] sm:$0x1]
    %v1572 = vld [vmem:[#allocation2] sm:$0x3]
    %v1573 = vpack.c.bf16 %v1572, %v1572
    %v1575 = vsel %vm192, %v1573, 0
    %1577 = vmatprep.subr.bf16.mxu0 0
    %1578 = vmatpush1.bf16.msra.mxu0 0
    %1579 = vmatprep.subr.bf16.mxu0 0
    %1580 = vmatpush1.bf16.msra.mxu0 0
    %1581 = vmatprep.subr.bf16.mxu0 0
    %1582 = vmatpush1.bf16.msra.mxu0 0
    %1583 = vmatprep.subr.bf16.mxu0 0
    %1584 = vmatpush1.bf16.msra.mxu0 0
    %1585 = vmatprep.subr.bf16.mxu0 0
    %1586 = vmatpush1.bf16.msra.mxu0 0
    %1587 = vmatprep.subr.bf16.mxu0 0
    %1588 = vmatpush1.bf16.msra.mxu0 0
    %1589 = vmatprep.subr.bf16.mxu0 0
    %1590 = vmatpush1.bf16.msra.mxu0 %v227
    %1591 = vmatprep.subr.bf16.mxu0 0
    %1592 = vmatpush1.bf16.msra.mxu0 %v226
    %1593 = vmatprep.subr.bf16.mxu0 0
    %1594 = vmatpush2.bf16.msra.mxu0 0
    %1595 = vmatprep.subr.bf16.mxu0 0
    %1596 = vmatpush2.bf16.msra.mxu0 0
    %1597 = vmatprep.subr.bf16.mxu0 0
    %1598 = vmatpush2.bf16.msra.mxu0 0
    %1599 = vmatprep.subr.bf16.mxu0 0
    %1600 = vmatpush2.bf16.msra.mxu0 0
    %1601 = vmatprep.subr.bf16.mxu0 0
    %1602 = vmatpush2.bf16.msra.mxu0 0
    %1603 = vmatprep.subr.bf16.mxu0 0
    %1604 = vmatpush2.bf16.msra.mxu0 0
    %1605 = vmatprep.subr.bf16.mxu0 0
    %1606 = vmatpush2.bf16.msra.mxu0 0
    %1607 = vmatprep.subr.bf16.mxu0 0
    %1608 = vmatpush2.bf16.msra.mxu0 0
    %1609 = vmatprep.mubr.bf16.mxu0 0
    %1610 = vmatmul.mubr.bf16.gmra.mxu0 %v1575
    %v1611 = vpop.f32.mrf.mxu0
    %v1612 = vadd.f32 0.0, %v1611
    %v1613 = vpop.f32.mrf.mxu0
    %v1614 = vpop.f32.mrf.mxu0
    %v1615 = vpop.f32.mrf.mxu0
    %1616 = vdwg.mxu0
    %v1618 = vrot.slane %v1612, 1
    %v1621 = vadd.f32 %v1570, %v1612
    %v1622 = vadd.f32 %v1571, %v1618
    %v1623 = vtanh.pop %v1621
    %v1624 = vtanh.pop %v1622
    %v1627 = vrot.slane %v1624, 7
    %v1628 = vsel %vm284, %v1627, %v1623
    %1630 = vst.msk [vmem:[#allocation2] sm:$0x3] %vm287, %v1628
    %v1631 = vpack.c.bf16 %v1623, %v1623
    %v1632 = vpack.c.bf16 %v1624, %v1624
    %v1633 = vld [vmem:[%s291] sm:$0x3]
    %v1634 = vpack.c.bf16 %v1633, %v1633
    %v1636 = vsel %vm192, %v1634, 0
    %1638 = vmatprep.subr.bf16.mxu0 0
    %1639 = vmatpush1.bf16.msra.mxu0 0
    %1640 = vmatprep.subr.bf16.mxu0 0
    %1641 = vmatpush1.bf16.msra.mxu0 0
    %1642 = vmatprep.subr.bf16.mxu0 0
    %1643 = vmatpush1.bf16.msra.mxu0 0
    %1644 = vmatprep.subr.bf16.mxu0 0
    %1645 = vmatpush1.bf16.msra.mxu0 0
    %1646 = vmatprep.subr.bf16.mxu0 0
    %1647 = vmatpush1.bf16.msra.mxu0 0
    %1648 = vmatprep.subr.bf16.mxu0 0
    %1649 = vmatpush1.bf16.msra.mxu0 0
    %1650 = vmatprep.subr.bf16.mxu0 0
    %1651 = vmatpush1.bf16.msra.mxu0 %v303
    %1652 = vmatprep.subr.bf16.mxu0 0
    %1653 = vmatpush1.bf16.msra.mxu0 %v302
    %1654 = vmatprep.subr.bf16.mxu0 0
    %1655 = vmatpush2.bf16.msra.mxu0 0
    %1656 = vmatprep.subr.bf16.mxu0 0
    %1657 = vmatpush2.bf16.msra.mxu0 0
    %1658 = vmatprep.subr.bf16.mxu0 0
    %1659 = vmatpush2.bf16.msra.mxu0 0
    %1660 = vmatprep.subr.bf16.mxu0 0
    %1661 = vmatpush2.bf16.msra.mxu0 0
    %1662 = vmatprep.subr.bf16.mxu0 0
    %1663 = vmatpush2.bf16.msra.mxu0 0
    %1664 = vmatprep.subr.bf16.mxu0 0
    %1665 = vmatpush2.bf16.msra.mxu0 0
    %1666 = vmatprep.subr.bf16.mxu0 0
    %1667 = vmatpush2.bf16.msra.mxu0 0
    %1668 = vmatprep.subr.bf16.mxu0 0
    %1669 = vmatpush2.bf16.msra.mxu0 0
    %1670 = vmatprep.mubr.bf16.mxu0 0
    %1671 = vmatmul.mubr.bf16.gmra.mxu0 %v1636
    %v1672 = vpop.f32.mrf.mxu0
    %v1673 = vadd.f32 0.0, %v1672
    %v1674 = vpop.f32.mrf.mxu0
    %v1675 = vpop.f32.mrf.mxu0
    %v1676 = vpop.f32.mrf.mxu0
    %1677 = vdwg.mxu0
    %v1680 = vunpack.c.l.b16 %v1631
    %v1681 = vunpack.c.l.b16 %v1632
    %v1682 = vrot.slane %v1681, 7
    %v1683 = vsel %vm284, %v1682, %v1680
    %v1684 = vpack.c.b16 %v1683, %v1683
    %v1686 = vsel %vm192, %v1684, 0
    %1688 = vmatprep.subr.bf16.mxu0 0
    %1689 = vmatpush1.bf16.msra.mxu0 0
    %1690 = vmatprep.subr.bf16.mxu0 0
    %1691 = vmatpush1.bf16.msra.mxu0 0
    %1692 = vmatprep.subr.bf16.mxu0 0
    %1693 = vmatpush1.bf16.msra.mxu0 0
    %1694 = vmatprep.subr.bf16.mxu0 0
    %1695 = vmatpush1.bf16.msra.mxu0 0
    %1696 = vmatprep.subr.bf16.mxu0 0
    %1697 = vmatpush1.bf16.msra.mxu0 0
    %1698 = vmatprep.subr.bf16.mxu0 0
    %1699 = vmatpush1.bf16.msra.mxu0 0
    %1700 = vmatprep.subr.bf16.mxu0 0
    %1701 = vmatpush1.bf16.msra.mxu0 %v365
    %1702 = vmatprep.subr.bf16.mxu0 0
    %1703 = vmatpush1.bf16.msra.mxu0 %v364
    %1704 = vmatprep.subr.bf16.mxu0 0
    %1705 = vmatpush2.bf16.msra.mxu0 0
    %1706 = vmatprep.subr.bf16.mxu0 0
    %1707 = vmatpush2.bf16.msra.mxu0 0
    %1708 = vmatprep.subr.bf16.mxu0 0
    %1709 = vmatpush2.bf16.msra.mxu0 0
    %1710 = vmatprep.subr.bf16.mxu0 0
    %1711 = vmatpush2.bf16.msra.mxu0 0
    %1712 = vmatprep.subr.bf16.mxu0 0
    %1713 = vmatpush2.bf16.msra.mxu0 0
    %1714 = vmatprep.subr.bf16.mxu0 0
    %1715 = vmatpush2.bf16.msra.mxu0 0
    %1716 = vmatprep.subr.bf16.mxu0 0
    %1717 = vmatpush2.bf16.msra.mxu0 0
    %1718 = vmatprep.subr.bf16.mxu0 0
    %1719 = vmatpush2.bf16.msra.mxu0 0
    %1720 = vmatprep.mubr.bf16.mxu0 0
    %1721 = vmatmul.mubr.bf16.gmra.mxu0 %v1686
    %v1722 = vpop.f32.mrf.mxu0
    %v1723 = vadd.f32 %v1673, %v1722
    %v1724 = vpop.f32.mrf.mxu0
    %v1725 = vpop.f32.mrf.mxu0
    %v1726 = vpop.f32.mrf.mxu0
    %1727 = vdwg.mxu0
    %v1728 = vadd.f32 %v1723, %v212
    %v1729 = vtanh.pop %v1728
    %1730 = vst.msk [vmem:[%s291] sm:$0x3] %vm287, %v1729
    %v1733 = vunpack.c.l.s4 1966171168
    %v1734 = vunpack.c.0.s8 %v1733
    %v1735 = vlaneseq
    %v1736 = vshrl.u32 %v1735, 7
    %v1737 = vsub.s32 %v1734, %v1736
    %v1738 = vrot.slane %v1729, %v1737
    %v1739 = vcombine.high %v1738, %v1738
    %v1741 = vunpack.c.l.s4 1966171168
    %v1742 = vunpack.c.0.s8 %v1741
    %v1743 = vlaneseq
    %v1744 = vshrl.u32 %v1743, 7
    %v1745 = vsub.s32 %v1742, %v1744
    %v1746 = vrot.slane %v1738, %v1745
    %v1748 = vunpack.c.l.s4 1966171168
    %v1749 = vunpack.c.0.s8 %v1748
    %v1750 = vlaneseq
    %v1751 = vshrl.u32 %v1750, 7
    %v1752 = vsub.s32 %v1749, %v1751
    %v1753 = vrot.slane %v1739, %v1752
    %1756 = vst.msk [vmem:[#allocation3 + $0x7] sm:$0x1] %vm439, %v1746
    %1757 = vst.msk [vmem:[#allocation3 + $0xf] sm:$0x1] %vm439, %v1753
    %v1758 = vld [vmem:[#allocation3] sm:$0xff]
    %v1759 = vld [vmem:[#allocation3 + $0x8] sm:$0xff]
    %v1760 = vpack.c.bf16 %v1758, %v1758
    %v1761 = vpack.c.bf16 %v1759, %v1759
    %v1762 = vld [vmem:[#allocation13] sm:$0xf]
    %v1763 = vld [vmem:[#allocation13 + $0x4] sm:$0xf]
    %v1764 = vld [vmem:[#allocation13 + $0x8] sm:$0xf]
    %v1765 = vld [vmem:[#allocation13 + $0xc] sm:$0xf]
    %v1766 = vld [vmem:[%s8] sm:$0x1]
    %v1768 = vlaneseq
    %v1769 = vshrl.u32 %v1768, 7
    %v1770 = vsub.s32 0, %v1769
    %v1771 = vrot.slane %v1766, %v1770
    %v1775 = vunpack.c.l.b16 %v1760
    %v1776 = vunpack.c.l.b16 %v1761
    %v1777 = vpack.c.b16 %v1776, %v1775
    %v1782 = vunpack.c.l.b16 %v1762
    %v1783 = vunpack.c.l.b16 %v1763
    %v1784 = vunpack.c.l.b16 %v1764
    %v1785 = vunpack.c.l.b16 %v1765
    %v1786 = vpack.c.b16 %v1783, %v1782
    %v1787 = vpack.c.b16 %v1785, %v1784
    %v1791 = vsel %vm192, %v1777, 0
    %1793 = vmatprep.subr.bf16.mxu0 0
    %1794 = vmatpush1.bf16.msra.mxu0 0
    %1795 = vmatprep.subr.bf16.mxu0 0
    %1796 = vmatpush1.bf16.msra.mxu0 0
    %1797 = vmatprep.subr.bf16.mxu0 0
    %1798 = vmatpush1.bf16.msra.mxu0 0
    %1799 = vmatprep.subr.bf16.mxu0 0
    %1800 = vmatpush1.bf16.msra.mxu0 0
    %1801 = vmatprep.subr.bf16.mxu0 0
    %1802 = vmatpush1.bf16.msra.mxu0 0
    %1803 = vmatprep.subr.bf16.mxu0 0
    %1804 = vmatpush1.bf16.msra.mxu0 0
    %1805 = vmatprep.subr.bf16.mxu0 0
    %1806 = vmatpush1.bf16.msra.mxu0 %v1787
    %1807 = vmatprep.subr.bf16.mxu0 0
    %1808 = vmatpush1.bf16.msra.mxu0 %v1786
    %1809 = vmatprep.subr.bf16.mxu0 0
    %1810 = vmatpush2.bf16.msra.mxu0 0
    %1811 = vmatprep.subr.bf16.mxu0 0
    %1812 = vmatpush2.bf16.msra.mxu0 0
    %1813 = vmatprep.subr.bf16.mxu0 0
    %1814 = vmatpush2.bf16.msra.mxu0 0
    %1815 = vmatprep.subr.bf16.mxu0 0
    %1816 = vmatpush2.bf16.msra.mxu0 0
    %1817 = vmatprep.subr.bf16.mxu0 0
    %1818 = vmatpush2.bf16.msra.mxu0 0
    %1819 = vmatprep.subr.bf16.mxu0 0
    %1820 = vmatpush2.bf16.msra.mxu0 0
    %1821 = vmatprep.subr.bf16.mxu0 0
    %1822 = vmatpush2.bf16.msra.mxu0 0
    %1823 = vmatprep.subr.bf16.mxu0 0
    %1824 = vmatpush2.bf16.msra.mxu0 0
    %1825 = vmatprep.mubr.bf16.mxu0 0
    %1826 = vmatmul.mubr.bf16.gmra.mxu0 %v1791
    %v1827 = vpop.f32.mrf.mxu0
    %v1828 = vadd.f32 %v1771, %v1827
    %v1829 = vpop.f32.mrf.mxu0
    %v1830 = vpop.f32.mrf.mxu0
    %v1831 = vadd.f32 %v1771, %v1830
    %v1832 = vpop.f32.mrf.mxu0
    %1833 = vdwg.mxu0
    %1834 = vst.msk [vmem:[#allocation15] sm:$0xff] %vm192, %v1828
    %1835 = vst.msk [vmem:[#allocation15 + $0x8] sm:$0xff] %vm192, %v1831
    // Predicated region
    $region66: #{tpu_custom_call.1} parent=1 // pred_check
      _
    $region67: #{tpu_custom_call.1} parent=1 // pred_check_branch
      %1837 = sbr.rel (0) target = $region69
    $region68: #{tpu_custom_call.1} parent=1 // pred_region
      %s1839 = ssub.s32 256, 256
      %1840 = vsyncadd [#allocation6], %s1839
      %s1841 = sshll.u32 [#allocation15], 4
      %s1842 = int_to_ptr.vmem [resolvable:$true] %s1841
      %1847 = dma.vmem_to_hbm [thread:$0]  %s1842, 256, %s9, [#allocation6], 128, 128, 8
    $region69: #{tpu_custom_call.1} parent=1 // pred_fallthru
      _
    // Predicated region
    $region70: #{tpu_custom_call.1} parent=1 // pred_check
      _
    $region71: #{tpu_custom_call.1} parent=1 // pred_check_branch
      %1849 = sbr.rel (0) target = $region73
    $region72: #{tpu_custom_call.1} parent=1 // pred_region
      %1850 = dma.done [#allocation6], 256
    $region73: #{tpu_custom_call.1} parent=1 // pred_fallthru
      _
    %1851 = vsyncpa [#allocation5], 1
    %1852 = vsyncpa [#allocation8], 1
    %1853 = vsyncpa [#allocation11], 1
    %1854 = vsyncpa [#allocation14], 1
    %1855 = vsyncpa [#allocation6], 1

</llo_original>
